<compile_context>
chip_gen: v7x
topology: tpu7x:2x2x1
jax: 0.10.0
libtpu: 0.0.40
codegen_flags: <defaults>
</compile_context>

<pallas_src>
import jax
import jax.numpy as jnp
from jax.experimental import pallas as pl
from jax.experimental.pallas import tpu as pltpu


def _cnn_lstm_kernel(x_ref, w1_ref, b1_ref, w2_ref, b2_ref,
                     wih0_ref, whh0_ref, bl0_ref,
                     wih1_ref, whh1_ref, bl1_ref,
                     wfc_ref, bfc_ref,
                     out_ref,
                     s1_ref, s2_ref, proj0_ref, h0seq_ref, proj1_ref):
    f32 = jnp.float32
    bf16 = jnp.bfloat16

    TB = out_ref.shape[0]              # batch tile handled by this grid program
    BL = x_ref.shape[0]                # TB * L (batch-major flat rows)
    L = BL // TB
    L2, L4 = L // 2, L // 4
    BL2 = TB * L2
    H = whh0_ref.shape[0]

    # ---- Conv1d (kernel=3, padding=1) + ReLU as ONE fused im2col matmul --------------------
    def conv1d_relu(xs, w_ref, b_ref, period):
        n, cin = xs.shape
        rows = jax.lax.broadcasted_iota(jnp.int32, (n, 1), 0)
        zrow = jnp.zeros((1, cin), f32)
        xm = jnp.concatenate([zrow, xs[:n - 1, :]], axis=0)       # x[t-1]
        xp = jnp.concatenate([xs[1:, :], zrow], axis=0)           # x[t+1]
        xm = jnp.where((rows % period) == 0, 0.0, xm)             # zero-pad at each batch start
        xp = jnp.where((rows % period) == (period - 1), 0.0, xp)  # zero-pad at each batch end
        col = jnp.concatenate([xm, xs, xp], axis=-1).astype(bf16)  # (n, 3*cin) im2col
        y = jnp.dot(col, w_ref[...], preferred_element_type=f32) + b_ref[...]
        return jnp.maximum(y, 0.0)

    # conv1 + relu
    s1_ref[...] = conv1d_relu(x_ref[...], w1_ref, b1_ref, L)

    # maxpool1(2,2): one vectorized even/odd max over the whole slab (L even => batch-safe)
    p1 = jnp.maximum(s1_ref[pl.ds(0, BL2, stride=2), :],
                     s1_ref[pl.ds(1, BL2, stride=2), :])           # (TB*L2, C1) batch-major

    # conv2 + relu
    s2_ref[...] = conv1d_relu(p1, w2_ref, b2_ref, L2)

    # maxpool2(2,2) materialized once, directly in TIME-MAJOR order (row = t*TB + b) so the
    # recurrent loops only need contiguous dynamic slices.
    p2 = jnp.concatenate(
        [jnp.maximum(s2_ref[pl.ds(2 * t, TB, stride=L2), :],
                     s2_ref[pl.ds(2 * t + 1, TB, stride=L2), :]) for t in range(L4)],
        axis=0)                                                    # (TB*L4, C2)

    # ---- 2-layer LSTM (PyTorch gate order i, f, g, o) ---------------------------------------
    # Hoisted layer-0 input projection for ALL timesteps (one big matmul).
    proj0_ref[...] = jnp.dot(p2, wih0_ref[...], preferred_element_type=f32) + bl0_ref[...]

    # Gate nonlinearity lane mask: tanh only on the g-gate columns, sigmoid elsewhere.
    cols = jax.lax.broadcasted_iota(jnp.int32, (TB, 4 * H), 1)
    is_g = (cols >= 2 * H) & (cols < 3 * H)

    whh0 = whh0_ref[...]
    whh1 = whh1_ref[...]

    def cell(gx, h, c, whh):
        g = gx + jnp.dot(h, whh, preferred_element_type=f32)       # only recurrent matmul in-loop
        act = jnp.where(is_g, jnp.tanh(g), jax.nn.sigmoid(g))
        i_g, f_g = act[:, 0:H], act[:, H:2 * H]
        g_g, o_g = act[:, 2 * H:3 * H], act[:, 3 * H:4 * H]
        c = f_g * c + i_g * g_g
        h = o_g * jnp.tanh(c)
        return h, c

    zeros_state = jnp.zeros((TB, H), f32)

    # Layer 0: batched over the batch tile; store hidden states time-major for layer 1.
    def layer0_step(t, carry):
        h, c = carry
        r = pl.multiple_of(t * TB, TB)
        h, c = cell(proj0_ref[pl.ds(r, TB), :], h, c, whh0)
        h0seq_ref[pl.ds(r, TB), :] = h
        return (h, c)

    _ = jax.lax.fori_loop(0, L4, layer0_step, (zeros_state, zeros_state), unroll=True)

    # Hoisted layer-1 input projection (inter-layer dropout is eval-mode identity).
    proj1_ref[...] = (jnp.dot(h0seq_ref[...], wih1_ref[...], preferred_element_type=f32)
                      + bl1_ref[...])

    def layer1_step(t, carry):
        h, c = carry
        r = pl.multiple_of(t * TB, TB)
        return cell(proj1_ref[pl.ds(r, TB), :], h, c, whh1)

    h1, _ = jax.lax.fori_loop(0, L4, layer1_step, (zeros_state, zeros_state), unroll=True)

    # ---- dropout(last hidden) is identity in eval mode; FC as one matmul + one store --------
    out_ref[...] = (jnp.dot(h1, wfc_ref[...], preferred_element_type=f32)
                    + bfc_ref[...]).astype(out_ref.dtype)


def cnn_lstm_forward(x, params, *, batch_tile=None, interpret=False):
    """x: (batch, seq_len, input_size) float32 -> logits (batch, num_classes)."""
    B, L, Cin = x.shape
    assert L % 4 == 0, "sequence length must be divisible by 4 (two MaxPool1d(2,2))"
    TB = B if batch_tile is None else batch_tile
    assert B % TB == 0
    if TB != B:
        assert TB % 8 == 0, "batch tile must be sublane-aligned when splitting the grid"

    C1 = params["w1"].shape[2]
    C2 = params["w2"].shape[2]
    H = params["whh0"].shape[0]
    NC = params["wfc"].shape[1]
    L2, L4 = L // 2, L // 4

    # Stack the 3 conv taps into a single im2col weight; bf16 operands, f32 MXU accumulation.
    w1s = params["w1"].reshape(3 * Cin, C1).astype(jnp.bfloat16)
    w2s = params["w2"].reshape(3 * C1, C2).astype(jnp.bfloat16)
    x2d = x.reshape(B * L, Cin)  # batch-major (batch, time) flattened; features on lanes

    args = (x2d, w1s, params["b1"], w2s, params["b2"],
            params["wih0"], params["whh0"], params["bl0"],
            params["wih1"], params["whh1"], params["bl1"],
            params["wfc"], params["bfc"])

    def full_spec(a):
        return pl.BlockSpec(a.shape, lambda i: (0,) * a.ndim)

    in_specs = ([pl.BlockSpec((TB * L, Cin), lambda i: (i, 0))]
                + [full_spec(a) for a in args[1:]])

    return pl.pallas_call(
        _cnn_lstm_kernel,
        grid=(B // TB,),
        out_shape=jax.ShapeDtypeStruct((B, NC), jnp.float32),
        in_specs=in_specs,
        out_specs=pl.BlockSpec((TB, NC), lambda i: (i, 0)),
        scratch_shapes=[
            pltpu.VMEM((TB * L, C1), jnp.float32),       # conv1 + relu
            pltpu.VMEM((TB * L2, C2), jnp.float32),      # conv2 + relu
            pltpu.VMEM((TB * L4, 4 * H), jnp.float32),   # layer-0 hoisted input projection (time-major)
            pltpu.VMEM((TB * L4, H), jnp.float32),       # layer-0 hidden states (time-major)
            pltpu.VMEM((TB * L4, 4 * H), jnp.float32),   # layer-1 hoisted input projection (time-major)
        ],
        compiler_params=pltpu.CompilerParams(dimension_semantics=("parallel",)),
        interpret=interpret,
    )(*args)


def init_params(key, input_size, cnn_channels, lstm_hidden, num_classes):
    """Deterministic synthetic weights in kernel-friendly layouts:
       conv weights (3, Cin, Cout); lstm weights (in, 4H); fc weight (H, NC)."""
    C1, C2, H = cnn_channels, cnn_channels * 2, lstm_hidden
    ks = jax.random.split(key, 12)

    def u(k, shape, scale):
        return jax.random.uniform(k, shape, jnp.float32, -scale, scale)

    return dict(
        w1=u(ks[0], (3, input_size, C1), (3 * input_size) ** -0.5),
        b1=u(ks[1], (1, C1), (3 * input_size) ** -0.5),
        w2=u(ks[2], (3, C1, C2), (3 * C1) ** -0.5),
        b2=u(ks[3], (1, C2), (3 * C1) ** -0.5),
        wih0=u(ks[4], (C2, 4 * H), H ** -0.5),
        whh0=u(ks[5], (H, 4 * H), H ** -0.5),
        bl0=u(ks[6], (1, 4 * H), H ** -0.5),     # b_ih + b_hh combined
        wih1=u(ks[7], (H, 4 * H), H ** -0.5),
        whh1=u(ks[8], (H, 4 * H), H ** -0.5),
        bl1=u(ks[9], (1, 4 * H), H ** -0.5),
        wfc=u(ks[10], (H, num_classes), H ** -0.5),
        bfc=u(ks[11], (1, num_classes), H ** -0.5),
    )


def reference_forward(x, p):
    """Pure-JAX reference reproducing the PyTorch forward (eval mode, f32)."""
    def conv_relu_pool(xin, w, b):
        Bn, Ln, _ = xin.shape
        Cout = w.shape[2]
        xp = jnp.pad(xin, ((0, 0), (1, 1), (0, 0)))
        acc = jnp.zeros((Bn, Ln, Cout), jnp.float32) + b[None]
        for k in range(3):
            acc = acc + jnp.einsum('blc,co->blo', xp[:, k:k + Ln, :], w[k])
        acc = jnp.maximum(acc, 0.0)
        return jnp.max(acc.reshape(Bn, Ln // 2, 2, Cout), axis=2)

    h = conv_relu_pool(x, p["w1"], p["b1"])
    h = conv_relu_pool(h, p["w2"], p["b2"])
    Bn = h.shape[0]
    H = p["whh0"].shape[0]

    def lstm_layer(seq, wih, whh, bias):
        def step(carry, x_t):
            hh, cc = carry
            g = x_t @ wih + hh @ whh + bias
            i = jax.nn.sigmoid(g[:, :H])
            f = jax.nn.sigmoid(g[:, H:2 * H])
            gg = jnp.tanh(g[:, 2 * H:3 * H])
            o = jax.nn.sigmoid(g[:, 3 * H:])
            cc = f * cc + i * gg
            hh = o * jnp.tanh(cc)
            return (hh, cc), hh
        init = (jnp.zeros((Bn, H), jnp.float32), jnp.zeros((Bn, H), jnp.float32))
        _, outs = jax.lax.scan(step, init, jnp.swapaxes(seq, 0, 1))
        return jnp.swapaxes(outs, 0, 1)

    o0 = lstm_layer(h, p["wih0"], p["whh0"], p["bl0"])
    o1 = lstm_layer(o0, p["wih1"], p["whh1"], p["bl1"])
    return o1[:, -1, :] @ p["wfc"] + p["bfc"]


if __name__ == "__main__":
    key = jax.random.PRNGKey(0)
    kx, kp = jax.random.split(key)

    B, SEQ, FEAT = 16, 16, 8          # batch, sequence length, input_size
    CNN_CH, HID, NCLS = 8, 16, 3      # cnn_channels, lstm_hidden, num_classes

    x = jax.random.normal(kx, (B, SEQ, FEAT), jnp.float32)
    params = init_params(kp, FEAT, CNN_CH, HID, NCLS)

    # batch_tile=8 -> grid=(2,) parallel over batch tiles (sharded across TCs on v7x).
    out = jax.block_until_ready(cnn_lstm_forward(x, params, batch_tile=8))
    ref = jax.block_until_ready(reference_forward(x, params))

    assert out.shape == (B, NCLS), out.shape
    assert bool(jnp.all(jnp.isfinite(out)))
    assert bool(jnp.allclose(out, ref, atol=3e-2, rtol=3e-2)), (out, ref)
    print("KERNEL_OK")
</pallas_src>

<mosaic_0001>
module attributes {stable_mosaic.version = 11 : i64} {
  func.func @_cnn_lstm_kernel(%arg0: i32, %arg1: memref<128x8xf32, #tpu.memory_space<vmem>>, %arg2: memref<24x8xbf16, #tpu.memory_space<vmem>>, %arg3: memref<1x8xf32, #tpu.memory_space<vmem>>, %arg4: memref<24x16xbf16, #tpu.memory_space<vmem>>, %arg5: memref<1x16xf32, #tpu.memory_space<vmem>>, %arg6: memref<16x64xf32, #tpu.memory_space<vmem>>, %arg7: memref<16x64xf32, #tpu.memory_space<vmem>>, %arg8: memref<1x64xf32, #tpu.memory_space<vmem>>, %arg9: memref<16x64xf32, #tpu.memory_space<vmem>>, %arg10: memref<16x64xf32, #tpu.memory_space<vmem>>, %arg11: memref<1x64xf32, #tpu.memory_space<vmem>>, %arg12: memref<16x3xf32, #tpu.memory_space<vmem>>, %arg13: memref<1x3xf32, #tpu.memory_space<vmem>>, %arg14: memref<8x3xf32, #tpu.memory_space<vmem>>, %arg15: memref<128x8xf32, #tpu.memory_space<vmem>>, %arg16: memref<64x16xf32, #tpu.memory_space<vmem>>, %arg17: memref<32x64xf32, #tpu.memory_space<vmem>>, %arg18: memref<32x16xf32, #tpu.memory_space<vmem>>, %arg19: memref<32x64xf32, #tpu.memory_space<vmem>>) attributes {dimension_semantics = [#tpu.dimension_semantics<parallel>], iteration_bounds = array<i64: 2>, scalar_prefetch = 0 : i64, scratch_operands = 5 : i64, tpu.core_type = #tpu.core_type<tc>, window_params = [{transform_indices = @transform_0, window_bounds = array<i64: 128, 8>}, {pipeline_mode = #tpu.pipeline_mode<synchronous>, transform_indices = @transform_1, window_bounds = array<i64: 24, 8>}, {pipeline_mode = #tpu.pipeline_mode<synchronous>, transform_indices = @transform_2, window_bounds = array<i64: 1, 8>}, {pipeline_mode = #tpu.pipeline_mode<synchronous>, transform_indices = @transform_3, window_bounds = array<i64: 24, 16>}, {pipeline_mode = #tpu.pipeline_mode<synchronous>, transform_indices = @transform_4, window_bounds = array<i64: 1, 16>}, {pipeline_mode = #tpu.pipeline_mode<synchronous>, transform_indices = @transform_5, window_bounds = array<i64: 16, 64>}, {pipeline_mode = #tpu.pipeline_mode<synchronous>, transform_indices = @transform_6, window_bounds = array<i64: 16, 64>}, {pipeline_mode = #tpu.pipeline_mode<synchronous>, transform_indices = @transform_7, window_bounds = array<i64: 1, 64>}, {pipeline_mode = #tpu.pipeline_mode<synchronous>, transform_indices = @transform_8, window_bounds = array<i64: 16, 64>}, {pipeline_mode = #tpu.pipeline_mode<synchronous>, transform_indices = @transform_9, window_bounds = array<i64: 16, 64>}, {pipeline_mode = #tpu.pipeline_mode<synchronous>, transform_indices = @transform_10, window_bounds = array<i64: 1, 64>}, {pipeline_mode = #tpu.pipeline_mode<synchronous>, transform_indices = @transform_11, window_bounds = array<i64: 16, 3>}, {pipeline_mode = #tpu.pipeline_mode<synchronous>, transform_indices = @transform_12, window_bounds = array<i64: 1, 3>}, {transform_indices = @transform_13, window_bounds = array<i64: 8, 3>}]} {
    %c0 = arith.constant 0 : index
    %c0_0 = arith.constant 0 : index
    %0 = vector.load %arg1[%c0, %c0_0] : memref<128x8xf32, #tpu.memory_space<vmem>>, vector<128x8xf32>
    %1 = tpu.iota {dimensions = array<i32: 0>} : vector<128x1xi32>
    %cst = arith.constant 0.000000e+00 : f32
    %2 = vector.broadcast %cst : f32 to vector<1x8xf32>
    %3 = vector.extract_strided_slice %0 {offsets = [0, 0], sizes = [127, 8], strides = [1, 1]} : vector<128x8xf32> to vector<127x8xf32>
    %4 = tpu.concatenate %2, %3 in 0 : vector<1x8xf32>, vector<127x8xf32> -> vector<128x8xf32>
    %5 = vector.extract_strided_slice %0 {offsets = [1, 0], sizes = [127, 8], strides = [1, 1]} : vector<128x8xf32> to vector<127x8xf32>
    %6 = tpu.concatenate %5, %2 in 0 : vector<127x8xf32>, vector<1x8xf32> -> vector<128x8xf32>
    %c16_i32 = arith.constant 16 : i32
    %c0_i32 = arith.constant 0 : i32
    %7 = arith.cmpi eq, %c16_i32, %c0_i32 : i32
    %c1_i32 = arith.constant 1 : i32
    %8 = arith.select %7, %c1_i32, %c16_i32 : i32
    %9 = vector.broadcast %8 : i32 to vector<128x1xi32>
    %10 = arith.remsi %1, %9 : vector<128x1xi32>
    %c0_i32_1 = arith.constant 0 : i32
    %11 = vector.broadcast %c0_i32_1 : i32 to vector<128x1xi32>
    %12 = arith.cmpi ne, %10, %11 : vector<128x1xi32>
    %c0_i32_2 = arith.constant 0 : i32
    %13 = vector.broadcast %c0_i32_2 : i32 to vector<128x1xi32>
    %14 = arith.cmpi slt, %10, %13 : vector<128x1xi32>
    %c0_i32_3 = arith.constant 0 : i32
    %15 = arith.cmpi slt, %8, %c0_i32_3 : i32
    %16 = vector.broadcast %15 : i1 to vector<128x1xi1>
    %17 = vector.broadcast %16 : vector<128x1xi1> to vector<128x1xi1>
    %18 = arith.xori %14, %17 : vector<128x1xi1>
    %19 = arith.andi %18, %12 : vector<128x1xi1>
    %20 = vector.broadcast %8 : i32 to vector<128x1xi32>
    %21 = arith.addi %10, %20 : vector<128x1xi32>
    %22 = arith.select %19, %21, %10 : vector<128x1xi1>, vector<128x1xi32>
    %c0_i32_4 = arith.constant 0 : i32
    %23 = vector.broadcast %c0_i32_4 : i32 to vector<128x1xi32>
    %24 = arith.cmpi eq, %22, %23 : vector<128x1xi32>
    %cst_5 = arith.constant 0.000000e+00 : f32
    %25 = vector.shape_cast %24 : vector<128x1xi1> to vector<128x1xi1>
    %26 = vector.broadcast %25 : vector<128x1xi1> to vector<128x8xi1>
    %27 = vector.broadcast %cst_5 : f32 to vector<128x8xf32>
    %28 = arith.select %26, %27, %4 : vector<128x8xi1>, vector<128x8xf32>
    %c16_i32_6 = arith.constant 16 : i32
    %c0_i32_7 = arith.constant 0 : i32
    %29 = arith.cmpi eq, %c16_i32_6, %c0_i32_7 : i32
    %c1_i32_8 = arith.constant 1 : i32
    %30 = arith.select %29, %c1_i32_8, %c16_i32_6 : i32
    %31 = vector.broadcast %30 : i32 to vector<128x1xi32>
    %32 = arith.remsi %1, %31 : vector<128x1xi32>
    %c0_i32_9 = arith.constant 0 : i32
    %33 = vector.broadcast %c0_i32_9 : i32 to vector<128x1xi32>
    %34 = arith.cmpi ne, %32, %33 : vector<128x1xi32>
    %c0_i32_10 = arith.constant 0 : i32
    %35 = vector.broadcast %c0_i32_10 : i32 to vector<128x1xi32>
    %36 = arith.cmpi slt, %32, %35 : vector<128x1xi32>
    %c0_i32_11 = arith.constant 0 : i32
    %37 = arith.cmpi slt, %30, %c0_i32_11 : i32
    %38 = vector.broadcast %37 : i1 to vector<128x1xi1>
    %39 = vector.broadcast %38 : vector<128x1xi1> to vector<128x1xi1>
    %40 = arith.xori %36, %39 : vector<128x1xi1>
    %41 = arith.andi %40, %34 : vector<128x1xi1>
    %42 = vector.broadcast %30 : i32 to vector<128x1xi32>
    %43 = arith.addi %32, %42 : vector<128x1xi32>
    %44 = arith.select %41, %43, %32 : vector<128x1xi1>, vector<128x1xi32>
    %c15_i32 = arith.constant 15 : i32
    %45 = vector.broadcast %c15_i32 : i32 to vector<128x1xi32>
    %46 = arith.cmpi eq, %44, %45 : vector<128x1xi32>
    %cst_12 = arith.constant 0.000000e+00 : f32
    %47 = vector.shape_cast %46 : vector<128x1xi1> to vector<128x1xi1>
    %48 = vector.broadcast %47 : vector<128x1xi1> to vector<128x8xi1>
    %49 = vector.broadcast %cst_12 : f32 to vector<128x8xf32>
    %50 = arith.select %48, %49, %6 : vector<128x8xi1>, vector<128x8xf32>
    %51 = tpu.concatenate %28, %0, %50 in 1 : vector<128x8xf32>, vector<128x8xf32>, vector<128x8xf32> -> vector<128x24xf32>
    %52 = arith.truncf %51 : vector<128x24xf32> to vector<128x24xbf16>
    %c0_13 = arith.constant 0 : index
    %c0_14 = arith.constant 0 : index
    %53 = vector.load %arg2[%c0_13, %c0_14] : memref<24x8xbf16, #tpu.memory_space<vmem>>, vector<24x8xbf16>
    %cst_15 = arith.constant dense<0.000000e+00> : vector<128x8xf32>
    %54 = tpu.matmul %52, %53, %cst_15 {dimension_numbers = #tpu.dot_dimension_numbers<[1], [0], [0], [1], [0, 0, 1, 1], [], []>} : vector<128x24xbf16>, vector<24x8xbf16>, vector<128x8xf32> -> vector<128x8xf32>
    %c0_16 = arith.constant 0 : index
    %c0_17 = arith.constant 0 : index
    %55 = vector.load %arg3[%c0_16, %c0_17] : memref<1x8xf32, #tpu.memory_space<vmem>>, vector<1x8xf32>
    %56 = vector.broadcast %55 : vector<1x8xf32> to vector<128x8xf32>
    %57 = arith.addf %54, %56 : vector<128x8xf32>
    %cst_18 = arith.constant 0.000000e+00 : f32
    %58 = vector.broadcast %cst_18 : f32 to vector<128x8xf32>
    %59 = arith.maximumf %57, %58 : vector<128x8xf32>
    %c0_19 = arith.constant 0 : index
    %c0_20 = arith.constant 0 : index
    %60 = vector.load %arg15[%c0_19, %c0_20] : memref<128x8xf32, #tpu.memory_space<vmem>>, vector<128x8xf32>
    tpu.vector_store %arg15[%c0_19, %c0_20], %59 {strides = array<i32>} : memref<128x8xf32, #tpu.memory_space<vmem>>, vector<128x8xf32>,
    %c0_21 = arith.constant 0 : index
    %c0_22 = arith.constant 0 : index
    %61 = tpu.strided_load %arg15[%c0_21, %c0_22] {strides = array<i32: 2, 1>} : memref<128x8xf32, #tpu.memory_space<vmem>>, vector<64x8xf32>
    %c1 = arith.constant 1 : index
    %c0_23 = arith.constant 0 : index
    %62 = tpu.strided_load %arg15[%c1, %c0_23] {strides = array<i32: 2, 1>} : memref<128x8xf32, #tpu.memory_space<vmem>>, vector<64x8xf32>
    %63 = arith.maximumf %61, %62 : vector<64x8xf32>
    %64 = tpu.iota {dimensions = array<i32: 0>} : vector<64x1xi32>
    %cst_24 = arith.constant 0.000000e+00 : f32
    %65 = vector.broadcast %cst_24 : f32 to vector<1x8xf32>
    %66 = vector.extract_strided_slice %63 {offsets = [0, 0], sizes = [63, 8], strides = [1, 1]} : vector<64x8xf32> to vector<63x8xf32>
    %67 = tpu.concatenate %65, %66 in 0 : vector<1x8xf32>, vector<63x8xf32> -> vector<64x8xf32>
    %68 = vector.extract_strided_slice %63 {offsets = [1, 0], sizes = [63, 8], strides = [1, 1]} : vector<64x8xf32> to vector<63x8xf32>
    %69 = tpu.concatenate %68, %65 in 0 : vector<63x8xf32>, vector<1x8xf32> -> vector<64x8xf32>
    %c8_i32 = arith.constant 8 : i32
    %c0_i32_25 = arith.constant 0 : i32
    %70 = arith.cmpi eq, %c8_i32, %c0_i32_25 : i32
    %c1_i32_26 = arith.constant 1 : i32
    %71 = arith.select %70, %c1_i32_26, %c8_i32 : i32
    %72 = vector.broadcast %71 : i32 to vector<64x1xi32>
    %73 = arith.remsi %64, %72 : vector<64x1xi32>
    %c0_i32_27 = arith.constant 0 : i32
    %74 = vector.broadcast %c0_i32_27 : i32 to vector<64x1xi32>
    %75 = arith.cmpi ne, %73, %74 : vector<64x1xi32>
    %c0_i32_28 = arith.constant 0 : i32
    %76 = vector.broadcast %c0_i32_28 : i32 to vector<64x1xi32>
    %77 = arith.cmpi slt, %73, %76 : vector<64x1xi32>
    %c0_i32_29 = arith.constant 0 : i32
    %78 = arith.cmpi slt, %71, %c0_i32_29 : i32
    %79 = vector.broadcast %78 : i1 to vector<64x1xi1>
    %80 = vector.broadcast %79 : vector<64x1xi1> to vector<64x1xi1>
    %81 = arith.xori %77, %80 : vector<64x1xi1>
    %82 = arith.andi %81, %75 : vector<64x1xi1>
    %83 = vector.broadcast %71 : i32 to vector<64x1xi32>
    %84 = arith.addi %73, %83 : vector<64x1xi32>
    %85 = arith.select %82, %84, %73 : vector<64x1xi1>, vector<64x1xi32>
    %c0_i32_30 = arith.constant 0 : i32
    %86 = vector.broadcast %c0_i32_30 : i32 to vector<64x1xi32>
    %87 = arith.cmpi eq, %85, %86 : vector<64x1xi32>
    %cst_31 = arith.constant 0.000000e+00 : f32
    %88 = vector.shape_cast %87 : vector<64x1xi1> to vector<64x1xi1>
    %89 = vector.broadcast %88 : vector<64x1xi1> to vector<64x8xi1>
    %90 = vector.broadcast %cst_31 : f32 to vector<64x8xf32>
    %91 = arith.select %89, %90, %67 : vector<64x8xi1>, vector<64x8xf32>
    %c8_i32_32 = arith.constant 8 : i32
    %c0_i32_33 = arith.constant 0 : i32
    %92 = arith.cmpi eq, %c8_i32_32, %c0_i32_33 : i32
    %c1_i32_34 = arith.constant 1 : i32
    %93 = arith.select %92, %c1_i32_34, %c8_i32_32 : i32
    %94 = vector.broadcast %93 : i32 to vector<64x1xi32>
    %95 = arith.remsi %64, %94 : vector<64x1xi32>
    %c0_i32_35 = arith.constant 0 : i32
    %96 = vector.broadcast %c0_i32_35 : i32 to vector<64x1xi32>
    %97 = arith.cmpi ne, %95, %96 : vector<64x1xi32>
    %c0_i32_36 = arith.constant 0 : i32
    %98 = vector.broadcast %c0_i32_36 : i32 to vector<64x1xi32>
    %99 = arith.cmpi slt, %95, %98 : vector<64x1xi32>
    %c0_i32_37 = arith.constant 0 : i32
    %100 = arith.cmpi slt, %93, %c0_i32_37 : i32
    %101 = vector.broadcast %100 : i1 to vector<64x1xi1>
    %102 = vector.broadcast %101 : vector<64x1xi1> to vector<64x1xi1>
    %103 = arith.xori %99, %102 : vector<64x1xi1>
    %104 = arith.andi %103, %97 : vector<64x1xi1>
    %105 = vector.broadcast %93 : i32 to vector<64x1xi32>
    %106 = arith.addi %95, %105 : vector<64x1xi32>
    %107 = arith.select %104, %106, %95 : vector<64x1xi1>, vector<64x1xi32>
    %c7_i32 = arith.constant 7 : i32
    %108 = vector.broadcast %c7_i32 : i32 to vector<64x1xi32>
    %109 = arith.cmpi eq, %107, %108 : vector<64x1xi32>
    %cst_38 = arith.constant 0.000000e+00 : f32
    %110 = vector.shape_cast %109 : vector<64x1xi1> to vector<64x1xi1>
    %111 = vector.broadcast %110 : vector<64x1xi1> to vector<64x8xi1>
    %112 = vector.broadcast %cst_38 : f32 to vector<64x8xf32>
    %113 = arith.select %111, %112, %69 : vector<64x8xi1>, vector<64x8xf32>
    %114 = tpu.concatenate %91, %63, %113 in 1 : vector<64x8xf32>, vector<64x8xf32>, vector<64x8xf32> -> vector<64x24xf32>
    %115 = arith.truncf %114 : vector<64x24xf32> to vector<64x24xbf16>
    %c0_39 = arith.constant 0 : index
    %c0_40 = arith.constant 0 : index
    %116 = vector.load %arg4[%c0_39, %c0_40] : memref<24x16xbf16, #tpu.memory_space<vmem>>, vector<24x16xbf16>
    %cst_41 = arith.constant dense<0.000000e+00> : vector<64x16xf32>
    %117 = tpu.matmul %115, %116, %cst_41 {dimension_numbers = #tpu.dot_dimension_numbers<[1], [0], [0], [1], [0, 0, 1, 1], [], []>} : vector<64x24xbf16>, vector<24x16xbf16>, vector<64x16xf32> -> vector<64x16xf32>
    %c0_42 = arith.constant 0 : index
    %c0_43 = arith.constant 0 : index
    %118 = vector.load %arg5[%c0_42, %c0_43] : memref<1x16xf32, #tpu.memory_space<vmem>>, vector<1x16xf32>
    %119 = vector.broadcast %118 : vector<1x16xf32> to vector<64x16xf32>
    %120 = arith.addf %117, %119 : vector<64x16xf32>
    %cst_44 = arith.constant 0.000000e+00 : f32
    %121 = vector.broadcast %cst_44 : f32 to vector<64x16xf32>
    %122 = arith.maximumf %120, %121 : vector<64x16xf32>
    %c0_45 = arith.constant 0 : index
    %c0_46 = arith.constant 0 : index
    %123 = vector.load %arg16[%c0_45, %c0_46] : memref<64x16xf32, #tpu.memory_space<vmem>>, vector<64x16xf32>
    tpu.vector_store %arg16[%c0_45, %c0_46], %122 {strides = array<i32>} : memref<64x16xf32, #tpu.memory_space<vmem>>, vector<64x16xf32>,
    %c0_47 = arith.constant 0 : index
    %c0_48 = arith.constant 0 : index
    %124 = tpu.strided_load %arg16[%c0_47, %c0_48] {strides = array<i32: 8, 1>} : memref<64x16xf32, #tpu.memory_space<vmem>>, vector<8x16xf32>
    %c1_49 = arith.constant 1 : index
    %c0_50 = arith.constant 0 : index
    %125 = tpu.strided_load %arg16[%c1_49, %c0_50] {strides = array<i32: 8, 1>} : memref<64x16xf32, #tpu.memory_space<vmem>>, vector<8x16xf32>
    %126 = arith.maximumf %124, %125 : vector<8x16xf32>
    %c2 = arith.constant 2 : index
    %c0_51 = arith.constant 0 : index
    %127 = tpu.strided_load %arg16[%c2, %c0_51] {strides = array<i32: 8, 1>} : memref<64x16xf32, #tpu.memory_space<vmem>>, vector<8x16xf32>
    %c3 = arith.constant 3 : index
    %c0_52 = arith.constant 0 : index
    %128 = tpu.strided_load %arg16[%c3, %c0_52] {strides = array<i32: 8, 1>} : memref<64x16xf32, #tpu.memory_space<vmem>>, vector<8x16xf32>
    %129 = arith.maximumf %127, %128 : vector<8x16xf32>
    %c4 = arith.constant 4 : index
    %c0_53 = arith.constant 0 : index
    %130 = tpu.strided_load %arg16[%c4, %c0_53] {strides = array<i32: 8, 1>} : memref<64x16xf32, #tpu.memory_space<vmem>>, vector<8x16xf32>
    %c5 = arith.constant 5 : index
    %c0_54 = arith.constant 0 : index
    %131 = tpu.strided_load %arg16[%c5, %c0_54] {strides = array<i32: 8, 1>} : memref<64x16xf32, #tpu.memory_space<vmem>>, vector<8x16xf32>
    %132 = arith.maximumf %130, %131 : vector<8x16xf32>
    %c6 = arith.constant 6 : index
    %c0_55 = arith.constant 0 : index
    %133 = tpu.strided_load %arg16[%c6, %c0_55] {strides = array<i32: 8, 1>} : memref<64x16xf32, #tpu.memory_space<vmem>>, vector<8x16xf32>
    %c7 = arith.constant 7 : index
    %c0_56 = arith.constant 0 : index
    %134 = tpu.strided_load %arg16[%c7, %c0_56] {strides = array<i32: 8, 1>} : memref<64x16xf32, #tpu.memory_space<vmem>>, vector<8x16xf32>
    %135 = arith.maximumf %133, %134 : vector<8x16xf32>
    %136 = tpu.concatenate %126, %129, %132, %135 in 0 : vector<8x16xf32>, vector<8x16xf32>, vector<8x16xf32>, vector<8x16xf32> -> vector<32x16xf32>
    %c0_57 = arith.constant 0 : index
    %c0_58 = arith.constant 0 : index
    %137 = vector.load %arg6[%c0_57, %c0_58] : memref<16x64xf32, #tpu.memory_space<vmem>>, vector<16x64xf32>
    %cst_59 = arith.constant dense<0.000000e+00> : vector<32x64xf32>
    %138 = tpu.matmul %136, %137, %cst_59 {dimension_numbers = #tpu.dot_dimension_numbers<[1], [0], [0], [1], [0, 0, 1, 1], [], []>} : vector<32x16xf32>, vector<16x64xf32>, vector<32x64xf32> -> vector<32x64xf32>
    %c0_60 = arith.constant 0 : index
    %c0_61 = arith.constant 0 : index
    %139 = vector.load %arg8[%c0_60, %c0_61] : memref<1x64xf32, #tpu.memory_space<vmem>>, vector<1x64xf32>
    %140 = vector.broadcast %139 : vector<1x64xf32> to vector<32x64xf32>
    %141 = arith.addf %138, %140 : vector<32x64xf32>
    %c0_62 = arith.constant 0 : index
    %c0_63 = arith.constant 0 : index
    %142 = vector.load %arg17[%c0_62, %c0_63] : memref<32x64xf32, #tpu.memory_space<vmem>>, vector<32x64xf32>
    tpu.vector_store %arg17[%c0_62, %c0_63], %141 {strides = array<i32>} : memref<32x64xf32, #tpu.memory_space<vmem>>, vector<32x64xf32>,
    %143 = tpu.iota {dimensions = array<i32: 1>} : vector<8x64xi32>
    %c32_i32 = arith.constant 32 : i32
    %144 = vector.broadcast %c32_i32 : i32 to vector<8x64xi32>
    %145 = arith.cmpi sge, %143, %144 : vector<8x64xi32>
    %c48_i32 = arith.constant 48 : i32
    %146 = vector.broadcast %c48_i32 : i32 to vector<8x64xi32>
    %147 = arith.cmpi slt, %143, %146 : vector<8x64xi32>
    %148 = arith.andi %145, %147 : vector<8x64xi1>
    %c0_64 = arith.constant 0 : index
    %c0_65 = arith.constant 0 : index
    %149 = vector.load %arg7[%c0_64, %c0_65] : memref<16x64xf32, #tpu.memory_space<vmem>>, vector<16x64xf32>
    %c0_66 = arith.constant 0 : index
    %c0_67 = arith.constant 0 : index
    %150 = vector.load %arg10[%c0_66, %c0_67] : memref<16x64xf32, #tpu.memory_space<vmem>>, vector<16x64xf32>
    %cst_68 = arith.constant 0.000000e+00 : f32
    %151 = vector.broadcast %cst_68 : f32 to vector<8x16xf32>
    %c0_i32_69 = arith.constant 0 : i32
    %c8_i32_70 = arith.constant 8 : i32
    %152 = arith.muli %c0_i32_69, %c8_i32_70 : i32
    %153 = tpu.assume_multiple %152, 8 : i32
    %154 = arith.index_cast %153 : i32 to index
    %c0_71 = arith.constant 0 : index
    %155 = vector.load %arg17[%154, %c0_71] : memref<32x64xf32, #tpu.memory_space<vmem>>, vector<8x64xf32>
    %cst_72 = arith.constant dense<0.000000e+00> : vector<8x64xf32>
    %156 = tpu.matmul %151, %149, %cst_72 {dimension_numbers = #tpu.dot_dimension_numbers<[1], [0], [0], [1], [0, 0, 1, 1], [], []>} : vector<8x16xf32>, vector<16x64xf32>, vector<8x64xf32> -> vector<8x64xf32>
    %157 = arith.addf %155, %156 : vector<8x64xf32>
    %158 = math.tanh %157 : vector<8x64xf32>
    %159 = arith.negf %157 : vector<8x64xf32>
    %160 = math.exp %159 : vector<8x64xf32>
    %cst_73 = arith.constant 1.000000e+00 : f32
    %161 = vector.broadcast %cst_73 : f32 to vector<8x64xf32>
    %162 = arith.addf %161, %160 : vector<8x64xf32>
    %163 = arith.divf %161, %162 : vector<8x64xf32>
    %164 = arith.select %148, %158, %163 : vector<8x64xi1>, vector<8x64xf32>
    %165 = vector.extract_strided_slice %164 {offsets = [0, 0], sizes = [8, 16], strides = [1, 1]} : vector<8x64xf32> to vector<8x16xf32>
    %166 = vector.extract_strided_slice %164 {offsets = [0, 16], sizes = [8, 16], strides = [1, 1]} : vector<8x64xf32> to vector<8x16xf32>
    %167 = vector.extract_strided_slice %164 {offsets = [0, 32], sizes = [8, 16], strides = [1, 1]} : vector<8x64xf32> to vector<8x16xf32>
    %168 = vector.extract_strided_slice %164 {offsets = [0, 48], sizes = [8, 16], strides = [1, 1]} : vector<8x64xf32> to vector<8x16xf32>
    %169 = arith.mulf %166, %151 : vector<8x16xf32>
    %170 = arith.mulf %165, %167 : vector<8x16xf32>
    %171 = arith.addf %169, %170 : vector<8x16xf32>
    %172 = math.tanh %171 : vector<8x16xf32>
    %173 = arith.mulf %168, %172 : vector<8x16xf32>
    %174 = arith.index_cast %153 : i32 to index
    %c0_74 = arith.constant 0 : index
    %175 = vector.load %arg18[%174, %c0_74] : memref<32x16xf32, #tpu.memory_space<vmem>>, vector<8x16xf32>
    tpu.vector_store %arg18[%174, %c0_74], %173 {strides = array<i32>} : memref<32x16xf32, #tpu.memory_space<vmem>>, vector<8x16xf32>,
    %c1_i32_75 = arith.constant 1 : i32
    %c8_i32_76 = arith.constant 8 : i32
    %176 = arith.muli %c1_i32_75, %c8_i32_76 : i32
    %177 = tpu.assume_multiple %176, 8 : i32
    %178 = arith.index_cast %177 : i32 to index
    %c0_77 = arith.constant 0 : index
    %179 = vector.load %arg17[%178, %c0_77] : memref<32x64xf32, #tpu.memory_space<vmem>>, vector<8x64xf32>
    %cst_78 = arith.constant dense<0.000000e+00> : vector<8x64xf32>
    %180 = tpu.matmul %173, %149, %cst_78 {dimension_numbers = #tpu.dot_dimension_numbers<[1], [0], [0], [1], [0, 0, 1, 1], [], []>} : vector<8x16xf32>, vector<16x64xf32>, vector<8x64xf32> -> vector<8x64xf32>
    %181 = arith.addf %179, %180 : vector<8x64xf32>
    %182 = math.tanh %181 : vector<8x64xf32>
    %183 = arith.negf %181 : vector<8x64xf32>
    %184 = math.exp %183 : vector<8x64xf32>
    %cst_79 = arith.constant 1.000000e+00 : f32
    %185 = vector.broadcast %cst_79 : f32 to vector<8x64xf32>
    %186 = arith.addf %185, %184 : vector<8x64xf32>
    %187 = arith.divf %185, %186 : vector<8x64xf32>
    %188 = arith.select %148, %182, %187 : vector<8x64xi1>, vector<8x64xf32>
    %189 = vector.extract_strided_slice %188 {offsets = [0, 0], sizes = [8, 16], strides = [1, 1]} : vector<8x64xf32> to vector<8x16xf32>
    %190 = vector.extract_strided_slice %188 {offsets = [0, 16], sizes = [8, 16], strides = [1, 1]} : vector<8x64xf32> to vector<8x16xf32>
    %191 = vector.extract_strided_slice %188 {offsets = [0, 32], sizes = [8, 16], strides = [1, 1]} : vector<8x64xf32> to vector<8x16xf32>
    %192 = vector.extract_strided_slice %188 {offsets = [0, 48], sizes = [8, 16], strides = [1, 1]} : vector<8x64xf32> to vector<8x16xf32>
    %193 = arith.mulf %190, %171 : vector<8x16xf32>
    %194 = arith.mulf %189, %191 : vector<8x16xf32>
    %195 = arith.addf %193, %194 : vector<8x16xf32>
    %196 = math.tanh %195 : vector<8x16xf32>
    %197 = arith.mulf %192, %196 : vector<8x16xf32>
    %198 = arith.index_cast %177 : i32 to index
    %c0_80 = arith.constant 0 : index
    %199 = vector.load %arg18[%198, %c0_80] : memref<32x16xf32, #tpu.memory_space<vmem>>, vector<8x16xf32>
    tpu.vector_store %arg18[%198, %c0_80], %197 {strides = array<i32>} : memref<32x16xf32, #tpu.memory_space<vmem>>, vector<8x16xf32>,
    %c2_i32 = arith.constant 2 : i32
    %c8_i32_81 = arith.constant 8 : i32
    %200 = arith.muli %c2_i32, %c8_i32_81 : i32
    %201 = tpu.assume_multiple %200, 8 : i32
    %202 = arith.index_cast %201 : i32 to index
    %c0_82 = arith.constant 0 : index
    %203 = vector.load %arg17[%202, %c0_82] : memref<32x64xf32, #tpu.memory_space<vmem>>, vector<8x64xf32>
    %cst_83 = arith.constant dense<0.000000e+00> : vector<8x64xf32>
    %204 = tpu.matmul %197, %149, %cst_83 {dimension_numbers = #tpu.dot_dimension_numbers<[1], [0], [0], [1], [0, 0, 1, 1], [], []>} : vector<8x16xf32>, vector<16x64xf32>, vector<8x64xf32> -> vector<8x64xf32>
    %205 = arith.addf %203, %204 : vector<8x64xf32>
    %206 = math.tanh %205 : vector<8x64xf32>
    %207 = arith.negf %205 : vector<8x64xf32>
    %208 = math.exp %207 : vector<8x64xf32>
    %cst_84 = arith.constant 1.000000e+00 : f32
    %209 = vector.broadcast %cst_84 : f32 to vector<8x64xf32>
    %210 = arith.addf %209, %208 : vector<8x64xf32>
    %211 = arith.divf %209, %210 : vector<8x64xf32>
    %212 = arith.select %148, %206, %211 : vector<8x64xi1>, vector<8x64xf32>
    %213 = vector.extract_strided_slice %212 {offsets = [0, 0], sizes = [8, 16], strides = [1, 1]} : vector<8x64xf32> to vector<8x16xf32>
    %214 = vector.extract_strided_slice %212 {offsets = [0, 16], sizes = [8, 16], strides = [1, 1]} : vector<8x64xf32> to vector<8x16xf32>
    %215 = vector.extract_strided_slice %212 {offsets = [0, 32], sizes = [8, 16], strides = [1, 1]} : vector<8x64xf32> to vector<8x16xf32>
    %216 = vector.extract_strided_slice %212 {offsets = [0, 48], sizes = [8, 16], strides = [1, 1]} : vector<8x64xf32> to vector<8x16xf32>
    %217 = arith.mulf %214, %195 : vector<8x16xf32>
    %218 = arith.mulf %213, %215 : vector<8x16xf32>
    %219 = arith.addf %217, %218 : vector<8x16xf32>
    %220 = math.tanh %219 : vector<8x16xf32>
    %221 = arith.mulf %216, %220 : vector<8x16xf32>
    %222 = arith.index_cast %201 : i32 to index
    %c0_85 = arith.constant 0 : index
    %223 = vector.load %arg18[%222, %c0_85] : memref<32x16xf32, #tpu.memory_space<vmem>>, vector<8x16xf32>
    tpu.vector_store %arg18[%222, %c0_85], %221 {strides = array<i32>} : memref<32x16xf32, #tpu.memory_space<vmem>>, vector<8x16xf32>,
    %c3_i32 = arith.constant 3 : i32
    %c8_i32_86 = arith.constant 8 : i32
    %224 = arith.muli %c3_i32, %c8_i32_86 : i32
    %225 = tpu.assume_multiple %224, 8 : i32
    %226 = arith.index_cast %225 : i32 to index
    %c0_87 = arith.constant 0 : index
    %227 = vector.load %arg17[%226, %c0_87] : memref<32x64xf32, #tpu.memory_space<vmem>>, vector<8x64xf32>
    %cst_88 = arith.constant dense<0.000000e+00> : vector<8x64xf32>
    %228 = tpu.matmul %221, %149, %cst_88 {dimension_numbers = #tpu.dot_dimension_numbers<[1], [0], [0], [1], [0, 0, 1, 1], [], []>} : vector<8x16xf32>, vector<16x64xf32>, vector<8x64xf32> -> vector<8x64xf32>
    %229 = arith.addf %227, %228 : vector<8x64xf32>
    %230 = math.tanh %229 : vector<8x64xf32>
    %231 = arith.negf %229 : vector<8x64xf32>
    %232 = math.exp %231 : vector<8x64xf32>
    %cst_89 = arith.constant 1.000000e+00 : f32
    %233 = vector.broadcast %cst_89 : f32 to vector<8x64xf32>
    %234 = arith.addf %233, %232 : vector<8x64xf32>
    %235 = arith.divf %233, %234 : vector<8x64xf32>
    %236 = arith.select %148, %230, %235 : vector<8x64xi1>, vector<8x64xf32>
    %237 = vector.extract_strided_slice %236 {offsets = [0, 0], sizes = [8, 16], strides = [1, 1]} : vector<8x64xf32> to vector<8x16xf32>
    %238 = vector.extract_strided_slice %236 {offsets = [0, 16], sizes = [8, 16], strides = [1, 1]} : vector<8x64xf32> to vector<8x16xf32>
    %239 = vector.extract_strided_slice %236 {offsets = [0, 32], sizes = [8, 16], strides = [1, 1]} : vector<8x64xf32> to vector<8x16xf32>
    %240 = vector.extract_strided_slice %236 {offsets = [0, 48], sizes = [8, 16], strides = [1, 1]} : vector<8x64xf32> to vector<8x16xf32>
    %241 = arith.mulf %238, %219 : vector<8x16xf32>
    %242 = arith.mulf %237, %239 : vector<8x16xf32>
    %243 = arith.addf %241, %242 : vector<8x16xf32>
    %244 = math.tanh %243 : vector<8x16xf32>
    %245 = arith.mulf %240, %244 : vector<8x16xf32>
    %246 = arith.index_cast %225 : i32 to index
    %c0_90 = arith.constant 0 : index
    %247 = vector.load %arg18[%246, %c0_90] : memref<32x16xf32, #tpu.memory_space<vmem>>, vector<8x16xf32>
    tpu.vector_store %arg18[%246, %c0_90], %245 {strides = array<i32>} : memref<32x16xf32, #tpu.memory_space<vmem>>, vector<8x16xf32>,
    %c4_i32 = arith.constant 4 : i32
    %c0_91 = arith.constant 0 : index
    %c0_92 = arith.constant 0 : index
    %248 = vector.load %arg18[%c0_91, %c0_92] : memref<32x16xf32, #tpu.memory_space<vmem>>, vector<32x16xf32>
    %c0_93 = arith.constant 0 : index
    %c0_94 = arith.constant 0 : index
    %249 = vector.load %arg9[%c0_93, %c0_94] : memref<16x64xf32, #tpu.memory_space<vmem>>, vector<16x64xf32>
    %cst_95 = arith.constant dense<0.000000e+00> : vector<32x64xf32>
    %250 = tpu.matmul %248, %249, %cst_95 {dimension_numbers = #tpu.dot_dimension_numbers<[1], [0], [0], [1], [0, 0, 1, 1], [], []>} : vector<32x16xf32>, vector<16x64xf32>, vector<32x64xf32> -> vector<32x64xf32>
    %c0_96 = arith.constant 0 : index
    %c0_97 = arith.constant 0 : index
    %251 = vector.load %arg11[%c0_96, %c0_97] : memref<1x64xf32, #tpu.memory_space<vmem>>, vector<1x64xf32>
    %252 = vector.broadcast %251 : vector<1x64xf32> to vector<32x64xf32>
    %253 = arith.addf %250, %252 : vector<32x64xf32>
    %c0_98 = arith.constant 0 : index
    %c0_99 = arith.constant 0 : index
    %254 = vector.load %arg19[%c0_98, %c0_99] : memref<32x64xf32, #tpu.memory_space<vmem>>, vector<32x64xf32>
    tpu.vector_store %arg19[%c0_98, %c0_99], %253 {strides = array<i32>} : memref<32x64xf32, #tpu.memory_space<vmem>>, vector<32x64xf32>,
    %c0_i32_100 = arith.constant 0 : i32
    %c8_i32_101 = arith.constant 8 : i32
    %255 = arith.muli %c0_i32_100, %c8_i32_101 : i32
    %256 = tpu.assume_multiple %255, 8 : i32
    %257 = arith.index_cast %256 : i32 to index
    %c0_102 = arith.constant 0 : index
    %258 = vector.load %arg19[%257, %c0_102] : memref<32x64xf32, #tpu.memory_space<vmem>>, vector<8x64xf32>
    %cst_103 = arith.constant dense<0.000000e+00> : vector<8x64xf32>
    %259 = tpu.matmul %151, %150, %cst_103 {dimension_numbers = #tpu.dot_dimension_numbers<[1], [0], [0], [1], [0, 0, 1, 1], [], []>} : vector<8x16xf32>, vector<16x64xf32>, vector<8x64xf32> -> vector<8x64xf32>
    %260 = arith.addf %258, %259 : vector<8x64xf32>
    %261 = math.tanh %260 : vector<8x64xf32>
    %262 = arith.negf %260 : vector<8x64xf32>
    %263 = math.exp %262 : vector<8x64xf32>
    %cst_104 = arith.constant 1.000000e+00 : f32
    %264 = vector.broadcast %cst_104 : f32 to vector<8x64xf32>
    %265 = arith.addf %264, %263 : vector<8x64xf32>
    %266 = arith.divf %264, %265 : vector<8x64xf32>
    %267 = arith.select %148, %261, %266 : vector<8x64xi1>, vector<8x64xf32>
    %268 = vector.extract_strided_slice %267 {offsets = [0, 0], sizes = [8, 16], strides = [1, 1]} : vector<8x64xf32> to vector<8x16xf32>
    %269 = vector.extract_strided_slice %267 {offsets = [0, 16], sizes = [8, 16], strides = [1, 1]} : vector<8x64xf32> to vector<8x16xf32>
    %270 = vector.extract_strided_slice %267 {offsets = [0, 32], sizes = [8, 16], strides = [1, 1]} : vector<8x64xf32> to vector<8x16xf32>
    %271 = vector.extract_strided_slice %267 {offsets = [0, 48], sizes = [8, 16], strides = [1, 1]} : vector<8x64xf32> to vector<8x16xf32>
    %272 = arith.mulf %269, %151 : vector<8x16xf32>
    %273 = arith.mulf %268, %270 : vector<8x16xf32>
    %274 = arith.addf %272, %273 : vector<8x16xf32>
    %275 = math.tanh %274 : vector<8x16xf32>
    %276 = arith.mulf %271, %275 : vector<8x16xf32>
    %c1_i32_105 = arith.constant 1 : i32
    %c8_i32_106 = arith.constant 8 : i32
    %277 = arith.muli %c1_i32_105, %c8_i32_106 : i32
    %278 = tpu.assume_multiple %277, 8 : i32
    %279 = arith.index_cast %278 : i32 to index
    %c0_107 = arith.constant 0 : index
    %280 = vector.load %arg19[%279, %c0_107] : memref<32x64xf32, #tpu.memory_space<vmem>>, vector<8x64xf32>
    %cst_108 = arith.constant dense<0.000000e+00> : vector<8x64xf32>
    %281 = tpu.matmul %276, %150, %cst_108 {dimension_numbers = #tpu.dot_dimension_numbers<[1], [0], [0], [1], [0, 0, 1, 1], [], []>} : vector<8x16xf32>, vector<16x64xf32>, vector<8x64xf32> -> vector<8x64xf32>
    %282 = arith.addf %280, %281 : vector<8x64xf32>
    %283 = math.tanh %282 : vector<8x64xf32>
    %284 = arith.negf %282 : vector<8x64xf32>
    %285 = math.exp %284 : vector<8x64xf32>
    %cst_109 = arith.constant 1.000000e+00 : f32
    %286 = vector.broadcast %cst_109 : f32 to vector<8x64xf32>
    %287 = arith.addf %286, %285 : vector<8x64xf32>
    %288 = arith.divf %286, %287 : vector<8x64xf32>
    %289 = arith.select %148, %283, %288 : vector<8x64xi1>, vector<8x64xf32>
    %290 = vector.extract_strided_slice %289 {offsets = [0, 0], sizes = [8, 16], strides = [1, 1]} : vector<8x64xf32> to vector<8x16xf32>
    %291 = vector.extract_strided_slice %289 {offsets = [0, 16], sizes = [8, 16], strides = [1, 1]} : vector<8x64xf32> to vector<8x16xf32>
    %292 = vector.extract_strided_slice %289 {offsets = [0, 32], sizes = [8, 16], strides = [1, 1]} : vector<8x64xf32> to vector<8x16xf32>
    %293 = vector.extract_strided_slice %289 {offsets = [0, 48], sizes = [8, 16], strides = [1, 1]} : vector<8x64xf32> to vector<8x16xf32>
    %294 = arith.mulf %291, %274 : vector<8x16xf32>
    %295 = arith.mulf %290, %292 : vector<8x16xf32>
    %296 = arith.addf %294, %295 : vector<8x16xf32>
    %297 = math.tanh %296 : vector<8x16xf32>
    %298 = arith.mulf %293, %297 : vector<8x16xf32>
    %c2_i32_110 = arith.constant 2 : i32
    %c8_i32_111 = arith.constant 8 : i32
    %299 = arith.muli %c2_i32_110, %c8_i32_111 : i32
    %300 = tpu.assume_multiple %299, 8 : i32
    %301 = arith.index_cast %300 : i32 to index
    %c0_112 = arith.constant 0 : index
    %302 = vector.load %arg19[%301, %c0_112] : memref<32x64xf32, #tpu.memory_space<vmem>>, vector<8x64xf32>
    %cst_113 = arith.constant dense<0.000000e+00> : vector<8x64xf32>
    %303 = tpu.matmul %298, %150, %cst_113 {dimension_numbers = #tpu.dot_dimension_numbers<[1], [0], [0], [1], [0, 0, 1, 1], [], []>} : vector<8x16xf32>, vector<16x64xf32>, vector<8x64xf32> -> vector<8x64xf32>
    %304 = arith.addf %302, %303 : vector<8x64xf32>
    %305 = math.tanh %304 : vector<8x64xf32>
    %306 = arith.negf %304 : vector<8x64xf32>
    %307 = math.exp %306 : vector<8x64xf32>
    %cst_114 = arith.constant 1.000000e+00 : f32
    %308 = vector.broadcast %cst_114 : f32 to vector<8x64xf32>
    %309 = arith.addf %308, %307 : vector<8x64xf32>
    %310 = arith.divf %308, %309 : vector<8x64xf32>
    %311 = arith.select %148, %305, %310 : vector<8x64xi1>, vector<8x64xf32>
    %312 = vector.extract_strided_slice %311 {offsets = [0, 0], sizes = [8, 16], strides = [1, 1]} : vector<8x64xf32> to vector<8x16xf32>
    %313 = vector.extract_strided_slice %311 {offsets = [0, 16], sizes = [8, 16], strides = [1, 1]} : vector<8x64xf32> to vector<8x16xf32>
    %314 = vector.extract_strided_slice %311 {offsets = [0, 32], sizes = [8, 16], strides = [1, 1]} : vector<8x64xf32> to vector<8x16xf32>
    %315 = vector.extract_strided_slice %311 {offsets = [0, 48], sizes = [8, 16], strides = [1, 1]} : vector<8x64xf32> to vector<8x16xf32>
    %316 = arith.mulf %313, %296 : vector<8x16xf32>
    %317 = arith.mulf %312, %314 : vector<8x16xf32>
    %318 = arith.addf %316, %317 : vector<8x16xf32>
    %319 = math.tanh %318 : vector<8x16xf32>
    %320 = arith.mulf %315, %319 : vector<8x16xf32>
    %c3_i32_115 = arith.constant 3 : i32
    %c8_i32_116 = arith.constant 8 : i32
    %321 = arith.muli %c3_i32_115, %c8_i32_116 : i32
    %322 = tpu.assume_multiple %321, 8 : i32
    %323 = arith.index_cast %322 : i32 to index
    %c0_117 = arith.constant 0 : index
    %324 = vector.load %arg19[%323, %c0_117] : memref<32x64xf32, #tpu.memory_space<vmem>>, vector<8x64xf32>
    %cst_118 = arith.constant dense<0.000000e+00> : vector<8x64xf32>
    %325 = tpu.matmul %320, %150, %cst_118 {dimension_numbers = #tpu.dot_dimension_numbers<[1], [0], [0], [1], [0, 0, 1, 1], [], []>} : vector<8x16xf32>, vector<16x64xf32>, vector<8x64xf32> -> vector<8x64xf32>
    %326 = arith.addf %324, %325 : vector<8x64xf32>
    %327 = math.tanh %326 : vector<8x64xf32>
    %328 = arith.negf %326 : vector<8x64xf32>
    %329 = math.exp %328 : vector<8x64xf32>
    %cst_119 = arith.constant 1.000000e+00 : f32
    %330 = vector.broadcast %cst_119 : f32 to vector<8x64xf32>
    %331 = arith.addf %330, %329 : vector<8x64xf32>
    %332 = arith.divf %330, %331 : vector<8x64xf32>
    %333 = arith.select %148, %327, %332 : vector<8x64xi1>, vector<8x64xf32>
    %334 = vector.extract_strided_slice %333 {offsets = [0, 0], sizes = [8, 16], strides = [1, 1]} : vector<8x64xf32> to vector<8x16xf32>
    %335 = vector.extract_strided_slice %333 {offsets = [0, 16], sizes = [8, 16], strides = [1, 1]} : vector<8x64xf32> to vector<8x16xf32>
    %336 = vector.extract_strided_slice %333 {offsets = [0, 32], sizes = [8, 16], strides = [1, 1]} : vector<8x64xf32> to vector<8x16xf32>
    %337 = vector.extract_strided_slice %333 {offsets = [0, 48], sizes = [8, 16], strides = [1, 1]} : vector<8x64xf32> to vector<8x16xf32>
    %338 = arith.mulf %335, %318 : vector<8x16xf32>
    %339 = arith.mulf %334, %336 : vector<8x16xf32>
    %340 = arith.addf %338, %339 : vector<8x16xf32>
    %341 = math.tanh %340 : vector<8x16xf32>
    %342 = arith.mulf %337, %341 : vector<8x16xf32>
    %c4_i32_120 = arith.constant 4 : i32
    %c0_121 = arith.constant 0 : index
    %c0_122 = arith.constant 0 : index
    %343 = vector.load %arg12[%c0_121, %c0_122] : memref<16x3xf32, #tpu.memory_space<vmem>>, vector<16x3xf32>
    %cst_123 = arith.constant dense<0.000000e+00> : vector<8x3xf32>
    %344 = tpu.matmul %342, %343, %cst_123 {dimension_numbers = #tpu.dot_dimension_numbers<[1], [0], [0], [1], [0, 0, 1, 1], [], []>} : vector<8x16xf32>, vector<16x3xf32>, vector<8x3xf32> -> vector<8x3xf32>
    %c0_124 = arith.constant 0 : index
    %c0_125 = arith.constant 0 : index
    %345 = vector.load %arg13[%c0_124, %c0_125] : memref<1x3xf32, #tpu.memory_space<vmem>>, vector<1x3xf32>
    %346 = vector.broadcast %345 : vector<1x3xf32> to vector<8x3xf32>
    %347 = arith.addf %344, %346 : vector<8x3xf32>
    %c0_126 = arith.constant 0 : index
    %c0_127 = arith.constant 0 : index
    %348 = vector.load %arg14[%c0_126, %c0_127] : memref<8x3xf32, #tpu.memory_space<vmem>>, vector<8x3xf32>
    tpu.vector_store %arg14[%c0_126, %c0_127], %347 {strides = array<i32>} : memref<8x3xf32, #tpu.memory_space<vmem>>, vector<8x3xf32>,
    return
  }
  func.func @transform_0(%arg0: i32) -> (i32, i32) {
    %c0_i32 = arith.constant 0 : i32
    %c0_i32_0 = arith.constant 0 : i32
    return %arg0, %c0_i32 : i32, i32
  }
  func.func @transform_1(%arg0: i32) -> (i32, i32) {
    %c0_i32 = arith.constant 0 : i32
    %c0_i32_0 = arith.constant 0 : i32
    %c0_i32_1 = arith.constant 0 : i32
    return %c0_i32, %c0_i32_0 : i32, i32
  }
  func.func @transform_2(%arg0: i32) -> (i32, i32) {
    %c0_i32 = arith.constant 0 : i32
    %c0_i32_0 = arith.constant 0 : i32
    %c0_i32_1 = arith.constant 0 : i32
    return %c0_i32, %c0_i32_0 : i32, i32
  }
  func.func @transform_3(%arg0: i32) -> (i32, i32) {
    %c0_i32 = arith.constant 0 : i32
    %c0_i32_0 = arith.constant 0 : i32
    %c0_i32_1 = arith.constant 0 : i32
    return %c0_i32, %c0_i32_0 : i32, i32
  }
  func.func @transform_4(%arg0: i32) -> (i32, i32) {
    %c0_i32 = arith.constant 0 : i32
    %c0_i32_0 = arith.constant 0 : i32
    %c0_i32_1 = arith.constant 0 : i32
    return %c0_i32, %c0_i32_0 : i32, i32
  }
  func.func @transform_5(%arg0: i32) -> (i32, i32) {
    %c0_i32 = arith.constant 0 : i32
    %c0_i32_0 = arith.constant 0 : i32
    %c0_i32_1 = arith.constant 0 : i32
    return %c0_i32, %c0_i32_0 : i32, i32
  }
  func.func @transform_6(%arg0: i32) -> (i32, i32) {
    %c0_i32 = arith.constant 0 : i32
    %c0_i32_0 = arith.constant 0 : i32
    %c0_i32_1 = arith.constant 0 : i32
    return %c0_i32, %c0_i32_0 : i32, i32
  }
  func.func @transform_7(%arg0: i32) -> (i32, i32) {
    %c0_i32 = arith.constant 0 : i32
    %c0_i32_0 = arith.constant 0 : i32
    %c0_i32_1 = arith.constant 0 : i32
    return %c0_i32, %c0_i32_0 : i32, i32
  }
  func.func @transform_8(%arg0: i32) -> (i32, i32) {
    %c0_i32 = arith.constant 0 : i32
    %c0_i32_0 = arith.constant 0 : i32
    %c0_i32_1 = arith.constant 0 : i32
    return %c0_i32, %c0_i32_0 : i32, i32
  }
  func.func @transform_9(%arg0: i32) -> (i32, i32) {
    %c0_i32 = arith.constant 0 : i32
    %c0_i32_0 = arith.constant 0 : i32
    %c0_i32_1 = arith.constant 0 : i32
    return %c0_i32, %c0_i32_0 : i32, i32
  }
  func.func @transform_10(%arg0: i32) -> (i32, i32) {
    %c0_i32 = arith.constant 0 : i32
    %c0_i32_0 = arith.constant 0 : i32
    %c0_i32_1 = arith.constant 0 : i32
    return %c0_i32, %c0_i32_0 : i32, i32
  }
  func.func @transform_11(%arg0: i32) -> (i32, i32) {
    %c0_i32 = arith.constant 0 : i32
    %c0_i32_0 = arith.constant 0 : i32
    %c0_i32_1 = arith.constant 0 : i32
    return %c0_i32, %c0_i32_0 : i32, i32
  }
  func.func @transform_12(%arg0: i32) -> (i32, i32) {
    %c0_i32 = arith.constant 0 : i32
    %c0_i32_0 = arith.constant 0 : i32
    %c0_i32_1 = arith.constant 0 : i32
    return %c0_i32, %c0_i32_0 : i32, i32
  }
  func.func @transform_13(%arg0: i32) -> (i32, i32) {
    %c0_i32 = arith.constant 0 : i32
    %c0_i32_0 = arith.constant 0 : i32
    return %arg0, %c0_i32 : i32, i32
  }
}

</mosaic_0001>

<llo_original>
// kernel: tpu_custom_call.1
$region0: #{tpu_custom_call.1}
  #allocation0 [shape = 'u32[]', space=smem, size = 0x4, offset = 0x4, fixed_abs, tag = 'smem constant byte address 0x4 - core index']
  #allocation1 [shape = 'u32[144,128]{1,0:T(1,128)}', space=vmem, size = 0x12000, scoped, tag = 'internal scratch']
  #allocation2 [shape = 'f32[128,8]{1,0:T(8,128)}', space=vmem, size = 0x10000, scoped, tag = 'scratch operand']
  #allocation3 [shape = 'f32[64,16]{1,0:T(8,128)}', space=vmem, size = 0x8000, scoped, tag = 'scratch operand']
  #allocation4 [shape = 'f32[32,64]{1,0:T(8,128)}', space=vmem, size = 0x4000, scoped, tag = 'scratch operand']
  #allocation5 [shape = 'f32[32,16]{1,0:T(8,128)}', space=vmem, size = 0x4000, scoped, tag = 'scratch operand']
  #allocation6 [shape = 'f32[32,64]{1,0:T(8,128)}', space=vmem, size = 0x4000, scoped, tag = 'scratch operand']
  %s0 = inlined_call_operand.vmem [shape: f32[256,8], index: 0, kind: input, shape index: {}]
  %s1 = inlined_call_operand.vmem [shape: bf16[24,8], index: 1, kind: input, shape index: {}]
  %s2 = inlined_call_operand.vmem [shape: f32[1,8], index: 2, kind: input, shape index: {}]
  %s3 = inlined_call_operand.vmem [shape: bf16[24,16], index: 3, kind: input, shape index: {}]
  %s4 = inlined_call_operand.vmem [shape: f32[1,16], index: 4, kind: input, shape index: {}]
  %s5 = inlined_call_operand.vmem [shape: f32[16,64], index: 5, kind: input, shape index: {}]
  %s6 = inlined_call_operand.vmem [shape: f32[16,64], index: 6, kind: input, shape index: {}]
  %s7 = inlined_call_operand.vmem [shape: f32[1,64], index: 7, kind: input, shape index: {}]
  %s8 = inlined_call_operand.vmem [shape: f32[16,64], index: 8, kind: input, shape index: {}]
  %s9 = inlined_call_operand.vmem [shape: f32[16,64], index: 9, kind: input, shape index: {}]
  %s10 = inlined_call_operand.vmem [shape: f32[1,64], index: 10, kind: input, shape index: {}]
  %s11 = inlined_call_operand.vmem [shape: f32[16,3], index: 11, kind: input, shape index: {}]
  %s12 = inlined_call_operand.vmem [shape: f32[1,3], index: 12, kind: input, shape index: {}]
  %s13 = inlined_call_operand.vmem [shape: f32[16,3], index: 13, kind: output, shape index: {}]
  %s14 = sld [smem:[#allocation0]]
  $region85: #{tpu_custom_call.1} parent=0
    _
  %s16 = ssub.s32 1, %s14
  %s17 = scalar_select 0, %s16, %s14
  loop: start=0, step=1, limit=4
  $region2: #{tpu_custom_call.1} parent=0 // loop_pre_header
    _
  $region3: #{tpu_custom_call.1} parent=0 // loop_header
    %s19 = sphi 0, %s23
    %p20 = scmp.ge.s32.totalorder %s19, 4
    %s29 = sphi 0, %s31
    %s32 = sphi 0, %s29
    %s33 = sphi 0, %s32
    %s49 = sphi 0, %s33
    %s53 = sphi 0, %s53
    %s55 = sphi 0, %s53
    %s56 = sphi 0, %s55
    %s70 = sphi 0, %s56
    %s74 = sphi 0, %s74
    %s76 = sphi 0, %s74
    %s77 = sphi 0, %s76
    %s91 = sphi 0, %s77
    %s95 = sphi 0, %s95
    %s97 = sphi 0, %s95
    %s98 = sphi 0, %s97
    %s112 = sphi 0, %s98
    %s116 = sphi 0, %s116
    %s118 = sphi 0, %s116
    %s119 = sphi 0, %s118
    %s133 = sphi 0, %s119
    %s137 = sphi 0, %s137
    %s139 = sphi 0, %s137
    %s140 = sphi 0, %s139
    %s154 = sphi 0, %s140
    %s158 = sphi 0, %s158
    %s160 = sphi 0, %s158
    %s161 = sphi 0, %s160
    %s175 = sphi 0, %s161
    %s179 = sphi 0, %s179
    %s181 = sphi 0, %s179
    %s182 = sphi 0, %s181
    %s196 = sphi 0, %s182
    %s200 = sphi 0, %s200
    %s202 = sphi 0, %s200
    %s203 = sphi 0, %s202
    %s217 = sphi 0, %s203
    %s221 = sphi 0, %s221
    %s223 = sphi 0, %s221
    %s224 = sphi 0, %s223
    %s238 = sphi 0, %s224
    %s242 = sphi 0, %s242
    %s244 = sphi 0, %s242
    %s245 = sphi 0, %s244
    %s259 = sphi 0, %s245
    %s263 = sphi 0, %s263
    %s265 = sphi 0, %s263
    %s266 = sphi 0, %s265
    %s280 = sphi 0, %s266
    %s284 = sphi 0, %s284
    %s286 = sphi 0, %s284
    %s287 = sphi 0, %s286
    %s301 = sphi 0, %s287
    %s307 = sphi 0, %s309
    %s310 = sphi 0, %s307
    %s311 = sphi 0, %s310
    %s327 = sphi 0, %s311
  $region4: #{tpu_custom_call.1} parent=0 // loop_header_branch
    %22 = sbr.rel (%p20) target = $region8
  $region5: #{tpu_custom_call.1} parent=0 // loop_body
    %s24 = ssub.s32 %s19, 1
    %s25 = ssub.s32 %s19, 2
    %s26 = sadd.s32 %s19, 1
    %s27 = ssub.s32 %s19, %s26
    %p28 = scmp.eq.s32.totalorder %s27, 0
    %s30 = sadd.s32 %s29, 1
    %s31 = scalar_select %p28, %s29, %s30
    %p34 = pneg %p28
    %p35 = scmp.eq.s32.totalorder %s19, 1
    %p36 = por %p34, %p35
    %p37 = scmp.ne.s32.totalorder %s29, %s32
    %p38 = scmp.eq.s32.totalorder %s19, 0
    %p39 = por %p37, %p38
    %p40 = scmp.ne.s32.totalorder %s29, %s32
    %p41 = scmp.eq.s32.totalorder %s24, 1
    %p42 = por %p40, %p41
    %p43 = scmp.ne.s32.totalorder %s32, %s33
    %p44 = scmp.eq.s32.totalorder %s24, 0
    %p45 = por %p43, %p44
    %p46 = scmp.ne.s32.totalorder %s32, %s33
    %p47 = scmp.eq.s32.totalorder %s25, 1
    %p48 = por %p46, %p47
    %p50 = scmp.ne.s32.totalorder %s33, %s49
    %p51 = scmp.eq.s32.totalorder %s25, 0
    %p52 = por %p50, %p51
    %s54 = sadd.s32 %s53, 1
    %p57 = scmp.eq.s32.totalorder %s19, 1
    %p58 = scmp.ne.s32.totalorder %s53, %s55
    %p59 = scmp.eq.s32.totalorder %s19, 0
    %p60 = por %p58, %p59
    %p61 = scmp.ne.s32.totalorder %s53, %s55
    %p62 = scmp.eq.s32.totalorder %s24, 1
    %p63 = por %p61, %p62
    %p64 = scmp.ne.s32.totalorder %s55, %s56
    %p65 = scmp.eq.s32.totalorder %s24, 0
    %p66 = por %p64, %p65
    %p67 = scmp.ne.s32.totalorder %s55, %s56
    %p68 = scmp.eq.s32.totalorder %s25, 1
    %p69 = por %p67, %p68
    %p71 = scmp.ne.s32.totalorder %s56, %s70
    %p72 = scmp.eq.s32.totalorder %s25, 0
    %p73 = por %p71, %p72
    %s75 = sadd.s32 %s74, 1
    %p78 = scmp.eq.s32.totalorder %s19, 1
    %p79 = scmp.ne.s32.totalorder %s74, %s76
    %p80 = scmp.eq.s32.totalorder %s19, 0
    %p81 = por %p79, %p80
    %p82 = scmp.ne.s32.totalorder %s74, %s76
    %p83 = scmp.eq.s32.totalorder %s24, 1
    %p84 = por %p82, %p83
    %p85 = scmp.ne.s32.totalorder %s76, %s77
    %p86 = scmp.eq.s32.totalorder %s24, 0
    %p87 = por %p85, %p86
    %p88 = scmp.ne.s32.totalorder %s76, %s77
    %p89 = scmp.eq.s32.totalorder %s25, 1
    %p90 = por %p88, %p89
    %p92 = scmp.ne.s32.totalorder %s77, %s91
    %p93 = scmp.eq.s32.totalorder %s25, 0
    %p94 = por %p92, %p93
    %s96 = sadd.s32 %s95, 1
    %p99 = scmp.eq.s32.totalorder %s19, 1
    %p100 = scmp.ne.s32.totalorder %s95, %s97
    %p101 = scmp.eq.s32.totalorder %s19, 0
    %p102 = por %p100, %p101
    %p103 = scmp.ne.s32.totalorder %s95, %s97
    %p104 = scmp.eq.s32.totalorder %s24, 1
    %p105 = por %p103, %p104
    %p106 = scmp.ne.s32.totalorder %s97, %s98
    %p107 = scmp.eq.s32.totalorder %s24, 0
    %p108 = por %p106, %p107
    %p109 = scmp.ne.s32.totalorder %s97, %s98
    %p110 = scmp.eq.s32.totalorder %s25, 1
    %p111 = por %p109, %p110
    %p113 = scmp.ne.s32.totalorder %s98, %s112
    %p114 = scmp.eq.s32.totalorder %s25, 0
    %p115 = por %p113, %p114
    %s117 = sadd.s32 %s116, 1
    %p120 = scmp.eq.s32.totalorder %s19, 1
    %p121 = scmp.ne.s32.totalorder %s116, %s118
    %p122 = scmp.eq.s32.totalorder %s19, 0
    %p123 = por %p121, %p122
    %p124 = scmp.ne.s32.totalorder %s116, %s118
    %p125 = scmp.eq.s32.totalorder %s24, 1
    %p126 = por %p124, %p125
    %p127 = scmp.ne.s32.totalorder %s118, %s119
    %p128 = scmp.eq.s32.totalorder %s24, 0
    %p129 = por %p127, %p128
    %p130 = scmp.ne.s32.totalorder %s118, %s119
    %p131 = scmp.eq.s32.totalorder %s25, 1
    %p132 = por %p130, %p131
    %p134 = scmp.ne.s32.totalorder %s119, %s133
    %p135 = scmp.eq.s32.totalorder %s25, 0
    %p136 = por %p134, %p135
    %s138 = sadd.s32 %s137, 1
    %p141 = scmp.eq.s32.totalorder %s19, 1
    %p142 = scmp.ne.s32.totalorder %s137, %s139
    %p143 = scmp.eq.s32.totalorder %s19, 0
    %p144 = por %p142, %p143
    %p145 = scmp.ne.s32.totalorder %s137, %s139
    %p146 = scmp.eq.s32.totalorder %s24, 1
    %p147 = por %p145, %p146
    %p148 = scmp.ne.s32.totalorder %s139, %s140
    %p149 = scmp.eq.s32.totalorder %s24, 0
    %p150 = por %p148, %p149
    %p151 = scmp.ne.s32.totalorder %s139, %s140
    %p152 = scmp.eq.s32.totalorder %s25, 1
    %p153 = por %p151, %p152
    %p155 = scmp.ne.s32.totalorder %s140, %s154
    %p156 = scmp.eq.s32.totalorder %s25, 0
    %p157 = por %p155, %p156
    %s159 = sadd.s32 %s158, 1
    %p162 = scmp.eq.s32.totalorder %s19, 1
    %p163 = scmp.ne.s32.totalorder %s158, %s160
    %p164 = scmp.eq.s32.totalorder %s19, 0
    %p165 = por %p163, %p164
    %p166 = scmp.ne.s32.totalorder %s158, %s160
    %p167 = scmp.eq.s32.totalorder %s24, 1
    %p168 = por %p166, %p167
    %p169 = scmp.ne.s32.totalorder %s160, %s161
    %p170 = scmp.eq.s32.totalorder %s24, 0
    %p171 = por %p169, %p170
    %p172 = scmp.ne.s32.totalorder %s160, %s161
    %p173 = scmp.eq.s32.totalorder %s25, 1
    %p174 = por %p172, %p173
    %p176 = scmp.ne.s32.totalorder %s161, %s175
    %p177 = scmp.eq.s32.totalorder %s25, 0
    %p178 = por %p176, %p177
    %s180 = sadd.s32 %s179, 1
    %p183 = scmp.eq.s32.totalorder %s19, 1
    %p184 = scmp.ne.s32.totalorder %s179, %s181
    %p185 = scmp.eq.s32.totalorder %s19, 0
    %p186 = por %p184, %p185
    %p187 = scmp.ne.s32.totalorder %s179, %s181
    %p188 = scmp.eq.s32.totalorder %s24, 1
    %p189 = por %p187, %p188
    %p190 = scmp.ne.s32.totalorder %s181, %s182
    %p191 = scmp.eq.s32.totalorder %s24, 0
    %p192 = por %p190, %p191
    %p193 = scmp.ne.s32.totalorder %s181, %s182
    %p194 = scmp.eq.s32.totalorder %s25, 1
    %p195 = por %p193, %p194
    %p197 = scmp.ne.s32.totalorder %s182, %s196
    %p198 = scmp.eq.s32.totalorder %s25, 0
    %p199 = por %p197, %p198
    %s201 = sadd.s32 %s200, 1
    %p204 = scmp.eq.s32.totalorder %s19, 1
    %p205 = scmp.ne.s32.totalorder %s200, %s202
    %p206 = scmp.eq.s32.totalorder %s19, 0
    %p207 = por %p205, %p206
    %p208 = scmp.ne.s32.totalorder %s200, %s202
    %p209 = scmp.eq.s32.totalorder %s24, 1
    %p210 = por %p208, %p209
    %p211 = scmp.ne.s32.totalorder %s202, %s203
    %p212 = scmp.eq.s32.totalorder %s24, 0
    %p213 = por %p211, %p212
    %p214 = scmp.ne.s32.totalorder %s202, %s203
    %p215 = scmp.eq.s32.totalorder %s25, 1
    %p216 = por %p214, %p215
    %p218 = scmp.ne.s32.totalorder %s203, %s217
    %p219 = scmp.eq.s32.totalorder %s25, 0
    %p220 = por %p218, %p219
    %s222 = sadd.s32 %s221, 1
    %p225 = scmp.eq.s32.totalorder %s19, 1
    %p226 = scmp.ne.s32.totalorder %s221, %s223
    %p227 = scmp.eq.s32.totalorder %s19, 0
    %p228 = por %p226, %p227
    %p229 = scmp.ne.s32.totalorder %s221, %s223
    %p230 = scmp.eq.s32.totalorder %s24, 1
    %p231 = por %p229, %p230
    %p232 = scmp.ne.s32.totalorder %s223, %s224
    %p233 = scmp.eq.s32.totalorder %s24, 0
    %p234 = por %p232, %p233
    %p235 = scmp.ne.s32.totalorder %s223, %s224
    %p236 = scmp.eq.s32.totalorder %s25, 1
    %p237 = por %p235, %p236
    %p239 = scmp.ne.s32.totalorder %s224, %s238
    %p240 = scmp.eq.s32.totalorder %s25, 0
    %p241 = por %p239, %p240
    %s243 = sadd.s32 %s242, 1
    %p246 = scmp.eq.s32.totalorder %s19, 1
    %p247 = scmp.ne.s32.totalorder %s242, %s244
    %p248 = scmp.eq.s32.totalorder %s19, 0
    %p249 = por %p247, %p248
    %p250 = scmp.ne.s32.totalorder %s242, %s244
    %p251 = scmp.eq.s32.totalorder %s24, 1
    %p252 = por %p250, %p251
    %p253 = scmp.ne.s32.totalorder %s244, %s245
    %p254 = scmp.eq.s32.totalorder %s24, 0
    %p255 = por %p253, %p254
    %p256 = scmp.ne.s32.totalorder %s244, %s245
    %p257 = scmp.eq.s32.totalorder %s25, 1
    %p258 = por %p256, %p257
    %p260 = scmp.ne.s32.totalorder %s245, %s259
    %p261 = scmp.eq.s32.totalorder %s25, 0
    %p262 = por %p260, %p261
    %s264 = sadd.s32 %s263, 1
    %p267 = scmp.eq.s32.totalorder %s19, 1
    %p268 = scmp.ne.s32.totalorder %s263, %s265
    %p269 = scmp.eq.s32.totalorder %s19, 0
    %p270 = por %p268, %p269
    %p271 = scmp.ne.s32.totalorder %s263, %s265
    %p272 = scmp.eq.s32.totalorder %s24, 1
    %p273 = por %p271, %p272
    %p274 = scmp.ne.s32.totalorder %s265, %s266
    %p275 = scmp.eq.s32.totalorder %s24, 0
    %p276 = por %p274, %p275
    %p277 = scmp.ne.s32.totalorder %s265, %s266
    %p278 = scmp.eq.s32.totalorder %s25, 1
    %p279 = por %p277, %p278
    %p281 = scmp.ne.s32.totalorder %s266, %s280
    %p282 = scmp.eq.s32.totalorder %s25, 0
    %p283 = por %p281, %p282
    %s285 = sadd.s32 %s284, 1
    %p288 = scmp.eq.s32.totalorder %s19, 1
    %p289 = scmp.ne.s32.totalorder %s284, %s286
    %p290 = scmp.eq.s32.totalorder %s19, 0
    %p291 = por %p289, %p290
    %p292 = scmp.ne.s32.totalorder %s284, %s286
    %p293 = scmp.eq.s32.totalorder %s24, 1
    %p294 = por %p292, %p293
    %p295 = scmp.ne.s32.totalorder %s286, %s287
    %p296 = scmp.eq.s32.totalorder %s24, 0
    %p297 = por %p295, %p296
    %p298 = scmp.ne.s32.totalorder %s286, %s287
    %p299 = scmp.eq.s32.totalorder %s25, 1
    %p300 = por %p298, %p299
    %p302 = scmp.ne.s32.totalorder %s287, %s301
    %p303 = scmp.eq.s32.totalorder %s25, 0
    %p304 = por %p302, %p303
    %s305 = ssub.s32 %s19, %s26
    %p306 = scmp.eq.s32.totalorder %s305, 0
    %s308 = sadd.s32 %s307, 1
    %s309 = scalar_select %p306, %s307, %s308
    %p312 = pneg %p306
    %p313 = scmp.eq.s32.totalorder %s19, 1
    %p314 = por %p312, %p313
    %p315 = scmp.ne.s32.totalorder %s307, %s310
    %p316 = scmp.eq.s32.totalorder %s19, 0
    %p317 = por %p315, %p316
    %p318 = scmp.ne.s32.totalorder %s307, %s310
    %p319 = scmp.eq.s32.totalorder %s24, 1
    %p320 = por %p318, %p319
    %p321 = scmp.ne.s32.totalorder %s310, %s311
    %p322 = scmp.eq.s32.totalorder %s24, 0
    %p323 = por %p321, %p322
    %p324 = scmp.ne.s32.totalorder %s310, %s311
    %p325 = scmp.eq.s32.totalorder %s25, 1
    %p326 = por %p324, %p325
    %p328 = scmp.ne.s32.totalorder %s311, %s327
    %p329 = scmp.eq.s32.totalorder %s25, 0
    %p330 = por %p328, %p329
    %p331 = scmp.le.s32.totalorder 1, %s19
    %p332 = scmp.lt.s32.totalorder %s19, 3
    %p333 = pnand %p331, %p332
    %p334 = pneg %p333
    // Predicated region
    $region9: #{tpu_custom_call.1} parent=5 // pred_check
      _
    $region10: #{tpu_custom_call.1} parent=5 // pred_check_branch
      %336 = sbr.rel (%p333) target = $region12
    $region11: #{tpu_custom_call.1} parent=5 // pred_region
      %s337 = ssub.s32 %s19, 1
      // Predicated region
      $region13: #{tpu_custom_call.1} parent=11 // pred_check
        %p338 = pneg %p66
      $region14: #{tpu_custom_call.1} parent=11 // pred_check_branch
        %340 = sbr.rel (%p338) target = $region16
      $region15: #{tpu_custom_call.1} parent=11 // pred_region
        _
      $region16: #{tpu_custom_call.1} parent=11 // pred_fallthru
        _
      // Predicated region
      $region17: #{tpu_custom_call.1} parent=11 // pred_check
        %p341 = pneg %p87
      $region18: #{tpu_custom_call.1} parent=11 // pred_check_branch
        %343 = sbr.rel (%p341) target = $region20
      $region19: #{tpu_custom_call.1} parent=11 // pred_region
        _
      $region20: #{tpu_custom_call.1} parent=11 // pred_fallthru
        _
      // Predicated region
      $region21: #{tpu_custom_call.1} parent=11 // pred_check
        %p344 = pneg %p108
      $region22: #{tpu_custom_call.1} parent=11 // pred_check_branch
        %346 = sbr.rel (%p344) target = $region24
      $region23: #{tpu_custom_call.1} parent=11 // pred_region
        _
      $region24: #{tpu_custom_call.1} parent=11 // pred_fallthru
        _
      // Predicated region
      $region25: #{tpu_custom_call.1} parent=11 // pred_check
        %p347 = pneg %p129
      $region26: #{tpu_custom_call.1} parent=11 // pred_check_branch
        %349 = sbr.rel (%p347) target = $region28
      $region27: #{tpu_custom_call.1} parent=11 // pred_region
        _
      $region28: #{tpu_custom_call.1} parent=11 // pred_fallthru
        _
      // Predicated region
      $region29: #{tpu_custom_call.1} parent=11 // pred_check
        %p350 = pneg %p150
      $region30: #{tpu_custom_call.1} parent=11 // pred_check_branch
        %352 = sbr.rel (%p350) target = $region32
      $region31: #{tpu_custom_call.1} parent=11 // pred_region
        _
      $region32: #{tpu_custom_call.1} parent=11 // pred_fallthru
        _
      // Predicated region
      $region33: #{tpu_custom_call.1} parent=11 // pred_check
        %p353 = pneg %p171
      $region34: #{tpu_custom_call.1} parent=11 // pred_check_branch
        %355 = sbr.rel (%p353) target = $region36
      $region35: #{tpu_custom_call.1} parent=11 // pred_region
        _
      $region36: #{tpu_custom_call.1} parent=11 // pred_fallthru
        _
      // Predicated region
      $region37: #{tpu_custom_call.1} parent=11 // pred_check
        %p356 = pneg %p192
      $region38: #{tpu_custom_call.1} parent=11 // pred_check_branch
        %358 = sbr.rel (%p356) target = $region40
      $region39: #{tpu_custom_call.1} parent=11 // pred_region
        _
      $region40: #{tpu_custom_call.1} parent=11 // pred_fallthru
        _
      // Predicated region
      $region41: #{tpu_custom_call.1} parent=11 // pred_check
        %p359 = pneg %p213
      $region42: #{tpu_custom_call.1} parent=11 // pred_check_branch
        %361 = sbr.rel (%p359) target = $region44
      $region43: #{tpu_custom_call.1} parent=11 // pred_region
        _
      $region44: #{tpu_custom_call.1} parent=11 // pred_fallthru
        _
      // Predicated region
      $region45: #{tpu_custom_call.1} parent=11 // pred_check
        %p362 = pneg %p234
      $region46: #{tpu_custom_call.1} parent=11 // pred_check_branch
        %364 = sbr.rel (%p362) target = $region48
      $region47: #{tpu_custom_call.1} parent=11 // pred_region
        _
      $region48: #{tpu_custom_call.1} parent=11 // pred_fallthru
        _
      // Predicated region
      $region49: #{tpu_custom_call.1} parent=11 // pred_check
        %p365 = pneg %p255
      $region50: #{tpu_custom_call.1} parent=11 // pred_check_branch
        %367 = sbr.rel (%p365) target = $region52
      $region51: #{tpu_custom_call.1} parent=11 // pred_region
        _
      $region52: #{tpu_custom_call.1} parent=11 // pred_fallthru
        _
      // Predicated region
      $region53: #{tpu_custom_call.1} parent=11 // pred_check
        %p368 = pneg %p276
      $region54: #{tpu_custom_call.1} parent=11 // pred_check_branch
        %370 = sbr.rel (%p368) target = $region56
      $region55: #{tpu_custom_call.1} parent=11 // pred_region
        _
      $region56: #{tpu_custom_call.1} parent=11 // pred_fallthru
        _
      // Predicated region
      $region57: #{tpu_custom_call.1} parent=11 // pred_check
        %p371 = pneg %p297
      $region58: #{tpu_custom_call.1} parent=11 // pred_check_branch
        %373 = sbr.rel (%p371) target = $region60
      $region59: #{tpu_custom_call.1} parent=11 // pred_region
        _
      $region60: #{tpu_custom_call.1} parent=11 // pred_fallthru
        _
    $region12: #{tpu_custom_call.1} parent=5 // pred_fallthru
      _
    %p374 = scmp.lt.s32.totalorder %s19, 2
    // Predicated region
    $region61: #{tpu_custom_call.1} parent=5 // pred_check
      %p375 = pneg %p374
    $region62: #{tpu_custom_call.1} parent=5 // pred_check_branch
      %377 = sbr.rel (%p375) target = $region64
    $region63: #{tpu_custom_call.1} parent=5 // pred_region
      // Predicated region
      $region65: #{tpu_custom_call.1} parent=63 // pred_check
        %p378 = pneg %p39
      $region66: #{tpu_custom_call.1} parent=63 // pred_check_branch
        %380 = sbr.rel (%p378) target = $region68
      $region67: #{tpu_custom_call.1} parent=63 // pred_region
        %s381 = smul.u32 16, %s19
        %p382 = scmp.lt.s32.totalorder %s381, 31
        %s383 = scalar_select %p382, %s381, 31
        %s384 = smul.addr %s383, 8
        %s385 = scalar_lea.vmem %s0, %s384
        %s386 = smul.u32 16, %s19
      $region68: #{tpu_custom_call.1} parent=63 // pred_fallthru
        _
    $region64: #{tpu_custom_call.1} parent=5 // pred_fallthru
      _
    %p387 = scmp.le.s32.totalorder 1, %s19
    %p388 = scmp.lt.s32.totalorder %s19, 3
    %p389 = pnand %p387, %p388
    %p390 = pneg %p389
    // Predicated region
    $region69: #{tpu_custom_call.1} parent=5 // pred_check
      _
    $region70: #{tpu_custom_call.1} parent=5 // pred_check_branch
      %392 = sbr.rel (%p389) target = $region72
    $region71: #{tpu_custom_call.1} parent=5 // pred_region
      %s393 = ssub.s32 %s19, 1
      %s394 = smul.u32 16, %s24
      %p395 = scmp.lt.s32.totalorder %s394, 31
      %s396 = scalar_select %p395, %s394, 31
      %s397 = smul.addr %s396, 8
      %s398 = scalar_lea.vmem %s0, %s397
      %p399 = pneg %p45
      %p400 = pneg %p42
      %p401 = pneg %p66
      %p402 = pneg %p63
      %p403 = pneg %p87
      %p404 = pneg %p84
      %p405 = pneg %p108
      %p406 = pneg %p105
      %p407 = pneg %p129
      %p408 = pneg %p126
      %p409 = pneg %p150
      %p410 = pneg %p147
      %p411 = pneg %p171
      %p412 = pneg %p168
      %p413 = pneg %p192
      %p414 = pneg %p189
      %p415 = pneg %p213
      %p416 = pneg %p210
      %p417 = pneg %p234
      %p418 = pneg %p231
      %p419 = pneg %p255
      %p420 = pneg %p252
      %p421 = pneg %p276
      %p422 = pneg %p273
      %p423 = pneg %p297
      %p424 = pneg %p294
      %p425 = pneg %p323
      %p426 = pneg %p320
      %p427 = scmp.lt.s32.totalorder %s24, 1
      %s428 = scalar_select %p427, %s24, 1
      %s429 = smul.addr %s428, 8
      %s430 = scalar_lea.vmem %s13, %s429
      %s431 = smul.u32 16, %s24
      %p432 = scmp.lt.s32.totalorder %s431, 31
      %s433 = scalar_select %p432, %s431, 31
      %s434 = smul.addr %s433, 8
      %s435 = scalar_lea.vmem %s0, %s434
      %s436 = smul.u32 16, %s24
      %p437 = scmp.lt.s32.totalorder %s24, 1
      %s438 = scalar_select %p437, %s24, 1
      %s439 = smul.addr %s438, 8
      %s440 = scalar_lea.vmem %s13, %s439
      %v442 = vld [vmem:[%s435] sm:$0xff]
      %v443 = vld [vmem:[%s435 + $0x8] sm:$0xff]
      %v444 = vld [vmem:[%s435 + $0x10] sm:$0xff]
      %v445 = vld [vmem:[%s435 + $0x18] sm:$0xff]
      %v446 = vld [vmem:[%s435 + $0x20] sm:$0xff]
      %v447 = vld [vmem:[%s435 + $0x28] sm:$0xff]
      %v448 = vld [vmem:[%s435 + $0x30] sm:$0xff]
      %v449 = vld [vmem:[%s435 + $0x38] sm:$0xff]
      %v450 = vld [vmem:[%s435 + $0x40] sm:$0xff]
      %v451 = vld [vmem:[%s435 + $0x48] sm:$0xff]
      %v452 = vld [vmem:[%s435 + $0x50] sm:$0xff]
      %v453 = vld [vmem:[%s435 + $0x58] sm:$0xff]
      %v454 = vld [vmem:[%s435 + $0x60] sm:$0xff]
      %v455 = vld [vmem:[%s435 + $0x68] sm:$0xff]
      %v456 = vld [vmem:[%s435 + $0x70] sm:$0xff]
      %v457 = vld [vmem:[%s435 + $0x78] sm:$0xff]
      %v458 = vlaneseq
      %v459 = vshrl.u32 %v458, 7
      %v460 = vadd.s32 %v459, 8
      %v461 = vadd.s32 %v459, 16
      %v462 = vadd.s32 %v459, 24
      %v463 = vadd.s32 %v459, 32
      %v464 = vadd.s32 %v459, 40
      %v465 = vadd.s32 %v459, 48
      %v466 = vadd.s32 %v459, 56
      %v467 = vadd.s32 %v459, 64
      %v468 = vadd.s32 %v459, 72
      %v469 = vadd.s32 %v459, 80
      %v470 = vadd.s32 %v459, 88
      %v471 = vadd.s32 %v459, 96
      %v472 = vadd.s32 %v459, 104
      %v473 = vadd.s32 %v459, 112
      %v474 = vadd.s32 %v459, 120
      %vm491 = vcmask 1040384
      %v492 = vrot.slane %v442, 7
      %v493 = vrot.slane %v443, 7
      %v494 = vsel %vm491, %v492, %v493
      %v495 = vrot.slane %v444, 7
      %v496 = vsel %vm491, %v493, %v495
      %v497 = vrot.slane %v445, 7
      %v498 = vsel %vm491, %v495, %v497
      %v499 = vrot.slane %v446, 7
      %v500 = vsel %vm491, %v497, %v499
      %v501 = vrot.slane %v447, 7
      %v502 = vsel %vm491, %v499, %v501
      %v503 = vrot.slane %v448, 7
      %v504 = vsel %vm491, %v501, %v503
      %v505 = vrot.slane %v449, 7
      %v506 = vsel %vm491, %v503, %v505
      %v507 = vrot.slane %v450, 7
      %v508 = vsel %vm491, %v505, %v507
      %v509 = vrot.slane %v451, 7
      %v510 = vsel %vm491, %v507, %v509
      %v511 = vrot.slane %v452, 7
      %v512 = vsel %vm491, %v509, %v511
      %v513 = vrot.slane %v453, 7
      %v514 = vsel %vm491, %v511, %v513
      %v515 = vrot.slane %v454, 7
      %v516 = vsel %vm491, %v513, %v515
      %v517 = vrot.slane %v455, 7
      %v518 = vsel %vm491, %v515, %v517
      %v519 = vrot.slane %v456, 7
      %v520 = vsel %vm491, %v517, %v519
      %v521 = vrot.slane %v457, 7
      %v522 = vsel %vm491, %v519, %v521
      %v539 = vsel %vm491, 0.0, %v492
      %vm540 = vcmask 1046528
      %v541 = vrot.slane %v442, 1
      %v542 = vrot.slane %v443, 1
      %v543 = vsel %vm540, %v541, %v542
      %v544 = vrot.slane %v444, 1
      %v545 = vsel %vm540, %v542, %v544
      %v546 = vrot.slane %v445, 1
      %v547 = vsel %vm540, %v544, %v546
      %v548 = vrot.slane %v446, 1
      %v549 = vsel %vm540, %v546, %v548
      %v550 = vrot.slane %v447, 1
      %v551 = vsel %vm540, %v548, %v550
      %v552 = vrot.slane %v448, 1
      %v553 = vsel %vm540, %v550, %v552
      %v554 = vrot.slane %v449, 1
      %v555 = vsel %vm540, %v552, %v554
      %v556 = vrot.slane %v450, 1
      %v557 = vsel %vm540, %v554, %v556
      %v558 = vrot.slane %v451, 1
      %v559 = vsel %vm540, %v556, %v558
      %v560 = vrot.slane %v452, 1
      %v561 = vsel %vm540, %v558, %v560
      %v562 = vrot.slane %v453, 1
      %v563 = vsel %vm540, %v560, %v562
      %v564 = vrot.slane %v454, 1
      %v565 = vsel %vm540, %v562, %v564
      %v566 = vrot.slane %v455, 1
      %v567 = vsel %vm540, %v564, %v566
      %v568 = vrot.slane %v456, 1
      %v569 = vsel %vm540, %v566, %v568
      %v570 = vrot.slane %v457, 1
      %v571 = vsel %vm540, %v568, %v570
      %v588 = vsel %vm540, %v570, 0.0
      %vm589 = vcmp.lt.s32.totalorder %v459, 0
      %v590 = vsub.s32 0, %v459
      %v591 = vsel %vm589, %v590, %v459
      %v592 = vshrl.u32 %v591, 4
      %v593 = vand.u32 %v591, 15
      %v594 = vsub.s32 0, %v593
      %v595 = vsel %vm589, %v594, %v593
      %vm596 = vcmp.lt.s32.totalorder %v460, 0
      %v597 = vsub.s32 0, %v460
      %v598 = vsel %vm596, %v597, %v460
      %v599 = vshrl.u32 %v598, 4
      %v600 = vand.u32 %v598, 15
      %v601 = vsub.s32 0, %v600
      %v602 = vsel %vm596, %v601, %v600
      %vm603 = vcmp.lt.s32.totalorder %v461, 0
      %v604 = vsub.s32 0, %v461
      %v605 = vsel %vm603, %v604, %v461
      %v606 = vshrl.u32 %v605, 4
      %v607 = vand.u32 %v605, 15
      %v608 = vsub.s32 0, %v607
      %v609 = vsel %vm603, %v608, %v607
      %vm610 = vcmp.lt.s32.totalorder %v462, 0
      %v611 = vsub.s32 0, %v462
      %v612 = vsel %vm610, %v611, %v462
      %v613 = vshrl.u32 %v612, 4
      %v614 = vand.u32 %v612, 15
      %v615 = vsub.s32 0, %v614
      %v616 = vsel %vm610, %v615, %v614
      %vm617 = vcmp.lt.s32.totalorder %v463, 0
      %v618 = vsub.s32 0, %v463
      %v619 = vsel %vm617, %v618, %v463
      %v620 = vshrl.u32 %v619, 4
      %v621 = vand.u32 %v619, 15
      %v622 = vsub.s32 0, %v621
      %v623 = vsel %vm617, %v622, %v621
      %vm624 = vcmp.lt.s32.totalorder %v464, 0
      %v625 = vsub.s32 0, %v464
      %v626 = vsel %vm624, %v625, %v464
      %v627 = vshrl.u32 %v626, 4
      %v628 = vand.u32 %v626, 15
      %v629 = vsub.s32 0, %v628
      %v630 = vsel %vm624, %v629, %v628
      %vm631 = vcmp.lt.s32.totalorder %v465, 0
      %v632 = vsub.s32 0, %v465
      %v633 = vsel %vm631, %v632, %v465
      %v634 = vshrl.u32 %v633, 4
      %v635 = vand.u32 %v633, 15
      %v636 = vsub.s32 0, %v635
      %v637 = vsel %vm631, %v636, %v635
      %vm638 = vcmp.lt.s32.totalorder %v466, 0
      %v639 = vsub.s32 0, %v466
      %v640 = vsel %vm638, %v639, %v466
      %v641 = vshrl.u32 %v640, 4
      %v642 = vand.u32 %v640, 15
      %v643 = vsub.s32 0, %v642
      %v644 = vsel %vm638, %v643, %v642
      %vm645 = vcmp.lt.s32.totalorder %v467, 0
      %v646 = vsub.s32 0, %v467
      %v647 = vsel %vm645, %v646, %v467
      %v648 = vshrl.u32 %v647, 4
      %v649 = vand.u32 %v647, 15
      %v650 = vsub.s32 0, %v649
      %v651 = vsel %vm645, %v650, %v649
      %vm652 = vcmp.lt.s32.totalorder %v468, 0
      %v653 = vsub.s32 0, %v468
      %v654 = vsel %vm652, %v653, %v468
      %v655 = vshrl.u32 %v654, 4
      %v656 = vand.u32 %v654, 15
      %v657 = vsub.s32 0, %v656
      %v658 = vsel %vm652, %v657, %v656
      %vm659 = vcmp.lt.s32.totalorder %v469, 0
      %v660 = vsub.s32 0, %v469
      %v661 = vsel %vm659, %v660, %v469
      %v662 = vshrl.u32 %v661, 4
      %v663 = vand.u32 %v661, 15
      %v664 = vsub.s32 0, %v663
      %v665 = vsel %vm659, %v664, %v663
      %vm666 = vcmp.lt.s32.totalorder %v470, 0
      %v667 = vsub.s32 0, %v470
      %v668 = vsel %vm666, %v667, %v470
      %v669 = vshrl.u32 %v668, 4
      %v670 = vand.u32 %v668, 15
      %v671 = vsub.s32 0, %v670
      %v672 = vsel %vm666, %v671, %v670
      %vm673 = vcmp.lt.s32.totalorder %v471, 0
      %v674 = vsub.s32 0, %v471
      %v675 = vsel %vm673, %v674, %v471
      %v676 = vshrl.u32 %v675, 4
      %v677 = vand.u32 %v675, 15
      %v678 = vsub.s32 0, %v677
      %v679 = vsel %vm673, %v678, %v677
      %vm680 = vcmp.lt.s32.totalorder %v472, 0
      %v681 = vsub.s32 0, %v472
      %v682 = vsel %vm680, %v681, %v472
      %v683 = vshrl.u32 %v682, 4
      %v684 = vand.u32 %v682, 15
      %v685 = vsub.s32 0, %v684
      %v686 = vsel %vm680, %v685, %v684
      %vm687 = vcmp.lt.s32.totalorder %v473, 0
      %v688 = vsub.s32 0, %v473
      %v689 = vsel %vm687, %v688, %v473
      %v690 = vshrl.u32 %v689, 4
      %v691 = vand.u32 %v689, 15
      %v692 = vsub.s32 0, %v691
      %v693 = vsel %vm687, %v692, %v691
      %vm694 = vcmp.lt.s32.totalorder %v474, 0
      %v695 = vsub.s32 0, %v474
      %v696 = vsel %vm694, %v695, %v474
      %v697 = vshrl.u32 %v696, 4
      %v698 = vand.u32 %v696, 15
      %v699 = vsub.s32 0, %v698
      %v700 = vsel %vm694, %v699, %v698
      %vm701 = vcmp.ne.s32.totalorder %v595, 0
      %vm702 = vcmp.ne.s32.totalorder %v602, 0
      %vm703 = vcmp.ne.s32.totalorder %v609, 0
      %vm704 = vcmp.ne.s32.totalorder %v616, 0
      %vm705 = vcmp.ne.s32.totalorder %v623, 0
      %vm706 = vcmp.ne.s32.totalorder %v630, 0
      %vm707 = vcmp.ne.s32.totalorder %v637, 0
      %vm708 = vcmp.ne.s32.totalorder %v644, 0
      %vm709 = vcmp.ne.s32.totalorder %v651, 0
      %vm710 = vcmp.ne.s32.totalorder %v658, 0
      %vm711 = vcmp.ne.s32.totalorder %v665, 0
      %vm712 = vcmp.ne.s32.totalorder %v672, 0
      %vm713 = vcmp.ne.s32.totalorder %v679, 0
      %vm714 = vcmp.ne.s32.totalorder %v686, 0
      %vm715 = vcmp.ne.s32.totalorder %v693, 0
      %vm716 = vcmp.ne.s32.totalorder %v700, 0
      %vm717 = vcmp.lt.s32.totalorder %v595, 0
      %vm718 = vcmp.lt.s32.totalorder %v602, 0
      %vm719 = vcmp.lt.s32.totalorder %v609, 0
      %vm720 = vcmp.lt.s32.totalorder %v616, 0
      %vm721 = vcmp.lt.s32.totalorder %v623, 0
      %vm722 = vcmp.lt.s32.totalorder %v630, 0
      %vm723 = vcmp.lt.s32.totalorder %v637, 0
      %vm724 = vcmp.lt.s32.totalorder %v644, 0
      %vm725 = vcmp.lt.s32.totalorder %v651, 0
      %vm726 = vcmp.lt.s32.totalorder %v658, 0
      %vm727 = vcmp.lt.s32.totalorder %v665, 0
      %vm728 = vcmp.lt.s32.totalorder %v672, 0
      %vm729 = vcmp.lt.s32.totalorder %v679, 0
      %vm730 = vcmp.lt.s32.totalorder %v686, 0
      %vm731 = vcmp.lt.s32.totalorder %v693, 0
      %vm732 = vcmp.lt.s32.totalorder %v700, 0
      %vm733 = vmand %vm717, %vm701
      %vm734 = vmand %vm718, %vm702
      %vm735 = vmand %vm719, %vm703
      %vm736 = vmand %vm720, %vm704
      %vm737 = vmand %vm721, %vm705
      %vm738 = vmand %vm722, %vm706
      %vm739 = vmand %vm723, %vm707
      %vm740 = vmand %vm724, %vm708
      %vm741 = vmand %vm725, %vm709
      %vm742 = vmand %vm726, %vm710
      %vm743 = vmand %vm727, %vm711
      %vm744 = vmand %vm728, %vm712
      %vm745 = vmand %vm729, %vm713
      %vm746 = vmand %vm730, %vm714
      %vm747 = vmand %vm731, %vm715
      %vm748 = vmand %vm732, %vm716
      %v749 = vadd.s32 %v595, 16
      %v750 = vadd.s32 %v602, 16
      %v751 = vadd.s32 %v609, 16
      %v752 = vadd.s32 %v616, 16
      %v753 = vadd.s32 %v623, 16
      %v754 = vadd.s32 %v630, 16
      %v755 = vadd.s32 %v637, 16
      %v756 = vadd.s32 %v644, 16
      %v757 = vadd.s32 %v651, 16
      %v758 = vadd.s32 %v658, 16
      %v759 = vadd.s32 %v665, 16
      %v760 = vadd.s32 %v672, 16
      %v761 = vadd.s32 %v679, 16
      %v762 = vadd.s32 %v686, 16
      %v763 = vadd.s32 %v693, 16
      %v764 = vadd.s32 %v700, 16
      %v765 = vsel %vm733, %v749, %v595
      %v766 = vsel %vm734, %v750, %v602
      %v767 = vsel %vm735, %v751, %v609
      %v768 = vsel %vm736, %v752, %v616
      %v769 = vsel %vm737, %v753, %v623
      %v770 = vsel %vm738, %v754, %v630
      %v771 = vsel %vm739, %v755, %v637
      %v772 = vsel %vm740, %v756, %v644
      %v773 = vsel %vm741, %v757, %v651
      %v774 = vsel %vm742, %v758, %v658
      %v775 = vsel %vm743, %v759, %v665
      %v776 = vsel %vm744, %v760, %v672
      %v777 = vsel %vm745, %v761, %v679
      %v778 = vsel %vm746, %v762, %v686
      %v779 = vsel %vm747, %v763, %v693
      %v780 = vsel %vm748, %v764, %v700
      %vm781 = vcmp.eq.s32.totalorder %v765, 0
      %vm782 = vcmp.eq.s32.totalorder %v766, 0
      %vm783 = vcmp.eq.s32.totalorder %v767, 0
      %vm784 = vcmp.eq.s32.totalorder %v768, 0
      %vm785 = vcmp.eq.s32.totalorder %v769, 0
      %vm786 = vcmp.eq.s32.totalorder %v770, 0
      %vm787 = vcmp.eq.s32.totalorder %v771, 0
      %vm788 = vcmp.eq.s32.totalorder %v772, 0
      %vm789 = vcmp.eq.s32.totalorder %v773, 0
      %vm790 = vcmp.eq.s32.totalorder %v774, 0
      %vm791 = vcmp.eq.s32.totalorder %v775, 0
      %vm792 = vcmp.eq.s32.totalorder %v776, 0
      %vm793 = vcmp.eq.s32.totalorder %v777, 0
      %vm794 = vcmp.eq.s32.totalorder %v778, 0
      %vm795 = vcmp.eq.s32.totalorder %v779, 0
      %vm796 = vcmp.eq.s32.totalorder %v780, 0
      %v797 = vsel %vm781, 1, 0
      %v798 = vsel %vm782, 1, 0
      %v799 = vsel %vm783, 1, 0
      %v800 = vsel %vm784, 1, 0
      %v801 = vsel %vm785, 1, 0
      %v802 = vsel %vm786, 1, 0
      %v803 = vsel %vm787, 1, 0
      %v804 = vsel %vm788, 1, 0
      %v805 = vsel %vm789, 1, 0
      %v806 = vsel %vm790, 1, 0
      %v807 = vsel %vm791, 1, 0
      %v808 = vsel %vm792, 1, 0
      %v809 = vsel %vm793, 1, 0
      %v810 = vsel %vm794, 1, 0
      %v811 = vsel %vm795, 1, 0
      %v812 = vsel %vm796, 1, 0
      %vm813 = vcmp.eq.s32.totalorder %v797, 1
      %vm814 = vcmp.eq.s32.totalorder %v798, 1
      %vm815 = vcmp.eq.s32.totalorder %v799, 1
      %vm816 = vcmp.eq.s32.totalorder %v800, 1
      %vm817 = vcmp.eq.s32.totalorder %v801, 1
      %vm818 = vcmp.eq.s32.totalorder %v802, 1
      %vm819 = vcmp.eq.s32.totalorder %v803, 1
      %vm820 = vcmp.eq.s32.totalorder %v804, 1
      %vm821 = vcmp.eq.s32.totalorder %v805, 1
      %vm822 = vcmp.eq.s32.totalorder %v806, 1
      %vm823 = vcmp.eq.s32.totalorder %v807, 1
      %vm824 = vcmp.eq.s32.totalorder %v808, 1
      %vm825 = vcmp.eq.s32.totalorder %v809, 1
      %vm826 = vcmp.eq.s32.totalorder %v810, 1
      %vm827 = vcmp.eq.s32.totalorder %v811, 1
      %vm828 = vcmp.eq.s32.totalorder %v812, 1
      %v829 = vsel %vm813, 0.0, %v539
      %v830 = vsel %vm814, 0.0, %v494
      %v831 = vsel %vm815, 0.0, %v496
      %v832 = vsel %vm816, 0.0, %v498
      %v833 = vsel %vm817, 0.0, %v500
      %v834 = vsel %vm818, 0.0, %v502
      %v835 = vsel %vm819, 0.0, %v504
      %v836 = vsel %vm820, 0.0, %v506
      %v837 = vsel %vm821, 0.0, %v508
      %v838 = vsel %vm822, 0.0, %v510
      %v839 = vsel %vm823, 0.0, %v512
      %v840 = vsel %vm824, 0.0, %v514
      %v841 = vsel %vm825, 0.0, %v516
      %v842 = vsel %vm826, 0.0, %v518
      %v843 = vsel %vm827, 0.0, %v520
      %v844 = vsel %vm828, 0.0, %v522
      %vm845 = vcmp.eq.s32.totalorder %v765, 15
      %vm846 = vcmp.eq.s32.totalorder %v766, 15
      %vm847 = vcmp.eq.s32.totalorder %v767, 15
      %vm848 = vcmp.eq.s32.totalorder %v768, 15
      %vm849 = vcmp.eq.s32.totalorder %v769, 15
      %vm850 = vcmp.eq.s32.totalorder %v770, 15
      %vm851 = vcmp.eq.s32.totalorder %v771, 15
      %vm852 = vcmp.eq.s32.totalorder %v772, 15
      %vm853 = vcmp.eq.s32.totalorder %v773, 15
      %vm854 = vcmp.eq.s32.totalorder %v774, 15
      %vm855 = vcmp.eq.s32.totalorder %v775, 15
      %vm856 = vcmp.eq.s32.totalorder %v776, 15
      %vm857 = vcmp.eq.s32.totalorder %v777, 15
      %vm858 = vcmp.eq.s32.totalorder %v778, 15
      %vm859 = vcmp.eq.s32.totalorder %v779, 15
      %vm860 = vcmp.eq.s32.totalorder %v780, 15
      %v861 = vsel %vm845, 1, 0
      %v862 = vsel %vm846, 1, 0
      %v863 = vsel %vm847, 1, 0
      %v864 = vsel %vm848, 1, 0
      %v865 = vsel %vm849, 1, 0
      %v866 = vsel %vm850, 1, 0
      %v867 = vsel %vm851, 1, 0
      %v868 = vsel %vm852, 1, 0
      %v869 = vsel %vm853, 1, 0
      %v870 = vsel %vm854, 1, 0
      %v871 = vsel %vm855, 1, 0
      %v872 = vsel %vm856, 1, 0
      %v873 = vsel %vm857, 1, 0
      %v874 = vsel %vm858, 1, 0
      %v875 = vsel %vm859, 1, 0
      %v876 = vsel %vm860, 1, 0
      %vm877 = vcmp.eq.s32.totalorder %v861, 1
      %vm878 = vcmp.eq.s32.totalorder %v862, 1
      %vm879 = vcmp.eq.s32.totalorder %v863, 1
      %vm880 = vcmp.eq.s32.totalorder %v864, 1
      %vm881 = vcmp.eq.s32.totalorder %v865, 1
      %vm882 = vcmp.eq.s32.totalorder %v866, 1
      %vm883 = vcmp.eq.s32.totalorder %v867, 1
      %vm884 = vcmp.eq.s32.totalorder %v868, 1
      %vm885 = vcmp.eq.s32.totalorder %v869, 1
      %vm886 = vcmp.eq.s32.totalorder %v870, 1
      %vm887 = vcmp.eq.s32.totalorder %v871, 1
      %vm888 = vcmp.eq.s32.totalorder %v872, 1
      %vm889 = vcmp.eq.s32.totalorder %v873, 1
      %vm890 = vcmp.eq.s32.totalorder %v874, 1
      %vm891 = vcmp.eq.s32.totalorder %v875, 1
      %vm892 = vcmp.eq.s32.totalorder %v876, 1
      %v893 = vsel %vm877, 0.0, %v543
      %v894 = vsel %vm878, 0.0, %v545
      %v895 = vsel %vm879, 0.0, %v547
      %v896 = vsel %vm880, 0.0, %v549
      %v897 = vsel %vm881, 0.0, %v551
      %v898 = vsel %vm882, 0.0, %v553
      %v899 = vsel %vm883, 0.0, %v555
      %v900 = vsel %vm884, 0.0, %v557
      %v901 = vsel %vm885, 0.0, %v559
      %v902 = vsel %vm886, 0.0, %v561
      %v903 = vsel %vm887, 0.0, %v563
      %v904 = vsel %vm888, 0.0, %v565
      %v905 = vsel %vm889, 0.0, %v567
      %v906 = vsel %vm890, 0.0, %v569
      %v907 = vsel %vm891, 0.0, %v571
      %v908 = vsel %vm892, 0.0, %v588
      %909 = vrot.lane.b32.xlu0 %v442, 8
      %v910 = vpop.permute.xlu0 %909
      %911 = vrot.lane.b32.xlu0 %v443, 8
      %v912 = vpop.permute.xlu0 %911
      %913 = vrot.lane.b32.xlu0 %v444, 8
      %v914 = vpop.permute.xlu0 %913
      %915 = vrot.lane.b32.xlu0 %v445, 8
      %v916 = vpop.permute.xlu0 %915
      %917 = vrot.lane.b32.xlu0 %v446, 8
      %v918 = vpop.permute.xlu0 %917
      %919 = vrot.lane.b32.xlu0 %v447, 8
      %v920 = vpop.permute.xlu0 %919
      %921 = vrot.lane.b32.xlu0 %v448, 8
      %v922 = vpop.permute.xlu0 %921
      %923 = vrot.lane.b32.xlu0 %v449, 8
      %v924 = vpop.permute.xlu0 %923
      %925 = vrot.lane.b32.xlu0 %v450, 8
      %v926 = vpop.permute.xlu0 %925
      %927 = vrot.lane.b32.xlu0 %v451, 8
      %v928 = vpop.permute.xlu0 %927
      %929 = vrot.lane.b32.xlu0 %v452, 8
      %v930 = vpop.permute.xlu0 %929
      %931 = vrot.lane.b32.xlu0 %v453, 8
      %v932 = vpop.permute.xlu0 %931
      %933 = vrot.lane.b32.xlu0 %v454, 8
      %v934 = vpop.permute.xlu0 %933
      %935 = vrot.lane.b32.xlu0 %v455, 8
      %v936 = vpop.permute.xlu0 %935
      %937 = vrot.lane.b32.xlu0 %v456, 8
      %v938 = vpop.permute.xlu0 %937
      %939 = vrot.lane.b32.xlu0 %v457, 8
      %v940 = vpop.permute.xlu0 %939
      %973 = vrot.lane.b32.xlu0 %v893, 16
      %v974 = vpop.permute.xlu0 %973
      %975 = vrot.lane.b32.xlu0 %v894, 16
      %v976 = vpop.permute.xlu0 %975
      %977 = vrot.lane.b32.xlu0 %v895, 16
      %v978 = vpop.permute.xlu0 %977
      %979 = vrot.lane.b32.xlu0 %v896, 16
      %v980 = vpop.permute.xlu0 %979
      %981 = vrot.lane.b32.xlu0 %v897, 16
      %v982 = vpop.permute.xlu0 %981
      %983 = vrot.lane.b32.xlu0 %v898, 16
      %v984 = vpop.permute.xlu0 %983
      %985 = vrot.lane.b32.xlu0 %v899, 16
      %v986 = vpop.permute.xlu0 %985
      %987 = vrot.lane.b32.xlu0 %v900, 16
      %v988 = vpop.permute.xlu0 %987
      %989 = vrot.lane.b32.xlu0 %v901, 16
      %v990 = vpop.permute.xlu0 %989
      %991 = vrot.lane.b32.xlu0 %v902, 16
      %v992 = vpop.permute.xlu0 %991
      %993 = vrot.lane.b32.xlu0 %v903, 16
      %v994 = vpop.permute.xlu0 %993
      %995 = vrot.lane.b32.xlu0 %v904, 16
      %v996 = vpop.permute.xlu0 %995
      %997 = vrot.lane.b32.xlu0 %v905, 16
      %v998 = vpop.permute.xlu0 %997
      %999 = vrot.lane.b32.xlu0 %v906, 16
      %v1000 = vpop.permute.xlu0 %999
      %1001 = vrot.lane.b32.xlu0 %v907, 16
      %v1002 = vpop.permute.xlu0 %1001
      %1003 = vrot.lane.b32.xlu0 %v908, 16
      %v1004 = vpop.permute.xlu0 %1003
      %vm1021 = vcmask 64512
      %v1022 = vsel %vm1021, %v829, %v910
      %v1023 = vsel %vm1021, %v830, %v912
      %v1024 = vsel %vm1021, %v831, %v914
      %v1025 = vsel %vm1021, %v832, %v916
      %v1026 = vsel %vm1021, %v833, %v918
      %v1027 = vsel %vm1021, %v834, %v920
      %v1028 = vsel %vm1021, %v835, %v922
      %v1029 = vsel %vm1021, %v836, %v924
      %v1030 = vsel %vm1021, %v837, %v926
      %v1031 = vsel %vm1021, %v838, %v928
      %v1032 = vsel %vm1021, %v839, %v930
      %v1033 = vsel %vm1021, %v840, %v932
      %v1034 = vsel %vm1021, %v841, %v934
      %v1035 = vsel %vm1021, %v842, %v936
      %v1036 = vsel %vm1021, %v843, %v938
      %v1037 = vsel %vm1021, %v844, %v940
      %vm1038 = vcmask 130048
      %v1039 = vsel %vm1038, %v1022, %v974
      %v1040 = vsel %vm1038, %v1023, %v976
      %v1041 = vsel %vm1038, %v1024, %v978
      %v1042 = vsel %vm1038, %v1025, %v980
      %v1043 = vsel %vm1038, %v1026, %v982
      %v1044 = vsel %vm1038, %v1027, %v984
      %v1045 = vsel %vm1038, %v1028, %v986
      %v1046 = vsel %vm1038, %v1029, %v988
      %v1047 = vsel %vm1038, %v1030, %v990
      %v1048 = vsel %vm1038, %v1031, %v992
      %v1049 = vsel %vm1038, %v1032, %v994
      %v1050 = vsel %vm1038, %v1033, %v996
      %v1051 = vsel %vm1038, %v1034, %v998
      %v1052 = vsel %vm1038, %v1035, %v1000
      %v1053 = vsel %vm1038, %v1036, %v1002
      %v1054 = vsel %vm1038, %v1037, %v1004
      %v1055 = vpack.c.bf16 %v1040, %v1039
      %v1056 = vpack.c.bf16 %v1042, %v1041
      %v1057 = vpack.c.bf16 %v1044, %v1043
      %v1058 = vpack.c.bf16 %v1046, %v1045
      %v1059 = vpack.c.bf16 %v1048, %v1047
      %v1060 = vpack.c.bf16 %v1050, %v1049
      %v1061 = vpack.c.bf16 %v1052, %v1051
      %v1062 = vpack.c.bf16 %v1054, %v1053
      %v1063 = vld [vmem:[%s1] sm:$0xf]
      %v1064 = vld [vmem:[%s1 + $0x4] sm:$0xf]
      %v1065 = vld [vmem:[%s1 + $0x8] sm:$0xf]
      %v1066 = vld [vmem:[%s2] sm:$0x1]
      %v1068 = vlaneseq
      %v1069 = vshrl.u32 %v1068, 7
      %v1070 = vsub.s32 0, %v1069
      %v1071 = vrot.slane %v1066, %v1070
      %v1076 = vunpack.c.l.b16 %v1063
      %v1077 = vunpack.c.l.b16 %v1064
      %v1078 = vunpack.c.l.b16 %v1065
      %v1079 = vpack.c.b16 %v1077, %v1076
      %v1080 = vpack.c.b16 %v1078, %v1078
      %vm1082 = vcmask 195584
      %v1084 = vsel %vm1082, %v1055, 0
      %v1087 = vsel %vm1082, %v1056, 0
      %v1090 = vsel %vm1082, %v1057, 0
      %v1093 = vsel %vm1082, %v1058, 0
      %v1096 = vsel %vm1082, %v1059, 0
      %v1099 = vsel %vm1082, %v1060, 0
      %v1102 = vsel %vm1082, %v1061, 0
      %v1105 = vsel %vm1082, %v1062, 0
      %vm1107 = vcmask 1043456
      %v1109 = vsel %vm1107, %v1080, 0
      %1111 = vmatprep.subr.bf16.mxu0 0
      %1112 = vmatpush1.bf16.msra.mxu0 %v1079
      %1113 = vmatprep.subr.bf16.mxu0 0
      %1114 = vmatpush1.bf16.msra.mxu0 %v1109
      %1115 = vmatprep.subr.bf16.mxu0 0
      %1116 = vmatpush1.bf16.msra.mxu0 0
      %1117 = vmatprep.subr.bf16.mxu0 0
      %1118 = vmatpush1.bf16.msra.mxu0 0
      %1119 = vmatprep.subr.bf16.mxu0 0
      %1120 = vmatpush1.bf16.msra.mxu0 0
      %1121 = vmatprep.subr.bf16.mxu0 0
      %1122 = vmatpush1.bf16.msra.mxu0 0
      %1123 = vmatprep.subr.bf16.mxu0 0
      %1124 = vmatpush1.bf16.msra.mxu0 0
      %1125 = vmatprep.subr.bf16.mxu0 0
      %1126 = vmatpush1.bf16.msra.mxu0 0
      %1127 = vmatprep.subr.bf16.mxu0 0
      %1128 = vmatpush1.bf16.msra.mxu0 0
      %1129 = vmatprep.subr.bf16.mxu0 0
      %1130 = vmatpush1.bf16.msra.mxu0 0
      %1131 = vmatprep.subr.bf16.mxu0 0
      %1132 = vmatpush1.bf16.msra.mxu0 0
      %1133 = vmatprep.subr.bf16.mxu0 0
      %1134 = vmatpush1.bf16.msra.mxu0 0
      %1135 = vmatprep.subr.bf16.mxu0 0
      %1136 = vmatpush1.bf16.msra.mxu0 0
      %1137 = vmatprep.subr.bf16.mxu0 0
      %1138 = vmatpush1.bf16.msra.mxu0 0
      %1139 = vmatprep.subr.bf16.mxu0 0
      %1140 = vmatpush1.bf16.msra.mxu0 0
      %1141 = vmatprep.subr.bf16.mxu0 0
      %1142 = vmatpush1.bf16.msra.mxu0 0
      %1143 = vmatprep.mubr.bf16.mxu0 0
      %1144 = vmatmul.mubr.bf16.gmra.mrb[0].mxu0 %v1084
      %v1145 = vpop.f32.mrb[0].mxu0
      %v1146 = vadd.f32 %v1071, %v1145
      %v1147 = vpop.f32.mrb[0].mxu0
      %v1148 = vpop.f32.mrb[0].mxu0
      %v1149 = vadd.f32 %v1071, %v1148
      %v1150 = vpop.f32.mrb[0].mxu0
      %1151 = vmatprep.mubr.bf16.mxu0 0
      %1152 = vmatmul.mubr.bf16.gmra.mrb[0].mxu0 %v1087
      %v1153 = vpop.f32.mrb[0].mxu0
      %v1154 = vadd.f32 %v1071, %v1153
      %v1155 = vpop.f32.mrb[0].mxu0
      %v1156 = vpop.f32.mrb[0].mxu0
      %v1157 = vadd.f32 %v1071, %v1156
      %v1158 = vpop.f32.mrb[0].mxu0
      %1159 = vmatprep.mubr.bf16.mxu0 0
      %1160 = vmatmul.mubr.bf16.gmra.mrb[0].mxu0 %v1090
      %v1161 = vpop.f32.mrb[0].mxu0
      %v1162 = vadd.f32 %v1071, %v1161
      %v1163 = vpop.f32.mrb[0].mxu0
      %v1164 = vpop.f32.mrb[0].mxu0
      %v1165 = vadd.f32 %v1071, %v1164
      %v1166 = vpop.f32.mrb[0].mxu0
      %1167 = vmatprep.mubr.bf16.mxu0 0
      %1168 = vmatmul.mubr.bf16.gmra.mrb[0].mxu0 %v1093
      %v1169 = vpop.f32.mrb[0].mxu0
      %v1170 = vadd.f32 %v1071, %v1169
      %v1171 = vpop.f32.mrb[0].mxu0
      %v1172 = vpop.f32.mrb[0].mxu0
      %v1173 = vadd.f32 %v1071, %v1172
      %v1174 = vpop.f32.mrb[0].mxu0
      %1175 = vmatprep.mubr.bf16.mxu0 0
      %1176 = vmatmul.mubr.bf16.gmra.mrb[0].mxu0 %v1096
      %v1177 = vpop.f32.mrb[0].mxu0
      %v1178 = vadd.f32 %v1071, %v1177
      %v1179 = vpop.f32.mrb[0].mxu0
      %v1180 = vpop.f32.mrb[0].mxu0
      %v1181 = vadd.f32 %v1071, %v1180
      %v1182 = vpop.f32.mrb[0].mxu0
      %1183 = vmatprep.mubr.bf16.mxu0 0
      %1184 = vmatmul.mubr.bf16.gmra.mrb[0].mxu0 %v1099
      %v1185 = vpop.f32.mrb[0].mxu0
      %v1186 = vadd.f32 %v1071, %v1185
      %v1187 = vpop.f32.mrb[0].mxu0
      %v1188 = vpop.f32.mrb[0].mxu0
      %v1189 = vadd.f32 %v1071, %v1188
      %v1190 = vpop.f32.mrb[0].mxu0
      %1191 = vmatprep.mubr.bf16.mxu0 0
      %1192 = vmatmul.mubr.bf16.gmra.mrb[0].mxu0 %v1102
      %v1193 = vpop.f32.mrb[0].mxu0
      %v1194 = vadd.f32 %v1071, %v1193
      %v1195 = vpop.f32.mrb[0].mxu0
      %v1196 = vpop.f32.mrb[0].mxu0
      %v1197 = vadd.f32 %v1071, %v1196
      %v1198 = vpop.f32.mrb[0].mxu0
      %1199 = vmatprep.mubr.bf16.mxu0 0
      %1200 = vmatmul.mubr.bf16.gmra.mrb[0].mxu0 %v1105
      %v1201 = vpop.f32.mrb[0].mxu0
      %v1202 = vadd.f32 %v1071, %v1201
      %v1203 = vpop.f32.mrb[0].mxu0
      %v1204 = vpop.f32.mrb[0].mxu0
      %v1205 = vadd.f32 %v1071, %v1204
      %v1206 = vpop.f32.mrb[0].mxu0
      %1207 = vdwg.mxu0
      %v1208 = vmax.f32 %v1146, 0.0
      %v1209 = vmax.f32 %v1149, 0.0
      %v1210 = vmax.f32 %v1154, 0.0
      %v1211 = vmax.f32 %v1157, 0.0
      %v1212 = vmax.f32 %v1162, 0.0
      %v1213 = vmax.f32 %v1165, 0.0
      %v1214 = vmax.f32 %v1170, 0.0
      %v1215 = vmax.f32 %v1173, 0.0
      %v1216 = vmax.f32 %v1178, 0.0
      %v1217 = vmax.f32 %v1181, 0.0
      %v1218 = vmax.f32 %v1186, 0.0
      %v1219 = vmax.f32 %v1189, 0.0
      %v1220 = vmax.f32 %v1194, 0.0
      %v1221 = vmax.f32 %v1197, 0.0
      %v1222 = vmax.f32 %v1202, 0.0
      %v1223 = vmax.f32 %v1205, 0.0
      %1224 = vst.msk [vmem:[#allocation2] sm:$0xff] %vm1021, %v1208
      %1225 = vst.msk [vmem:[#allocation2 + $0x8] sm:$0xff] %vm1021, %v1209
      %1226 = vst.msk [vmem:[#allocation2 + $0x10] sm:$0xff] %vm1021, %v1210
      %1227 = vst.msk [vmem:[#allocation2 + $0x18] sm:$0xff] %vm1021, %v1211
      %1228 = vst.msk [vmem:[#allocation2 + $0x20] sm:$0xff] %vm1021, %v1212
      %1229 = vst.msk [vmem:[#allocation2 + $0x28] sm:$0xff] %vm1021, %v1213
      %1230 = vst.msk [vmem:[#allocation2 + $0x30] sm:$0xff] %vm1021, %v1214
      %1231 = vst.msk [vmem:[#allocation2 + $0x38] sm:$0xff] %vm1021, %v1215
      %1232 = vst.msk [vmem:[#allocation2 + $0x40] sm:$0xff] %vm1021, %v1216
      %1233 = vst.msk [vmem:[#allocation2 + $0x48] sm:$0xff] %vm1021, %v1217
      %1234 = vst.msk [vmem:[#allocation2 + $0x50] sm:$0xff] %vm1021, %v1218
      %1235 = vst.msk [vmem:[#allocation2 + $0x58] sm:$0xff] %vm1021, %v1219
      %1236 = vst.msk [vmem:[#allocation2 + $0x60] sm:$0xff] %vm1021, %v1220
      %1237 = vst.msk [vmem:[#allocation2 + $0x68] sm:$0xff] %vm1021, %v1221
      %1238 = vst.msk [vmem:[#allocation2 + $0x70] sm:$0xff] %vm1021, %v1222
      %1239 = vst.msk [vmem:[#allocation2 + $0x78] sm:$0xff] %vm1021, %v1223
      %v1240 = vld [vmem:[#allocation2] ss:$2 sm:$0xff]
      %s1241 = scalar_lea.vmem [#allocation2], 16
      %v1242 = vld [vmem:[%s1241] ss:$2 sm:$0xff]
      %s1243 = scalar_lea.vmem [#allocation2], 32
      %v1244 = vld [vmem:[%s1243] ss:$2 sm:$0xff]
      %s1245 = scalar_lea.vmem [#allocation2], 48
      %v1246 = vld [vmem:[%s1245] ss:$2 sm:$0xff]
      %s1247 = scalar_lea.vmem [#allocation2], 64
      %v1248 = vld [vmem:[%s1247] ss:$2 sm:$0xff]
      %s1249 = scalar_lea.vmem [#allocation2], 80
      %v1250 = vld [vmem:[%s1249] ss:$2 sm:$0xff]
      %s1251 = scalar_lea.vmem [#allocation2], 96
      %v1252 = vld [vmem:[%s1251] ss:$2 sm:$0xff]
      %s1253 = scalar_lea.vmem [#allocation2], 112
      %v1254 = vld [vmem:[%s1253] ss:$2 sm:$0xff]
      %s1255 = scalar_lea.vmem [#allocation2], 1
      %v1256 = vld [vmem:[%s1255] ss:$2 sm:$0xff]
      %s1257 = scalar_lea.vmem [#allocation2], 17
      %v1258 = vld [vmem:[%s1257] ss:$2 sm:$0xff]
      %s1259 = scalar_lea.vmem [#allocation2], 33
      %v1260 = vld [vmem:[%s1259] ss:$2 sm:$0xff]
      %s1261 = scalar_lea.vmem [#allocation2], 49
      %v1262 = vld [vmem:[%s1261] ss:$2 sm:$0xff]
      %s1263 = scalar_lea.vmem [#allocation2], 65
      %v1264 = vld [vmem:[%s1263] ss:$2 sm:$0xff]
      %s1265 = scalar_lea.vmem [#allocation2], 81
      %v1266 = vld [vmem:[%s1265] ss:$2 sm:$0xff]
      %s1267 = scalar_lea.vmem [#allocation2], 97
      %v1268 = vld [vmem:[%s1267] ss:$2 sm:$0xff]
      %s1269 = scalar_lea.vmem [#allocation2], 113
      %v1270 = vld [vmem:[%s1269] ss:$2 sm:$0xff]
      %v1271 = vmax.f32 %v1240, %v1256
      %v1272 = vmax.f32 %v1242, %v1258
      %v1273 = vmax.f32 %v1244, %v1260
      %v1274 = vmax.f32 %v1246, %v1262
      %v1275 = vmax.f32 %v1248, %v1264
      %v1276 = vmax.f32 %v1250, %v1266
      %v1277 = vmax.f32 %v1252, %v1268
      %v1278 = vmax.f32 %v1254, %v1270
      %v1287 = vrot.slane %v1271, 7
      %v1288 = vrot.slane %v1272, 7
      %v1289 = vsel %vm491, %v1287, %v1288
      %v1290 = vrot.slane %v1273, 7
      %v1291 = vsel %vm491, %v1288, %v1290
      %v1292 = vrot.slane %v1274, 7
      %v1293 = vsel %vm491, %v1290, %v1292
      %v1294 = vrot.slane %v1275, 7
      %v1295 = vsel %vm491, %v1292, %v1294
      %v1296 = vrot.slane %v1276, 7
      %v1297 = vsel %vm491, %v1294, %v1296
      %v1298 = vrot.slane %v1277, 7
      %v1299 = vsel %vm491, %v1296, %v1298
      %v1300 = vrot.slane %v1278, 7
      %v1301 = vsel %vm491, %v1298, %v1300
      %v1310 = vsel %vm491, 0.0, %v1287
      %v1311 = vrot.slane %v1271, 1
      %v1312 = vrot.slane %v1272, 1
      %v1313 = vsel %vm540, %v1311, %v1312
      %v1314 = vrot.slane %v1273, 1
      %v1315 = vsel %vm540, %v1312, %v1314
      %v1316 = vrot.slane %v1274, 1
      %v1317 = vsel %vm540, %v1314, %v1316
      %v1318 = vrot.slane %v1275, 1
      %v1319 = vsel %vm540, %v1316, %v1318
      %v1320 = vrot.slane %v1276, 1
      %v1321 = vsel %vm540, %v1318, %v1320
      %v1322 = vrot.slane %v1277, 1
      %v1323 = vsel %vm540, %v1320, %v1322
      %v1324 = vrot.slane %v1278, 1
      %v1325 = vsel %vm540, %v1322, %v1324
      %v1334 = vsel %vm540, %v1324, 0.0
      %vm1335 = vcmp.lt.s32.totalorder %v459, 0
      %v1336 = vsub.s32 0, %v459
      %v1337 = vsel %vm1335, %v1336, %v459
      %v1338 = vshrl.u32 %v1337, 3
      %v1339 = vand.u32 %v1337, 7
      %v1340 = vsub.s32 0, %v1339
      %v1341 = vsel %vm1335, %v1340, %v1339
      %vm1342 = vcmp.lt.s32.totalorder %v460, 0
      %v1343 = vsub.s32 0, %v460
      %v1344 = vsel %vm1342, %v1343, %v460
      %v1345 = vshrl.u32 %v1344, 3
      %v1346 = vand.u32 %v1344, 7
      %v1347 = vsub.s32 0, %v1346
      %v1348 = vsel %vm1342, %v1347, %v1346
      %vm1349 = vcmp.lt.s32.totalorder %v461, 0
      %v1350 = vsub.s32 0, %v461
      %v1351 = vsel %vm1349, %v1350, %v461
      %v1352 = vshrl.u32 %v1351, 3
      %v1353 = vand.u32 %v1351, 7
      %v1354 = vsub.s32 0, %v1353
      %v1355 = vsel %vm1349, %v1354, %v1353
      %vm1356 = vcmp.lt.s32.totalorder %v462, 0
      %v1357 = vsub.s32 0, %v462
      %v1358 = vsel %vm1356, %v1357, %v462
      %v1359 = vshrl.u32 %v1358, 3
      %v1360 = vand.u32 %v1358, 7
      %v1361 = vsub.s32 0, %v1360
      %v1362 = vsel %vm1356, %v1361, %v1360
      %vm1363 = vcmp.lt.s32.totalorder %v463, 0
      %v1364 = vsub.s32 0, %v463
      %v1365 = vsel %vm1363, %v1364, %v463
      %v1366 = vshrl.u32 %v1365, 3
      %v1367 = vand.u32 %v1365, 7
      %v1368 = vsub.s32 0, %v1367
      %v1369 = vsel %vm1363, %v1368, %v1367
      %vm1370 = vcmp.lt.s32.totalorder %v464, 0
      %v1371 = vsub.s32 0, %v464
      %v1372 = vsel %vm1370, %v1371, %v464
      %v1373 = vshrl.u32 %v1372, 3
      %v1374 = vand.u32 %v1372, 7
      %v1375 = vsub.s32 0, %v1374
      %v1376 = vsel %vm1370, %v1375, %v1374
      %vm1377 = vcmp.lt.s32.totalorder %v465, 0
      %v1378 = vsub.s32 0, %v465
      %v1379 = vsel %vm1377, %v1378, %v465
      %v1380 = vshrl.u32 %v1379, 3
      %v1381 = vand.u32 %v1379, 7
      %v1382 = vsub.s32 0, %v1381
      %v1383 = vsel %vm1377, %v1382, %v1381
      %vm1384 = vcmp.lt.s32.totalorder %v466, 0
      %v1385 = vsub.s32 0, %v466
      %v1386 = vsel %vm1384, %v1385, %v466
      %v1387 = vshrl.u32 %v1386, 3
      %v1388 = vand.u32 %v1386, 7
      %v1389 = vsub.s32 0, %v1388
      %v1390 = vsel %vm1384, %v1389, %v1388
      %vm1391 = vcmp.ne.s32.totalorder %v1341, 0
      %vm1392 = vcmp.ne.s32.totalorder %v1348, 0
      %vm1393 = vcmp.ne.s32.totalorder %v1355, 0
      %vm1394 = vcmp.ne.s32.totalorder %v1362, 0
      %vm1395 = vcmp.ne.s32.totalorder %v1369, 0
      %vm1396 = vcmp.ne.s32.totalorder %v1376, 0
      %vm1397 = vcmp.ne.s32.totalorder %v1383, 0
      %vm1398 = vcmp.ne.s32.totalorder %v1390, 0
      %vm1399 = vcmp.lt.s32.totalorder %v1341, 0
      %vm1400 = vcmp.lt.s32.totalorder %v1348, 0
      %vm1401 = vcmp.lt.s32.totalorder %v1355, 0
      %vm1402 = vcmp.lt.s32.totalorder %v1362, 0
      %vm1403 = vcmp.lt.s32.totalorder %v1369, 0
      %vm1404 = vcmp.lt.s32.totalorder %v1376, 0
      %vm1405 = vcmp.lt.s32.totalorder %v1383, 0
      %vm1406 = vcmp.lt.s32.totalorder %v1390, 0
      %vm1407 = vmand %vm1399, %vm1391
      %vm1408 = vmand %vm1400, %vm1392
      %vm1409 = vmand %vm1401, %vm1393
      %vm1410 = vmand %vm1402, %vm1394
      %vm1411 = vmand %vm1403, %vm1395
      %vm1412 = vmand %vm1404, %vm1396
      %vm1413 = vmand %vm1405, %vm1397
      %vm1414 = vmand %vm1406, %vm1398
      %v1415 = vadd.s32 %v1341, 8
      %v1416 = vadd.s32 %v1348, 8
      %v1417 = vadd.s32 %v1355, 8
      %v1418 = vadd.s32 %v1362, 8
      %v1419 = vadd.s32 %v1369, 8
      %v1420 = vadd.s32 %v1376, 8
      %v1421 = vadd.s32 %v1383, 8
      %v1422 = vadd.s32 %v1390, 8
      %v1423 = vsel %vm1407, %v1415, %v1341
      %v1424 = vsel %vm1408, %v1416, %v1348
      %v1425 = vsel %vm1409, %v1417, %v1355
      %v1426 = vsel %vm1410, %v1418, %v1362
      %v1427 = vsel %vm1411, %v1419, %v1369
      %v1428 = vsel %vm1412, %v1420, %v1376
      %v1429 = vsel %vm1413, %v1421, %v1383
      %v1430 = vsel %vm1414, %v1422, %v1390
      %vm1431 = vcmp.eq.s32.totalorder %v1423, 0
      %vm1432 = vcmp.eq.s32.totalorder %v1424, 0
      %vm1433 = vcmp.eq.s32.totalorder %v1425, 0
      %vm1434 = vcmp.eq.s32.totalorder %v1426, 0
      %vm1435 = vcmp.eq.s32.totalorder %v1427, 0
      %vm1436 = vcmp.eq.s32.totalorder %v1428, 0
      %vm1437 = vcmp.eq.s32.totalorder %v1429, 0
      %vm1438 = vcmp.eq.s32.totalorder %v1430, 0
      %v1439 = vsel %vm1431, 1, 0
      %v1440 = vsel %vm1432, 1, 0
      %v1441 = vsel %vm1433, 1, 0
      %v1442 = vsel %vm1434, 1, 0
      %v1443 = vsel %vm1435, 1, 0
      %v1444 = vsel %vm1436, 1, 0
      %v1445 = vsel %vm1437, 1, 0
      %v1446 = vsel %vm1438, 1, 0
      %vm1447 = vcmp.eq.s32.totalorder %v1439, 1
      %vm1448 = vcmp.eq.s32.totalorder %v1440, 1
      %vm1449 = vcmp.eq.s32.totalorder %v1441, 1
      %vm1450 = vcmp.eq.s32.totalorder %v1442, 1
      %vm1451 = vcmp.eq.s32.totalorder %v1443, 1
      %vm1452 = vcmp.eq.s32.totalorder %v1444, 1
      %vm1453 = vcmp.eq.s32.totalorder %v1445, 1
      %vm1454 = vcmp.eq.s32.totalorder %v1446, 1
      %v1455 = vsel %vm1447, 0.0, %v1310
      %v1456 = vsel %vm1448, 0.0, %v1289
      %v1457 = vsel %vm1449, 0.0, %v1291
      %v1458 = vsel %vm1450, 0.0, %v1293
      %v1459 = vsel %vm1451, 0.0, %v1295
      %v1460 = vsel %vm1452, 0.0, %v1297
      %v1461 = vsel %vm1453, 0.0, %v1299
      %v1462 = vsel %vm1454, 0.0, %v1301
      %vm1463 = vcmp.eq.s32.totalorder %v1423, 7
      %vm1464 = vcmp.eq.s32.totalorder %v1424, 7
      %vm1465 = vcmp.eq.s32.totalorder %v1425, 7
      %vm1466 = vcmp.eq.s32.totalorder %v1426, 7
      %vm1467 = vcmp.eq.s32.totalorder %v1427, 7
      %vm1468 = vcmp.eq.s32.totalorder %v1428, 7
      %vm1469 = vcmp.eq.s32.totalorder %v1429, 7
      %vm1470 = vcmp.eq.s32.totalorder %v1430, 7
      %v1471 = vsel %vm1463, 1, 0
      %v1472 = vsel %vm1464, 1, 0
      %v1473 = vsel %vm1465, 1, 0
      %v1474 = vsel %vm1466, 1, 0
      %v1475 = vsel %vm1467, 1, 0
      %v1476 = vsel %vm1468, 1, 0
      %v1477 = vsel %vm1469, 1, 0
      %v1478 = vsel %vm1470, 1, 0
      %vm1479 = vcmp.eq.s32.totalorder %v1471, 1
      %vm1480 = vcmp.eq.s32.totalorder %v1472, 1
      %vm1481 = vcmp.eq.s32.totalorder %v1473, 1
      %vm1482 = vcmp.eq.s32.totalorder %v1474, 1
      %vm1483 = vcmp.eq.s32.totalorder %v1475, 1
      %vm1484 = vcmp.eq.s32.totalorder %v1476, 1
      %vm1485 = vcmp.eq.s32.totalorder %v1477, 1
      %vm1486 = vcmp.eq.s32.totalorder %v1478, 1
      %v1487 = vsel %vm1479, 0.0, %v1313
      %v1488 = vsel %vm1480, 0.0, %v1315
      %v1489 = vsel %vm1481, 0.0, %v1317
      %v1490 = vsel %vm1482, 0.0, %v1319
      %v1491 = vsel %vm1483, 0.0, %v1321
      %v1492 = vsel %vm1484, 0.0, %v1323
      %v1493 = vsel %vm1485, 0.0, %v1325
      %v1494 = vsel %vm1486, 0.0, %v1334
      %1495 = vrot.lane.b32.xlu0 %v1271, 8
      %v1496 = vpop.permute.xlu0 %1495
      %1497 = vrot.lane.b32.xlu0 %v1272, 8
      %v1498 = vpop.permute.xlu0 %1497
      %1499 = vrot.lane.b32.xlu0 %v1273, 8
      %v1500 = vpop.permute.xlu0 %1499
      %1501 = vrot.lane.b32.xlu0 %v1274, 8
      %v1502 = vpop.permute.xlu0 %1501
      %1503 = vrot.lane.b32.xlu0 %v1275, 8
      %v1504 = vpop.permute.xlu0 %1503
      %1505 = vrot.lane.b32.xlu0 %v1276, 8
      %v1506 = vpop.permute.xlu0 %1505
      %1507 = vrot.lane.b32.xlu0 %v1277, 8
      %v1508 = vpop.permute.xlu0 %1507
      %1509 = vrot.lane.b32.xlu0 %v1278, 8
      %v1510 = vpop.permute.xlu0 %1509
      %1527 = vrot.lane.b32.xlu0 %v1487, 16
      %v1528 = vpop.permute.xlu0 %1527
      %1529 = vrot.lane.b32.xlu0 %v1488, 16
      %v1530 = vpop.permute.xlu0 %1529
      %1531 = vrot.lane.b32.xlu0 %v1489, 16
      %v1532 = vpop.permute.xlu0 %1531
      %1533 = vrot.lane.b32.xlu0 %v1490, 16
      %v1534 = vpop.permute.xlu0 %1533
      %1535 = vrot.lane.b32.xlu0 %v1491, 16
      %v1536 = vpop.permute.xlu0 %1535
      %1537 = vrot.lane.b32.xlu0 %v1492, 16
      %v1538 = vpop.permute.xlu0 %1537
      %1539 = vrot.lane.b32.xlu0 %v1493, 16
      %v1540 = vpop.permute.xlu0 %1539
      %1541 = vrot.lane.b32.xlu0 %v1494, 16
      %v1542 = vpop.permute.xlu0 %1541
      %v1551 = vsel %vm1021, %v1455, %v1496
      %v1552 = vsel %vm1021, %v1456, %v1498
      %v1553 = vsel %vm1021, %v1457, %v1500
      %v1554 = vsel %vm1021, %v1458, %v1502
      %v1555 = vsel %vm1021, %v1459, %v1504
      %v1556 = vsel %vm1021, %v1460, %v1506
      %v1557 = vsel %vm1021, %v1461, %v1508
      %v1558 = vsel %vm1021, %v1462, %v1510
      %v1559 = vsel %vm1038, %v1551, %v1528
      %v1560 = vsel %vm1038, %v1552, %v1530
      %v1561 = vsel %vm1038, %v1553, %v1532
      %v1562 = vsel %vm1038, %v1554, %v1534
      %v1563 = vsel %vm1038, %v1555, %v1536
      %v1564 = vsel %vm1038, %v1556, %v1538
      %v1565 = vsel %vm1038, %v1557, %v1540
      %v1566 = vsel %vm1038, %v1558, %v1542
      %v1567 = vpack.c.bf16 %v1560, %v1559
      %v1568 = vpack.c.bf16 %v1562, %v1561
      %v1569 = vpack.c.bf16 %v1564, %v1563
      %v1570 = vpack.c.bf16 %v1566, %v1565
      %v1571 = vld [vmem:[%s3] sm:$0xf]
      %v1572 = vld [vmem:[%s3 + $0x4] sm:$0xf]
      %v1573 = vld [vmem:[%s3 + $0x8] sm:$0xf]
      %v1574 = vld [vmem:[%s4] sm:$0x1]
      %v1576 = vlaneseq
      %v1577 = vshrl.u32 %v1576, 7
      %v1578 = vsub.s32 0, %v1577
      %v1579 = vrot.slane %v1574, %v1578
      %v1584 = vunpack.c.l.b16 %v1571
      %v1585 = vunpack.c.l.b16 %v1572
      %v1586 = vunpack.c.l.b16 %v1573
      %v1587 = vpack.c.b16 %v1585, %v1584
      %v1588 = vpack.c.b16 %v1586, %v1586
      %v1591 = vsel %vm1082, %v1567, 0
      %v1594 = vsel %vm1082, %v1568, 0
      %v1597 = vsel %vm1082, %v1569, 0
      %v1600 = vsel %vm1082, %v1570, 0
      %v1603 = vsel %vm1107, %v1588, 0
      %1605 = vmatprep.subr.bf16.mxu0 0
      %1606 = vmatpush1.bf16.msra.mxu0 %v1587
      %1607 = vmatprep.subr.bf16.mxu0 0
      %1608 = vmatpush1.bf16.msra.mxu0 %v1603
      %1609 = vmatprep.subr.bf16.mxu0 0
      %1610 = vmatpush1.bf16.msra.mxu0 0
      %1611 = vmatprep.subr.bf16.mxu0 0
      %1612 = vmatpush1.bf16.msra.mxu0 0
      %1613 = vmatprep.subr.bf16.mxu0 0
      %1614 = vmatpush1.bf16.msra.mxu0 0
      %1615 = vmatprep.subr.bf16.mxu0 0
      %1616 = vmatpush1.bf16.msra.mxu0 0
      %1617 = vmatprep.subr.bf16.mxu0 0
      %1618 = vmatpush1.bf16.msra.mxu0 0
      %1619 = vmatprep.subr.bf16.mxu0 0
      %1620 = vmatpush1.bf16.msra.mxu0 0
      %1621 = vmatprep.subr.bf16.mxu0 0
      %1622 = vmatpush1.bf16.msra.mxu0 0
      %1623 = vmatprep.subr.bf16.mxu0 0
      %1624 = vmatpush1.bf16.msra.mxu0 0
      %1625 = vmatprep.subr.bf16.mxu0 0
      %1626 = vmatpush1.bf16.msra.mxu0 0
      %1627 = vmatprep.subr.bf16.mxu0 0
      %1628 = vmatpush1.bf16.msra.mxu0 0
      %1629 = vmatprep.subr.bf16.mxu0 0
      %1630 = vmatpush1.bf16.msra.mxu0 0
      %1631 = vmatprep.subr.bf16.mxu0 0
      %1632 = vmatpush1.bf16.msra.mxu0 0
      %1633 = vmatprep.subr.bf16.mxu0 0
      %1634 = vmatpush1.bf16.msra.mxu0 0
      %1635 = vmatprep.subr.bf16.mxu0 0
      %1636 = vmatpush1.bf16.msra.mxu0 0
      %1637 = vmatprep.mubr.bf16.mxu0 0
      %1638 = vmatmul.mubr.bf16.gmra.mrb[0].mxu0 %v1591
      %v1639 = vpop.f32.mrb[0].mxu0
      %v1640 = vadd.f32 %v1579, %v1639
      %v1641 = vpop.f32.mrb[0].mxu0
      %v1642 = vpop.f32.mrb[0].mxu0
      %v1643 = vadd.f32 %v1579, %v1642
      %v1644 = vpop.f32.mrb[0].mxu0
      %1645 = vmatprep.mubr.bf16.mxu0 0
      %1646 = vmatmul.mubr.bf16.gmra.mrb[0].mxu0 %v1594
      %v1647 = vpop.f32.mrb[0].mxu0
      %v1648 = vadd.f32 %v1579, %v1647
      %v1649 = vpop.f32.mrb[0].mxu0
      %v1650 = vpop.f32.mrb[0].mxu0
      %v1651 = vadd.f32 %v1579, %v1650
      %v1652 = vpop.f32.mrb[0].mxu0
      %1653 = vmatprep.mubr.bf16.mxu0 0
      %1654 = vmatmul.mubr.bf16.gmra.mrb[0].mxu0 %v1597
      %v1655 = vpop.f32.mrb[0].mxu0
      %v1656 = vadd.f32 %v1579, %v1655
      %v1657 = vpop.f32.mrb[0].mxu0
      %v1658 = vpop.f32.mrb[0].mxu0
      %v1659 = vadd.f32 %v1579, %v1658
      %v1660 = vpop.f32.mrb[0].mxu0
      %1661 = vmatprep.mubr.bf16.mxu0 0
      %1662 = vmatmul.mubr.bf16.gmra.mrb[0].mxu0 %v1600
      %v1663 = vpop.f32.mrb[0].mxu0
      %v1664 = vadd.f32 %v1579, %v1663
      %v1665 = vpop.f32.mrb[0].mxu0
      %v1666 = vpop.f32.mrb[0].mxu0
      %v1667 = vadd.f32 %v1579, %v1666
      %v1668 = vpop.f32.mrb[0].mxu0
      %1669 = vdwg.mxu0
      %v1670 = vmax.f32 %v1640, 0.0
      %v1671 = vmax.f32 %v1643, 0.0
      %v1672 = vmax.f32 %v1648, 0.0
      %v1673 = vmax.f32 %v1651, 0.0
      %v1674 = vmax.f32 %v1656, 0.0
      %v1675 = vmax.f32 %v1659, 0.0
      %v1676 = vmax.f32 %v1664, 0.0
      %v1677 = vmax.f32 %v1667, 0.0
      %1678 = vst.msk [vmem:[#allocation3] sm:$0xff] %vm1038, %v1670
      %1679 = vst.msk [vmem:[#allocation3 + $0x8] sm:$0xff] %vm1038, %v1671
      %1680 = vst.msk [vmem:[#allocation3 + $0x10] sm:$0xff] %vm1038, %v1672
      %1681 = vst.msk [vmem:[#allocation3 + $0x18] sm:$0xff] %vm1038, %v1673
      %1682 = vst.msk [vmem:[#allocation3 + $0x20] sm:$0xff] %vm1038, %v1674
      %1683 = vst.msk [vmem:[#allocation3 + $0x28] sm:$0xff] %vm1038, %v1675
      %1684 = vst.msk [vmem:[#allocation3 + $0x30] sm:$0xff] %vm1038, %v1676
      %1685 = vst.msk [vmem:[#allocation3 + $0x38] sm:$0xff] %vm1038, %v1677
      %v1686 = vld [vmem:[#allocation3] ss:$8 sm:$0xf]
      %v1687 = vld [vmem:[#allocation3] ss:$8 sm:$0xf0]
      %v1688 = vor.u32 %v1686, %v1687
      %s1689 = scalar_lea.vmem [#allocation3], 1
      %v1690 = vld [vmem:[%s1689] ss:$8 sm:$0xf]
      %v1691 = vld [vmem:[%s1689] ss:$8 sm:$0xf0]
      %v1692 = vor.u32 %v1690, %v1691
      %v1693 = vmax.f32 %v1688, %v1692
      %s1694 = scalar_lea.vmem [#allocation3], 2
      %v1695 = vld [vmem:[%s1694] ss:$8 sm:$0xf]
      %v1696 = vld [vmem:[%s1694] ss:$8 sm:$0xf0]
      %v1697 = vor.u32 %v1695, %v1696
      %s1698 = scalar_lea.vmem [#allocation3], 3
      %v1699 = vld [vmem:[%s1698] ss:$8 sm:$0xf]
      %v1700 = vld [vmem:[%s1698] ss:$8 sm:$0xf0]
      %v1701 = vor.u32 %v1699, %v1700
      %v1702 = vmax.f32 %v1697, %v1701
      %s1703 = scalar_lea.vmem [#allocation3], 4
      %v1704 = vld [vmem:[%s1703] ss:$8 sm:$0xf]
      %v1705 = vld [vmem:[%s1703] ss:$8 sm:$0xf0]
      %v1706 = vor.u32 %v1704, %v1705
      %s1707 = scalar_lea.vmem [#allocation3], 5
      %v1708 = vld [vmem:[%s1707] ss:$8 sm:$0xf]
      %v1709 = vld [vmem:[%s1707] ss:$8 sm:$0xf0]
      %v1710 = vor.u32 %v1708, %v1709
      %v1711 = vmax.f32 %v1706, %v1710
      %s1712 = scalar_lea.vmem [#allocation3], 6
      %v1713 = vld [vmem:[%s1712] ss:$8 sm:$0xf]
      %v1714 = vld [vmem:[%s1712] ss:$8 sm:$0xf0]
      %v1715 = vor.u32 %v1713, %v1714
      %s1716 = scalar_lea.vmem [#allocation3], 7
      %v1717 = vld [vmem:[%s1716] ss:$8 sm:$0xf]
      %v1718 = vld [vmem:[%s1716] ss:$8 sm:$0xf0]
      %v1719 = vor.u32 %v1717, %v1718
      %v1720 = vmax.f32 %v1715, %v1719
      %v1721 = vld [vmem:[%s5] sm:$0xff]
      %v1722 = vld [vmem:[%s5 + $0x8] sm:$0xff]
      %v1723 = vld [vmem:[%s7] sm:$0x1]
      %v1725 = vlaneseq
      %v1726 = vshrl.u32 %v1725, 7
      %v1727 = vsub.s32 0, %v1726
      %v1728 = vrot.slane %v1723, %v1727
      %v1731 = vsel %vm1038, %v1693, 0
      %v1734 = vsel %vm1038, %v1702, 0
      %v1737 = vsel %vm1038, %v1711, 0
      %v1740 = vsel %vm1038, %v1720, 0
      %1742 = vmatprep.subr.mxu0 0.0
      %1743 = vmatpush1.msra.mxu0 %v1721
      %1744 = vmatprep.subr.mxu0 0.0
      %1745 = vmatpush1.msra.mxu0 %v1722
      %1746 = vmatprep.subr.mxu0 0.0
      %1747 = vmatpush1.msra.mxu0 0.0
      %1748 = vmatprep.subr.mxu0 0.0
      %1749 = vmatpush1.msra.mxu0 0.0
      %1750 = vmatprep.subr.mxu0 0.0
      %1751 = vmatpush1.msra.mxu0 0.0
      %1752 = vmatprep.subr.mxu0 0.0
      %1753 = vmatpush1.msra.mxu0 0.0
      %1754 = vmatprep.subr.mxu0 0.0
      %1755 = vmatpush1.msra.mxu0 0.0
      %1756 = vmatprep.subr.mxu0 0.0
      %1757 = vmatpush1.msra.mxu0 0.0
      %1758 = vmatprep.subr.mxu0 0.0
      %1759 = vmatpush1.msra.mxu0 0.0
      %1760 = vmatprep.subr.mxu0 0.0
      %1761 = vmatpush1.msra.mxu0 0.0
      %1762 = vmatprep.subr.mxu0 0.0
      %1763 = vmatpush1.msra.mxu0 0.0
      %1764 = vmatprep.subr.mxu0 0.0
      %1765 = vmatpush1.msra.mxu0 0.0
      %1766 = vmatprep.subr.mxu0 0.0
      %1767 = vmatpush1.msra.mxu0 0.0
      %1768 = vmatprep.subr.mxu0 0.0
      %1769 = vmatpush1.msra.mxu0 0.0
      %1770 = vmatprep.subr.mxu0 0.0
      %1771 = vmatpush1.msra.mxu0 0.0
      %1772 = vmatprep.subr.mxu0 0.0
      %1773 = vmatpush1.msra.mxu0 0.0
      %1774 = vmatprep.subr.mxu0 0.0
      %1775 = vmatpush1.msra.mxu0 0.0
      %1776 = vmatprep.subr.mxu0 0.0
      %1777 = vmatpush1.msra.mxu0 0.0
      %1778 = vmatprep.subr.mxu0 0.0
      %1779 = vmatpush1.msra.mxu0 0.0
      %1780 = vmatprep.subr.mxu0 0.0
      %1781 = vmatpush1.msra.mxu0 0.0
      %1782 = vmatprep.subr.mxu0 0.0
      %1783 = vmatpush1.msra.mxu0 0.0
      %1784 = vmatprep.subr.mxu0 0.0
      %1785 = vmatpush1.msra.mxu0 0.0
      %1786 = vmatprep.subr.mxu0 0.0
      %1787 = vmatpush1.msra.mxu0 0.0
      %1788 = vmatprep.subr.mxu0 0.0
      %1789 = vmatpush1.msra.mxu0 0.0
      %1790 = vmatprep.subr.mxu0 0.0
      %1791 = vmatpush1.msra.mxu0 0.0
      %1792 = vmatprep.subr.mxu0 0.0
      %1793 = vmatpush1.msra.mxu0 0.0
      %1794 = vmatprep.subr.mxu0 0.0
      %1795 = vmatpush1.msra.mxu0 0.0
      %1796 = vmatprep.subr.mxu0 0.0
      %1797 = vmatpush1.msra.mxu0 0.0
      %1798 = vmatprep.subr.mxu0 0.0
      %1799 = vmatpush1.msra.mxu0 0.0
      %1800 = vmatprep.subr.mxu0 0.0
      %1801 = vmatpush1.msra.mxu0 0.0
      %1802 = vmatprep.subr.mxu0 0.0
      %1803 = vmatpush1.msra.mxu0 0.0
      %1804 = vmatprep.subr.mxu0 0.0
      %1805 = vmatpush1.msra.mxu0 0.0
      %1806 = vmatprep.mubr.f32.mxu0 0.0
      %1807 = vmatmul.mubr.f32.gmra.mrb[0].mxu0 %v1731
      %v1808 = vpop.f32.mrb[0].mxu0
      %v1809 = vadd.f32 %v1728, %v1808
      %v1810 = vpop.f32.mrb[0].mxu0
      %1811 = vmatprep.mubr.f32.mxu0 0.0
      %1812 = vmatmul.mubr.f32.gmra.mrb[0].mxu0 %v1734
      %v1813 = vpop.f32.mrb[0].mxu0
      %v1814 = vadd.f32 %v1728, %v1813
      %v1815 = vpop.f32.mrb[0].mxu0
      %1816 = vmatprep.mubr.f32.mxu0 0.0
      %1817 = vmatmul.mubr.f32.gmra.mrb[0].mxu0 %v1737
      %v1818 = vpop.f32.mrb[0].mxu0
      %v1819 = vadd.f32 %v1728, %v1818
      %v1820 = vpop.f32.mrb[0].mxu0
      %1821 = vmatprep.mubr.f32.mxu0 0.0
      %1822 = vmatmul.mubr.f32.gmra.mrb[0].mxu0 %v1740
      %v1823 = vpop.f32.mrb[0].mxu0
      %v1824 = vadd.f32 %v1728, %v1823
      %v1825 = vpop.f32.mrb[0].mxu0
      %1826 = vdwg.mxu0
      %vm1827 = vcmask 523264
      %1828 = vst.msk [vmem:[#allocation4] sm:$0xff] %vm1827, %v1809
      %1829 = vst.msk [vmem:[#allocation4 + $0x8] sm:$0xff] %vm1827, %v1814
      %1830 = vst.msk [vmem:[#allocation4 + $0x10] sm:$0xff] %vm1827, %v1819
      %1831 = vst.msk [vmem:[#allocation4 + $0x18] sm:$0xff] %vm1827, %v1824
      %v1832 = vlaneseq
      %v1833 = vand.u32 %v1832, 127
      %vm1834 = vcmp.ge.s32.totalorder %v1833, 32
      %vm1835 = vcmp.lt.s32.totalorder %v1833, 48
      %vm1836 = vmand %vm1834, %vm1835
      %v1837 = vld [vmem:[%s6] sm:$0xff]
      %v1838 = vld [vmem:[%s6 + $0x8] sm:$0xff]
      %v1839 = vld [vmem:[%s9] sm:$0xff]
      %v1840 = vld [vmem:[%s9 + $0x8] sm:$0xff]
      %v1841 = vld [vmem:[#allocation4] sm:$0xff]
      %v1843 = vsel %vm1038, 0.0, 0
      %1845 = vmatprep.subr.mxu0 0.0
      %1846 = vmatpush1.msra.mxu0 %v1837
      %1847 = vmatprep.subr.mxu0 0.0
      %1848 = vmatpush1.msra.mxu0 %v1838
      %1849 = vmatprep.subr.mxu0 0.0
      %1850 = vmatpush1.msra.mxu0 0.0
      %1851 = vmatprep.subr.mxu0 0.0
      %1852 = vmatpush1.msra.mxu0 0.0
      %1853 = vmatprep.subr.mxu0 0.0
      %1854 = vmatpush1.msra.mxu0 0.0
      %1855 = vmatprep.subr.mxu0 0.0
      %1856 = vmatpush1.msra.mxu0 0.0
      %1857 = vmatprep.subr.mxu0 0.0
      %1858 = vmatpush1.msra.mxu0 0.0
      %1859 = vmatprep.subr.mxu0 0.0
      %1860 = vmatpush1.msra.mxu0 0.0
      %1861 = vmatprep.subr.mxu0 0.0
      %1862 = vmatpush1.msra.mxu0 0.0
      %1863 = vmatprep.subr.mxu0 0.0
      %1864 = vmatpush1.msra.mxu0 0.0
      %1865 = vmatprep.subr.mxu0 0.0
      %1866 = vmatpush1.msra.mxu0 0.0
      %1867 = vmatprep.subr.mxu0 0.0
      %1868 = vmatpush1.msra.mxu0 0.0
      %1869 = vmatprep.subr.mxu0 0.0
      %1870 = vmatpush1.msra.mxu0 0.0
      %1871 = vmatprep.subr.mxu0 0.0
      %1872 = vmatpush1.msra.mxu0 0.0
      %1873 = vmatprep.subr.mxu0 0.0
      %1874 = vmatpush1.msra.mxu0 0.0
      %1875 = vmatprep.subr.mxu0 0.0
      %1876 = vmatpush1.msra.mxu0 0.0
      %1877 = vmatprep.subr.mxu0 0.0
      %1878 = vmatpush1.msra.mxu0 0.0
      %1879 = vmatprep.subr.mxu0 0.0
      %1880 = vmatpush1.msra.mxu0 0.0
      %1881 = vmatprep.subr.mxu0 0.0
      %1882 = vmatpush1.msra.mxu0 0.0
      %1883 = vmatprep.subr.mxu0 0.0
      %1884 = vmatpush1.msra.mxu0 0.0
      %1885 = vmatprep.subr.mxu0 0.0
      %1886 = vmatpush1.msra.mxu0 0.0
      %1887 = vmatprep.subr.mxu0 0.0
      %1888 = vmatpush1.msra.mxu0 0.0
      %1889 = vmatprep.subr.mxu0 0.0
      %1890 = vmatpush1.msra.mxu0 0.0
      %1891 = vmatprep.subr.mxu0 0.0
      %1892 = vmatpush1.msra.mxu0 0.0
      %1893 = vmatprep.subr.mxu0 0.0
      %1894 = vmatpush1.msra.mxu0 0.0
      %1895 = vmatprep.subr.mxu0 0.0
      %1896 = vmatpush1.msra.mxu0 0.0
      %1897 = vmatprep.subr.mxu0 0.0
      %1898 = vmatpush1.msra.mxu0 0.0
      %1899 = vmatprep.subr.mxu0 0.0
      %1900 = vmatpush1.msra.mxu0 0.0
      %1901 = vmatprep.subr.mxu0 0.0
      %1902 = vmatpush1.msra.mxu0 0.0
      %1903 = vmatprep.subr.mxu0 0.0
      %1904 = vmatpush1.msra.mxu0 0.0
      %1905 = vmatprep.subr.mxu0 0.0
      %1906 = vmatpush1.msra.mxu0 0.0
      %1907 = vmatprep.subr.mxu0 0.0
      %1908 = vmatpush1.msra.mxu0 0.0
      %1909 = vmatprep.mubr.f32.mxu0 0.0
      %1910 = vmatmul.mubr.f32.gmra.mrb[0].mxu0 %v1843
      %v1911 = vpop.f32.mrb[0].mxu0
      %v1912 = vadd.f32 0.0, %v1911
      %v1913 = vpop.f32.mrb[0].mxu0
      %1914 = vdwg.mxu0
      %v1915 = vadd.f32 %v1841, %v1912
      %v1916 = vtanh.pop %v1915
      %v1917 = vxor.u32 %v1915, 2147483648
      %v1918 = vmul.f32 %v1917, 1.442695
      %v1919 = vpow.pop %v1918
      %v1920 = vadd.f32 %v1919, 1.0
      %v1921 = vrcp.pop %v1920
      %v1922 = vmul.f32 1.0, %v1921
      %v1923 = vsel %vm1836, %v1916, %v1922
      %v1924 = vmul.f32 %v1923, 0.0
      %1926 = vrot.lane.b32.xlu0 %v1923, 96
      %v1927 = vpop.permute.xlu0 %1926
      %v1929 = vmul.f32 %v1923, %v1927
      %1931 = vrot.lane.b32.xlu0 %v1929, 16
      %v1932 = vpop.permute.xlu0 %1931
      %v1934 = vadd.f32 %v1924, %v1932
      %v1935 = vtanh.pop %v1934
      %1937 = vrot.lane.b32.xlu0 %v1935, 32
      %v1938 = vpop.permute.xlu0 %1937
      %v1940 = vmul.f32 %v1923, %v1938
      %1942 = vrot.lane.b32.xlu0 %v1940, 80
      %v1943 = vpop.permute.xlu0 %1942
      %1945 = vst.msk [vmem:[#allocation5] sm:$0xff] %vm1038, %v1943
      %s1946 = scalar_lea.vmem [#allocation4], 8
      %v1947 = vld [vmem:[%s1946] sm:$0xff]
      %v1948 = vsel %vm1038, %v1943, 0
      %1950 = vmatprep.subr.mxu0 0.0
      %1951 = vmatpush1.msra.mxu0 %v1837
      %1952 = vmatprep.subr.mxu0 0.0
      %1953 = vmatpush1.msra.mxu0 %v1838
      %1954 = vmatprep.subr.mxu0 0.0
      %1955 = vmatpush1.msra.mxu0 0.0
      %1956 = vmatprep.subr.mxu0 0.0
      %1957 = vmatpush1.msra.mxu0 0.0
      %1958 = vmatprep.subr.mxu0 0.0
      %1959 = vmatpush1.msra.mxu0 0.0
      %1960 = vmatprep.subr.mxu0 0.0
      %1961 = vmatpush1.msra.mxu0 0.0
      %1962 = vmatprep.subr.mxu0 0.0
      %1963 = vmatpush1.msra.mxu0 0.0
      %1964 = vmatprep.subr.mxu0 0.0
      %1965 = vmatpush1.msra.mxu0 0.0
      %1966 = vmatprep.subr.mxu0 0.0
      %1967 = vmatpush1.msra.mxu0 0.0
      %1968 = vmatprep.subr.mxu0 0.0
      %1969 = vmatpush1.msra.mxu0 0.0
      %1970 = vmatprep.subr.mxu0 0.0
      %1971 = vmatpush1.msra.mxu0 0.0
      %1972 = vmatprep.subr.mxu0 0.0
      %1973 = vmatpush1.msra.mxu0 0.0
      %1974 = vmatprep.subr.mxu0 0.0
      %1975 = vmatpush1.msra.mxu0 0.0
      %1976 = vmatprep.subr.mxu0 0.0
      %1977 = vmatpush1.msra.mxu0 0.0
      %1978 = vmatprep.subr.mxu0 0.0
      %1979 = vmatpush1.msra.mxu0 0.0
      %1980 = vmatprep.subr.mxu0 0.0
      %1981 = vmatpush1.msra.mxu0 0.0
      %1982 = vmatprep.subr.mxu0 0.0
      %1983 = vmatpush1.msra.mxu0 0.0
      %1984 = vmatprep.subr.mxu0 0.0
      %1985 = vmatpush1.msra.mxu0 0.0
      %1986 = vmatprep.subr.mxu0 0.0
      %1987 = vmatpush1.msra.mxu0 0.0
      %1988 = vmatprep.subr.mxu0 0.0
      %1989 = vmatpush1.msra.mxu0 0.0
      %1990 = vmatprep.subr.mxu0 0.0
      %1991 = vmatpush1.msra.mxu0 0.0
      %1992 = vmatprep.subr.mxu0 0.0
      %1993 = vmatpush1.msra.mxu0 0.0
      %1994 = vmatprep.subr.mxu0 0.0
      %1995 = vmatpush1.msra.mxu0 0.0
      %1996 = vmatprep.subr.mxu0 0.0
      %1997 = vmatpush1.msra.mxu0 0.0
      %1998 = vmatprep.subr.mxu0 0.0
      %1999 = vmatpush1.msra.mxu0 0.0
      %2000 = vmatprep.subr.mxu0 0.0
      %2001 = vmatpush1.msra.mxu0 0.0
      %2002 = vmatprep.subr.mxu0 0.0
      %2003 = vmatpush1.msra.mxu0 0.0
      %2004 = vmatprep.subr.mxu0 0.0
      %2005 = vmatpush1.msra.mxu0 0.0
      %2006 = vmatprep.subr.mxu0 0.0
      %2007 = vmatpush1.msra.mxu0 0.0
      %2008 = vmatprep.subr.mxu0 0.0
      %2009 = vmatpush1.msra.mxu0 0.0
      %2010 = vmatprep.subr.mxu0 0.0
      %2011 = vmatpush1.msra.mxu0 0.0
      %2012 = vmatprep.subr.mxu0 0.0
      %2013 = vmatpush1.msra.mxu0 0.0
      %2014 = vmatprep.mubr.f32.mxu0 0.0
      %2015 = vmatmul.mubr.f32.gmra.mrb[0].mxu0 %v1948
      %v2016 = vpop.f32.mrb[0].mxu0
      %v2017 = vadd.f32 0.0, %v2016
      %v2018 = vpop.f32.mrb[0].mxu0
      %2019 = vdwg.mxu0
      %v2020 = vadd.f32 %v1947, %v2017
      %v2021 = vtanh.pop %v2020
      %v2022 = vxor.u32 %v2020, 2147483648
      %v2023 = vmul.f32 %v2022, 1.442695
      %v2024 = vpow.pop %v2023
      %v2025 = vadd.f32 %v2024, 1.0
      %v2026 = vrcp.pop %v2025
      %v2027 = vmul.f32 1.0, %v2026
      %v2028 = vsel %vm1836, %v2021, %v2027
      %v2029 = vmul.f32 %v2028, %v1934
      %2031 = vrot.lane.b32.xlu0 %v2028, 96
      %v2032 = vpop.permute.xlu0 %2031
      %v2034 = vmul.f32 %v2028, %v2032
      %2036 = vrot.lane.b32.xlu0 %v2034, 16
      %v2037 = vpop.permute.xlu0 %2036
      %v2039 = vadd.f32 %v2029, %v2037
      %v2040 = vtanh.pop %v2039
      %2042 = vrot.lane.b32.xlu0 %v2040, 32
      %v2043 = vpop.permute.xlu0 %2042
      %v2045 = vmul.f32 %v2028, %v2043
      %2047 = vrot.lane.b32.xlu0 %v2045, 80
      %v2048 = vpop.permute.xlu0 %2047
      %s2050 = scalar_lea.vmem [#allocation5], 8
      %2051 = vst.msk [vmem:[%s2050] sm:$0xff] %vm1038, %v2048
      %s2052 = scalar_lea.vmem [#allocation4], 16
      %v2053 = vld [vmem:[%s2052] sm:$0xff]
      %v2054 = vsel %vm1038, %v2048, 0
      %2056 = vmatprep.subr.mxu0 0.0
      %2057 = vmatpush1.msra.mxu0 %v1837
      %2058 = vmatprep.subr.mxu0 0.0
      %2059 = vmatpush1.msra.mxu0 %v1838
      %2060 = vmatprep.subr.mxu0 0.0
      %2061 = vmatpush1.msra.mxu0 0.0
      %2062 = vmatprep.subr.mxu0 0.0
      %2063 = vmatpush1.msra.mxu0 0.0
      %2064 = vmatprep.subr.mxu0 0.0
      %2065 = vmatpush1.msra.mxu0 0.0
      %2066 = vmatprep.subr.mxu0 0.0
      %2067 = vmatpush1.msra.mxu0 0.0
      %2068 = vmatprep.subr.mxu0 0.0
      %2069 = vmatpush1.msra.mxu0 0.0
      %2070 = vmatprep.subr.mxu0 0.0
      %2071 = vmatpush1.msra.mxu0 0.0
      %2072 = vmatprep.subr.mxu0 0.0
      %2073 = vmatpush1.msra.mxu0 0.0
      %2074 = vmatprep.subr.mxu0 0.0
      %2075 = vmatpush1.msra.mxu0 0.0
      %2076 = vmatprep.subr.mxu0 0.0
      %2077 = vmatpush1.msra.mxu0 0.0
      %2078 = vmatprep.subr.mxu0 0.0
      %2079 = vmatpush1.msra.mxu0 0.0
      %2080 = vmatprep.subr.mxu0 0.0
      %2081 = vmatpush1.msra.mxu0 0.0
      %2082 = vmatprep.subr.mxu0 0.0
      %2083 = vmatpush1.msra.mxu0 0.0
      %2084 = vmatprep.subr.mxu0 0.0
      %2085 = vmatpush1.msra.mxu0 0.0
      %2086 = vmatprep.subr.mxu0 0.0
      %2087 = vmatpush1.msra.mxu0 0.0
      %2088 = vmatprep.subr.mxu0 0.0
      %2089 = vmatpush1.msra.mxu0 0.0
      %2090 = vmatprep.subr.mxu0 0.0
      %2091 = vmatpush1.msra.mxu0 0.0
      %2092 = vmatprep.subr.mxu0 0.0
      %2093 = vmatpush1.msra.mxu0 0.0
      %2094 = vmatprep.subr.mxu0 0.0
      %2095 = vmatpush1.msra.mxu0 0.0
      %2096 = vmatprep.subr.mxu0 0.0
      %2097 = vmatpush1.msra.mxu0 0.0
      %2098 = vmatprep.subr.mxu0 0.0
      %2099 = vmatpush1.msra.mxu0 0.0
      %2100 = vmatprep.subr.mxu0 0.0
      %2101 = vmatpush1.msra.mxu0 0.0
      %2102 = vmatprep.subr.mxu0 0.0
      %2103 = vmatpush1.msra.mxu0 0.0
      %2104 = vmatprep.subr.mxu0 0.0
      %2105 = vmatpush1.msra.mxu0 0.0
      %2106 = vmatprep.subr.mxu0 0.0
      %2107 = vmatpush1.msra.mxu0 0.0
      %2108 = vmatprep.subr.mxu0 0.0
      %2109 = vmatpush1.msra.mxu0 0.0
      %2110 = vmatprep.subr.mxu0 0.0
      %2111 = vmatpush1.msra.mxu0 0.0
      %2112 = vmatprep.subr.mxu0 0.0
      %2113 = vmatpush1.msra.mxu0 0.0
      %2114 = vmatprep.subr.mxu0 0.0
      %2115 = vmatpush1.msra.mxu0 0.0
      %2116 = vmatprep.subr.mxu0 0.0
      %2117 = vmatpush1.msra.mxu0 0.0
      %2118 = vmatprep.subr.mxu0 0.0
      %2119 = vmatpush1.msra.mxu0 0.0
      %2120 = vmatprep.mubr.f32.mxu0 0.0
      %2121 = vmatmul.mubr.f32.gmra.mrb[0].mxu0 %v2054
      %v2122 = vpop.f32.mrb[0].mxu0
      %v2123 = vadd.f32 0.0, %v2122
      %v2124 = vpop.f32.mrb[0].mxu0
      %2125 = vdwg.mxu0
      %v2126 = vadd.f32 %v2053, %v2123
      %v2127 = vtanh.pop %v2126
      %v2128 = vxor.u32 %v2126, 2147483648
      %v2129 = vmul.f32 %v2128, 1.442695
      %v2130 = vpow.pop %v2129
      %v2131 = vadd.f32 %v2130, 1.0
      %v2132 = vrcp.pop %v2131
      %v2133 = vmul.f32 1.0, %v2132
      %v2134 = vsel %vm1836, %v2127, %v2133
      %v2135 = vmul.f32 %v2134, %v2039
      %2137 = vrot.lane.b32.xlu0 %v2134, 96
      %v2138 = vpop.permute.xlu0 %2137
      %v2140 = vmul.f32 %v2134, %v2138
      %2142 = vrot.lane.b32.xlu0 %v2140, 16
      %v2143 = vpop.permute.xlu0 %2142
      %v2145 = vadd.f32 %v2135, %v2143
      %v2146 = vtanh.pop %v2145
      %2148 = vrot.lane.b32.xlu0 %v2146, 32
      %v2149 = vpop.permute.xlu0 %2148
      %v2151 = vmul.f32 %v2134, %v2149
      %2153 = vrot.lane.b32.xlu0 %v2151, 80
      %v2154 = vpop.permute.xlu0 %2153
      %s2156 = scalar_lea.vmem [#allocation5], 16
      %2157 = vst.msk [vmem:[%s2156] sm:$0xff] %vm1038, %v2154
      %s2158 = scalar_lea.vmem [#allocation4], 24
      %v2159 = vld [vmem:[%s2158] sm:$0xff]
      %v2160 = vsel %vm1038, %v2154, 0
      %2162 = vmatprep.subr.mxu0 0.0
      %2163 = vmatpush1.msra.mxu0 %v1837
      %2164 = vmatprep.subr.mxu0 0.0
      %2165 = vmatpush1.msra.mxu0 %v1838
      %2166 = vmatprep.subr.mxu0 0.0
      %2167 = vmatpush1.msra.mxu0 0.0
      %2168 = vmatprep.subr.mxu0 0.0
      %2169 = vmatpush1.msra.mxu0 0.0
      %2170 = vmatprep.subr.mxu0 0.0
      %2171 = vmatpush1.msra.mxu0 0.0
      %2172 = vmatprep.subr.mxu0 0.0
      %2173 = vmatpush1.msra.mxu0 0.0
      %2174 = vmatprep.subr.mxu0 0.0
      %2175 = vmatpush1.msra.mxu0 0.0
      %2176 = vmatprep.subr.mxu0 0.0
      %2177 = vmatpush1.msra.mxu0 0.0
      %2178 = vmatprep.subr.mxu0 0.0
      %2179 = vmatpush1.msra.mxu0 0.0
      %2180 = vmatprep.subr.mxu0 0.0
      %2181 = vmatpush1.msra.mxu0 0.0
      %2182 = vmatprep.subr.mxu0 0.0
      %2183 = vmatpush1.msra.mxu0 0.0
      %2184 = vmatprep.subr.mxu0 0.0
      %2185 = vmatpush1.msra.mxu0 0.0
      %2186 = vmatprep.subr.mxu0 0.0
      %2187 = vmatpush1.msra.mxu0 0.0
      %2188 = vmatprep.subr.mxu0 0.0
      %2189 = vmatpush1.msra.mxu0 0.0
      %2190 = vmatprep.subr.mxu0 0.0
      %2191 = vmatpush1.msra.mxu0 0.0
      %2192 = vmatprep.subr.mxu0 0.0
      %2193 = vmatpush1.msra.mxu0 0.0
      %2194 = vmatprep.subr.mxu0 0.0
      %2195 = vmatpush1.msra.mxu0 0.0
      %2196 = vmatprep.subr.mxu0 0.0
      %2197 = vmatpush1.msra.mxu0 0.0
      %2198 = vmatprep.subr.mxu0 0.0
      %2199 = vmatpush1.msra.mxu0 0.0
      %2200 = vmatprep.subr.mxu0 0.0
      %2201 = vmatpush1.msra.mxu0 0.0
      %2202 = vmatprep.subr.mxu0 0.0
      %2203 = vmatpush1.msra.mxu0 0.0
      %2204 = vmatprep.subr.mxu0 0.0
      %2205 = vmatpush1.msra.mxu0 0.0
      %2206 = vmatprep.subr.mxu0 0.0
      %2207 = vmatpush1.msra.mxu0 0.0
      %2208 = vmatprep.subr.mxu0 0.0
      %2209 = vmatpush1.msra.mxu0 0.0
      %2210 = vmatprep.subr.mxu0 0.0
      %2211 = vmatpush1.msra.mxu0 0.0
      %2212 = vmatprep.subr.mxu0 0.0
      %2213 = vmatpush1.msra.mxu0 0.0
      %2214 = vmatprep.subr.mxu0 0.0
      %2215 = vmatpush1.msra.mxu0 0.0
      %2216 = vmatprep.subr.mxu0 0.0
      %2217 = vmatpush1.msra.mxu0 0.0
      %2218 = vmatprep.subr.mxu0 0.0
      %2219 = vmatpush1.msra.mxu0 0.0
      %2220 = vmatprep.subr.mxu0 0.0
      %2221 = vmatpush1.msra.mxu0 0.0
      %2222 = vmatprep.subr.mxu0 0.0
      %2223 = vmatpush1.msra.mxu0 0.0
      %2224 = vmatprep.subr.mxu0 0.0
      %2225 = vmatpush1.msra.mxu0 0.0
      %2226 = vmatprep.mubr.f32.mxu0 0.0
      %2227 = vmatmul.mubr.f32.gmra.mrb[0].mxu0 %v2160
      %v2228 = vpop.f32.mrb[0].mxu0
      %v2229 = vadd.f32 0.0, %v2228
      %v2230 = vpop.f32.mrb[0].mxu0
      %2231 = vdwg.mxu0
      %v2232 = vadd.f32 %v2159, %v2229
      %v2233 = vtanh.pop %v2232
      %v2234 = vxor.u32 %v2232, 2147483648
      %v2235 = vmul.f32 %v2234, 1.442695
      %v2236 = vpow.pop %v2235
      %v2237 = vadd.f32 %v2236, 1.0
      %v2238 = vrcp.pop %v2237
      %v2239 = vmul.f32 1.0, %v2238
      %v2240 = vsel %vm1836, %v2233, %v2239
      %v2241 = vmul.f32 %v2240, %v2145
      %2243 = vrot.lane.b32.xlu0 %v2240, 96
      %v2244 = vpop.permute.xlu0 %2243
      %v2246 = vmul.f32 %v2240, %v2244
      %2248 = vrot.lane.b32.xlu0 %v2246, 16
      %v2249 = vpop.permute.xlu0 %2248
      %v2251 = vadd.f32 %v2241, %v2249
      %v2252 = vtanh.pop %v2251
      %2254 = vrot.lane.b32.xlu0 %v2252, 32
      %v2255 = vpop.permute.xlu0 %2254
      %v2257 = vmul.f32 %v2240, %v2255
      %2259 = vrot.lane.b32.xlu0 %v2257, 80
      %v2260 = vpop.permute.xlu0 %2259
      %s2262 = scalar_lea.vmem [#allocation5], 24
      %2263 = vst.msk [vmem:[%s2262] sm:$0xff] %vm1038, %v2260
      %v2264 = vld [vmem:[#allocation5] sm:$0xff]
      %v2265 = vld [vmem:[#allocation5 + $0x8] sm:$0xff]
      %v2266 = vld [vmem:[#allocation5 + $0x10] sm:$0xff]
      %v2267 = vld [vmem:[#allocation5 + $0x18] sm:$0xff]
      %v2268 = vld [vmem:[%s8] sm:$0xff]
      %v2269 = vld [vmem:[%s8 + $0x8] sm:$0xff]
      %v2270 = vld [vmem:[%s10] sm:$0x1]
      %v2272 = vlaneseq
      %v2273 = vshrl.u32 %v2272, 7
      %v2274 = vsub.s32 0, %v2273
      %v2275 = vrot.slane %v2270, %v2274
      %v2278 = vsel %vm1038, %v2264, 0
      %v2281 = vsel %vm1038, %v2265, 0
      %v2284 = vsel %vm1038, %v2266, 0
      %v2287 = vsel %vm1038, %v2267, 0
      %2289 = vmatprep.subr.mxu0 0.0
      %2290 = vmatpush1.msra.mxu0 %v2268
      %2291 = vmatprep.subr.mxu0 0.0
      %2292 = vmatpush1.msra.mxu0 %v2269
      %2293 = vmatprep.subr.mxu0 0.0
      %2294 = vmatpush1.msra.mxu0 0.0
      %2295 = vmatprep.subr.mxu0 0.0
      %2296 = vmatpush1.msra.mxu0 0.0
      %2297 = vmatprep.subr.mxu0 0.0
      %2298 = vmatpush1.msra.mxu0 0.0
      %2299 = vmatprep.subr.mxu0 0.0
      %2300 = vmatpush1.msra.mxu0 0.0
      %2301 = vmatprep.subr.mxu0 0.0
      %2302 = vmatpush1.msra.mxu0 0.0
      %2303 = vmatprep.subr.mxu0 0.0
      %2304 = vmatpush1.msra.mxu0 0.0
      %2305 = vmatprep.subr.mxu0 0.0
      %2306 = vmatpush1.msra.mxu0 0.0
      %2307 = vmatprep.subr.mxu0 0.0
      %2308 = vmatpush1.msra.mxu0 0.0
      %2309 = vmatprep.subr.mxu0 0.0
      %2310 = vmatpush1.msra.mxu0 0.0
      %2311 = vmatprep.subr.mxu0 0.0
      %2312 = vmatpush1.msra.mxu0 0.0
      %2313 = vmatprep.subr.mxu0 0.0
      %2314 = vmatpush1.msra.mxu0 0.0
      %2315 = vmatprep.subr.mxu0 0.0
      %2316 = vmatpush1.msra.mxu0 0.0
      %2317 = vmatprep.subr.mxu0 0.0
      %2318 = vmatpush1.msra.mxu0 0.0
      %2319 = vmatprep.subr.mxu0 0.0
      %2320 = vmatpush1.msra.mxu0 0.0
      %2321 = vmatprep.subr.mxu0 0.0
      %2322 = vmatpush1.msra.mxu0 0.0
      %2323 = vmatprep.subr.mxu0 0.0
      %2324 = vmatpush1.msra.mxu0 0.0
      %2325 = vmatprep.subr.mxu0 0.0
      %2326 = vmatpush1.msra.mxu0 0.0
      %2327 = vmatprep.subr.mxu0 0.0
      %2328 = vmatpush1.msra.mxu0 0.0
      %2329 = vmatprep.subr.mxu0 0.0
      %2330 = vmatpush1.msra.mxu0 0.0
      %2331 = vmatprep.subr.mxu0 0.0
      %2332 = vmatpush1.msra.mxu0 0.0
      %2333 = vmatprep.subr.mxu0 0.0
      %2334 = vmatpush1.msra.mxu0 0.0
      %2335 = vmatprep.subr.mxu0 0.0
      %2336 = vmatpush1.msra.mxu0 0.0
      %2337 = vmatprep.subr.mxu0 0.0
      %2338 = vmatpush1.msra.mxu0 0.0
      %2339 = vmatprep.subr.mxu0 0.0
      %2340 = vmatpush1.msra.mxu0 0.0
      %2341 = vmatprep.subr.mxu0 0.0
      %2342 = vmatpush1.msra.mxu0 0.0
      %2343 = vmatprep.subr.mxu0 0.0
      %2344 = vmatpush1.msra.mxu0 0.0
      %2345 = vmatprep.subr.mxu0 0.0
      %2346 = vmatpush1.msra.mxu0 0.0
      %2347 = vmatprep.subr.mxu0 0.0
      %2348 = vmatpush1.msra.mxu0 0.0
      %2349 = vmatprep.subr.mxu0 0.0
      %2350 = vmatpush1.msra.mxu0 0.0
      %2351 = vmatprep.subr.mxu0 0.0
      %2352 = vmatpush1.msra.mxu0 0.0
      %2353 = vmatprep.mubr.f32.mxu0 0.0
      %2354 = vmatmul.mubr.f32.gmra.mrb[0].mxu0 %v2278
      %v2355 = vpop.f32.mrb[0].mxu0
      %v2356 = vadd.f32 %v2275, %v2355
      %v2357 = vpop.f32.mrb[0].mxu0
      %2358 = vmatprep.mubr.f32.mxu0 0.0
      %2359 = vmatmul.mubr.f32.gmra.mrb[0].mxu0 %v2281
      %v2360 = vpop.f32.mrb[0].mxu0
      %v2361 = vadd.f32 %v2275, %v2360
      %v2362 = vpop.f32.mrb[0].mxu0
      %2363 = vmatprep.mubr.f32.mxu0 0.0
      %2364 = vmatmul.mubr.f32.gmra.mrb[0].mxu0 %v2284
      %v2365 = vpop.f32.mrb[0].mxu0
      %v2366 = vadd.f32 %v2275, %v2365
      %v2367 = vpop.f32.mrb[0].mxu0
      %2368 = vmatprep.mubr.f32.mxu0 0.0
      %2369 = vmatmul.mubr.f32.gmra.mrb[0].mxu0 %v2287
      %v2370 = vpop.f32.mrb[0].mxu0
      %v2371 = vadd.f32 %v2275, %v2370
      %v2372 = vpop.f32.mrb[0].mxu0
      %2373 = vdwg.mxu0
      %2374 = vst.msk [vmem:[#allocation6] sm:$0xff] %vm1827, %v2356
      %2375 = vst.msk [vmem:[#allocation6 + $0x8] sm:$0xff] %vm1827, %v2361
      %2376 = vst.msk [vmem:[#allocation6 + $0x10] sm:$0xff] %vm1827, %v2366
      %2377 = vst.msk [vmem:[#allocation6 + $0x18] sm:$0xff] %vm1827, %v2371
      %v2378 = vld [vmem:[#allocation6] sm:$0xff]
      %2379 = vmatprep.subr.mxu0 0.0
      %2380 = vmatpush1.msra.mxu0 %v1839
      %2381 = vmatprep.subr.mxu0 0.0
      %2382 = vmatpush1.msra.mxu0 %v1840
      %2383 = vmatprep.subr.mxu0 0.0
      %2384 = vmatpush1.msra.mxu0 0.0
      %2385 = vmatprep.subr.mxu0 0.0
      %2386 = vmatpush1.msra.mxu0 0.0
      %2387 = vmatprep.subr.mxu0 0.0
      %2388 = vmatpush1.msra.mxu0 0.0
      %2389 = vmatprep.subr.mxu0 0.0
      %2390 = vmatpush1.msra.mxu0 0.0
      %2391 = vmatprep.subr.mxu0 0.0
      %2392 = vmatpush1.msra.mxu0 0.0
      %2393 = vmatprep.subr.mxu0 0.0
      %2394 = vmatpush1.msra.mxu0 0.0
      %2395 = vmatprep.subr.mxu0 0.0
      %2396 = vmatpush1.msra.mxu0 0.0
      %2397 = vmatprep.subr.mxu0 0.0
      %2398 = vmatpush1.msra.mxu0 0.0
      %2399 = vmatprep.subr.mxu0 0.0
      %2400 = vmatpush1.msra.mxu0 0.0
      %2401 = vmatprep.subr.mxu0 0.0
      %2402 = vmatpush1.msra.mxu0 0.0
      %2403 = vmatprep.subr.mxu0 0.0
      %2404 = vmatpush1.msra.mxu0 0.0
      %2405 = vmatprep.subr.mxu0 0.0
      %2406 = vmatpush1.msra.mxu0 0.0
      %2407 = vmatprep.subr.mxu0 0.0
      %2408 = vmatpush1.msra.mxu0 0.0
      %2409 = vmatprep.subr.mxu0 0.0
      %2410 = vmatpush1.msra.mxu0 0.0
      %2411 = vmatprep.subr.mxu0 0.0
      %2412 = vmatpush1.msra.mxu0 0.0
      %2413 = vmatprep.subr.mxu0 0.0
      %2414 = vmatpush1.msra.mxu0 0.0
      %2415 = vmatprep.subr.mxu0 0.0
      %2416 = vmatpush1.msra.mxu0 0.0
      %2417 = vmatprep.subr.mxu0 0.0
      %2418 = vmatpush1.msra.mxu0 0.0
      %2419 = vmatprep.subr.mxu0 0.0
      %2420 = vmatpush1.msra.mxu0 0.0
      %2421 = vmatprep.subr.mxu0 0.0
      %2422 = vmatpush1.msra.mxu0 0.0
      %2423 = vmatprep.subr.mxu0 0.0
      %2424 = vmatpush1.msra.mxu0 0.0
      %2425 = vmatprep.subr.mxu0 0.0
      %2426 = vmatpush1.msra.mxu0 0.0
      %2427 = vmatprep.subr.mxu0 0.0
      %2428 = vmatpush1.msra.mxu0 0.0
      %2429 = vmatprep.subr.mxu0 0.0
      %2430 = vmatpush1.msra.mxu0 0.0
      %2431 = vmatprep.subr.mxu0 0.0
      %2432 = vmatpush1.msra.mxu0 0.0
      %2433 = vmatprep.subr.mxu0 0.0
      %2434 = vmatpush1.msra.mxu0 0.0
      %2435 = vmatprep.subr.mxu0 0.0
      %2436 = vmatpush1.msra.mxu0 0.0
      %2437 = vmatprep.subr.mxu0 0.0
      %2438 = vmatpush1.msra.mxu0 0.0
      %2439 = vmatprep.subr.mxu0 0.0
      %2440 = vmatpush1.msra.mxu0 0.0
      %2441 = vmatprep.subr.mxu0 0.0
      %2442 = vmatpush1.msra.mxu0 0.0
      %2443 = vmatprep.mubr.f32.mxu0 0.0
      %2444 = vmatmul.mubr.f32.gmra.mrb[0].mxu0 %v1843
      %v2445 = vpop.f32.mrb[0].mxu0
      %v2446 = vadd.f32 0.0, %v2445
      %v2447 = vpop.f32.mrb[0].mxu0
      %2448 = vdwg.mxu0
      %v2449 = vadd.f32 %v2378, %v2446
      %v2450 = vtanh.pop %v2449
      %v2451 = vxor.u32 %v2449, 2147483648
      %v2452 = vmul.f32 %v2451, 1.442695
      %v2453 = vpow.pop %v2452
      %v2454 = vadd.f32 %v2453, 1.0
      %v2455 = vrcp.pop %v2454
      %v2456 = vmul.f32 1.0, %v2455
      %v2457 = vsel %vm1836, %v2450, %v2456
      %v2458 = vmul.f32 %v2457, 0.0
      %2460 = vrot.lane.b32.xlu0 %v2457, 96
      %v2461 = vpop.permute.xlu0 %2460
      %v2463 = vmul.f32 %v2457, %v2461
      %2465 = vrot.lane.b32.xlu0 %v2463, 16
      %v2466 = vpop.permute.xlu0 %2465
      %v2468 = vadd.f32 %v2458, %v2466
      %v2469 = vtanh.pop %v2468
      %2471 = vrot.lane.b32.xlu0 %v2469, 32
      %v2472 = vpop.permute.xlu0 %2471
      %v2474 = vmul.f32 %v2457, %v2472
      %s2475 = scalar_lea.vmem [#allocation6], 8
      %v2476 = vld [vmem:[%s2475] sm:$0xff]
      %2478 = vrot.lane.b32.xlu0 %v2474, 80
      %v2479 = vpop.permute.xlu0 %2478
      %v2480 = vsel %vm1038, %v2479, 0
      %2482 = vmatprep.subr.mxu0 0.0
      %2483 = vmatpush1.msra.mxu0 %v1839
      %2484 = vmatprep.subr.mxu0 0.0
      %2485 = vmatpush1.msra.mxu0 %v1840
      %2486 = vmatprep.subr.mxu0 0.0
      %2487 = vmatpush1.msra.mxu0 0.0
      %2488 = vmatprep.subr.mxu0 0.0
      %2489 = vmatpush1.msra.mxu0 0.0
      %2490 = vmatprep.subr.mxu0 0.0
      %2491 = vmatpush1.msra.mxu0 0.0
      %2492 = vmatprep.subr.mxu0 0.0
      %2493 = vmatpush1.msra.mxu0 0.0
      %2494 = vmatprep.subr.mxu0 0.0
      %2495 = vmatpush1.msra.mxu0 0.0
      %2496 = vmatprep.subr.mxu0 0.0
      %2497 = vmatpush1.msra.mxu0 0.0
      %2498 = vmatprep.subr.mxu0 0.0
      %2499 = vmatpush1.msra.mxu0 0.0
      %2500 = vmatprep.subr.mxu0 0.0
      %2501 = vmatpush1.msra.mxu0 0.0
      %2502 = vmatprep.subr.mxu0 0.0
      %2503 = vmatpush1.msra.mxu0 0.0
      %2504 = vmatprep.subr.mxu0 0.0
      %2505 = vmatpush1.msra.mxu0 0.0
      %2506 = vmatprep.subr.mxu0 0.0
      %2507 = vmatpush1.msra.mxu0 0.0
      %2508 = vmatprep.subr.mxu0 0.0
      %2509 = vmatpush1.msra.mxu0 0.0
      %2510 = vmatprep.subr.mxu0 0.0
      %2511 = vmatpush1.msra.mxu0 0.0
      %2512 = vmatprep.subr.mxu0 0.0
      %2513 = vmatpush1.msra.mxu0 0.0
      %2514 = vmatprep.subr.mxu0 0.0
      %2515 = vmatpush1.msra.mxu0 0.0
      %2516 = vmatprep.subr.mxu0 0.0
      %2517 = vmatpush1.msra.mxu0 0.0
      %2518 = vmatprep.subr.mxu0 0.0
      %2519 = vmatpush1.msra.mxu0 0.0
      %2520 = vmatprep.subr.mxu0 0.0
      %2521 = vmatpush1.msra.mxu0 0.0
      %2522 = vmatprep.subr.mxu0 0.0
      %2523 = vmatpush1.msra.mxu0 0.0
      %2524 = vmatprep.subr.mxu0 0.0
      %2525 = vmatpush1.msra.mxu0 0.0
      %2526 = vmatprep.subr.mxu0 0.0
      %2527 = vmatpush1.msra.mxu0 0.0
      %2528 = vmatprep.subr.mxu0 0.0
      %2529 = vmatpush1.msra.mxu0 0.0
      %2530 = vmatprep.subr.mxu0 0.0
      %2531 = vmatpush1.msra.mxu0 0.0
      %2532 = vmatprep.subr.mxu0 0.0
      %2533 = vmatpush1.msra.mxu0 0.0
      %2534 = vmatprep.subr.mxu0 0.0
      %2535 = vmatpush1.msra.mxu0 0.0
      %2536 = vmatprep.subr.mxu0 0.0
      %2537 = vmatpush1.msra.mxu0 0.0
      %2538 = vmatprep.subr.mxu0 0.0
      %2539 = vmatpush1.msra.mxu0 0.0
      %2540 = vmatprep.subr.mxu0 0.0
      %2541 = vmatpush1.msra.mxu0 0.0
      %2542 = vmatprep.subr.mxu0 0.0
      %2543 = vmatpush1.msra.mxu0 0.0
      %2544 = vmatprep.subr.mxu0 0.0
      %2545 = vmatpush1.msra.mxu0 0.0
      %2546 = vmatprep.mubr.f32.mxu0 0.0
      %2547 = vmatmul.mubr.f32.gmra.mrb[0].mxu0 %v2480
      %v2548 = vpop.f32.mrb[0].mxu0
      %v2549 = vadd.f32 0.0, %v2548
      %v2550 = vpop.f32.mrb[0].mxu0
      %2551 = vdwg.mxu0
      %v2552 = vadd.f32 %v2476, %v2549
      %v2553 = vtanh.pop %v2552
      %v2554 = vxor.u32 %v2552, 2147483648
      %v2555 = vmul.f32 %v2554, 1.442695
      %v2556 = vpow.pop %v2555
      %v2557 = vadd.f32 %v2556, 1.0
      %v2558 = vrcp.pop %v2557
      %v2559 = vmul.f32 1.0, %v2558
      %v2560 = vsel %vm1836, %v2553, %v2559
      %v2561 = vmul.f32 %v2560, %v2468
      %2563 = vrot.lane.b32.xlu0 %v2560, 96
      %v2564 = vpop.permute.xlu0 %2563
      %v2566 = vmul.f32 %v2560, %v2564
      %2568 = vrot.lane.b32.xlu0 %v2566, 16
      %v2569 = vpop.permute.xlu0 %2568
      %v2571 = vadd.f32 %v2561, %v2569
      %v2572 = vtanh.pop %v2571
      %2574 = vrot.lane.b32.xlu0 %v2572, 32
      %v2575 = vpop.permute.xlu0 %2574
      %v2577 = vmul.f32 %v2560, %v2575
      %s2578 = scalar_lea.vmem [#allocation6], 16
      %v2579 = vld [vmem:[%s2578] sm:$0xff]
      %2581 = vrot.lane.b32.xlu0 %v2577, 80
      %v2582 = vpop.permute.xlu0 %2581
      %v2583 = vsel %vm1038, %v2582, 0
      %2585 = vmatprep.subr.mxu0 0.0
      %2586 = vmatpush1.msra.mxu0 %v1839
      %2587 = vmatprep.subr.mxu0 0.0
      %2588 = vmatpush1.msra.mxu0 %v1840
      %2589 = vmatprep.subr.mxu0 0.0
      %2590 = vmatpush1.msra.mxu0 0.0
      %2591 = vmatprep.subr.mxu0 0.0
      %2592 = vmatpush1.msra.mxu0 0.0
      %2593 = vmatprep.subr.mxu0 0.0
      %2594 = vmatpush1.msra.mxu0 0.0
      %2595 = vmatprep.subr.mxu0 0.0
      %2596 = vmatpush1.msra.mxu0 0.0
      %2597 = vmatprep.subr.mxu0 0.0
      %2598 = vmatpush1.msra.mxu0 0.0
      %2599 = vmatprep.subr.mxu0 0.0
      %2600 = vmatpush1.msra.mxu0 0.0
      %2601 = vmatprep.subr.mxu0 0.0
      %2602 = vmatpush1.msra.mxu0 0.0
      %2603 = vmatprep.subr.mxu0 0.0
      %2604 = vmatpush1.msra.mxu0 0.0
      %2605 = vmatprep.subr.mxu0 0.0
      %2606 = vmatpush1.msra.mxu0 0.0
      %2607 = vmatprep.subr.mxu0 0.0
      %2608 = vmatpush1.msra.mxu0 0.0
      %2609 = vmatprep.subr.mxu0 0.0
      %2610 = vmatpush1.msra.mxu0 0.0
      %2611 = vmatprep.subr.mxu0 0.0
      %2612 = vmatpush1.msra.mxu0 0.0
      %2613 = vmatprep.subr.mxu0 0.0
      %2614 = vmatpush1.msra.mxu0 0.0
      %2615 = vmatprep.subr.mxu0 0.0
      %2616 = vmatpush1.msra.mxu0 0.0
      %2617 = vmatprep.subr.mxu0 0.0
      %2618 = vmatpush1.msra.mxu0 0.0
      %2619 = vmatprep.subr.mxu0 0.0
      %2620 = vmatpush1.msra.mxu0 0.0
      %2621 = vmatprep.subr.mxu0 0.0
      %2622 = vmatpush1.msra.mxu0 0.0
      %2623 = vmatprep.subr.mxu0 0.0
      %2624 = vmatpush1.msra.mxu0 0.0
      %2625 = vmatprep.subr.mxu0 0.0
      %2626 = vmatpush1.msra.mxu0 0.0
      %2627 = vmatprep.subr.mxu0 0.0
      %2628 = vmatpush1.msra.mxu0 0.0
      %2629 = vmatprep.subr.mxu0 0.0
      %2630 = vmatpush1.msra.mxu0 0.0
      %2631 = vmatprep.subr.mxu0 0.0
      %2632 = vmatpush1.msra.mxu0 0.0
      %2633 = vmatprep.subr.mxu0 0.0
      %2634 = vmatpush1.msra.mxu0 0.0
      %2635 = vmatprep.subr.mxu0 0.0
      %2636 = vmatpush1.msra.mxu0 0.0
      %2637 = vmatprep.subr.mxu0 0.0
      %2638 = vmatpush1.msra.mxu0 0.0
      %2639 = vmatprep.subr.mxu0 0.0
      %2640 = vmatpush1.msra.mxu0 0.0
      %2641 = vmatprep.subr.mxu0 0.0
      %2642 = vmatpush1.msra.mxu0 0.0
      %2643 = vmatprep.subr.mxu0 0.0
      %2644 = vmatpush1.msra.mxu0 0.0
      %2645 = vmatprep.subr.mxu0 0.0
      %2646 = vmatpush1.msra.mxu0 0.0
      %2647 = vmatprep.subr.mxu0 0.0
      %2648 = vmatpush1.msra.mxu0 0.0
      %2649 = vmatprep.mubr.f32.mxu0 0.0
      %2650 = vmatmul.mubr.f32.gmra.mrb[0].mxu0 %v2583
      %v2651 = vpop.f32.mrb[0].mxu0
      %v2652 = vadd.f32 0.0, %v2651
      %v2653 = vpop.f32.mrb[0].mxu0
      %2654 = vdwg.mxu0
      %v2655 = vadd.f32 %v2579, %v2652
      %v2656 = vtanh.pop %v2655
      %v2657 = vxor.u32 %v2655, 2147483648
      %v2658 = vmul.f32 %v2657, 1.442695
      %v2659 = vpow.pop %v2658
      %v2660 = vadd.f32 %v2659, 1.0
      %v2661 = vrcp.pop %v2660
      %v2662 = vmul.f32 1.0, %v2661
      %v2663 = vsel %vm1836, %v2656, %v2662
      %v2664 = vmul.f32 %v2663, %v2571
      %2666 = vrot.lane.b32.xlu0 %v2663, 96
      %v2667 = vpop.permute.xlu0 %2666
      %v2669 = vmul.f32 %v2663, %v2667
      %2671 = vrot.lane.b32.xlu0 %v2669, 16
      %v2672 = vpop.permute.xlu0 %2671
      %v2674 = vadd.f32 %v2664, %v2672
      %v2675 = vtanh.pop %v2674
      %2677 = vrot.lane.b32.xlu0 %v2675, 32
      %v2678 = vpop.permute.xlu0 %2677
      %v2680 = vmul.f32 %v2663, %v2678
      %s2681 = scalar_lea.vmem [#allocation6], 24
      %v2682 = vld [vmem:[%s2681] sm:$0xff]
      %2684 = vrot.lane.b32.xlu0 %v2680, 80
      %v2685 = vpop.permute.xlu0 %2684
      %v2686 = vsel %vm1038, %v2685, 0
      %2688 = vmatprep.subr.mxu0 0.0
      %2689 = vmatpush1.msra.mxu0 %v1839
      %2690 = vmatprep.subr.mxu0 0.0
      %2691 = vmatpush1.msra.mxu0 %v1840
      %2692 = vmatprep.subr.mxu0 0.0
      %2693 = vmatpush1.msra.mxu0 0.0
      %2694 = vmatprep.subr.mxu0 0.0
      %2695 = vmatpush1.msra.mxu0 0.0
      %2696 = vmatprep.subr.mxu0 0.0
      %2697 = vmatpush1.msra.mxu0 0.0
      %2698 = vmatprep.subr.mxu0 0.0
      %2699 = vmatpush1.msra.mxu0 0.0
      %2700 = vmatprep.subr.mxu0 0.0
      %2701 = vmatpush1.msra.mxu0 0.0
      %2702 = vmatprep.subr.mxu0 0.0
      %2703 = vmatpush1.msra.mxu0 0.0
      %2704 = vmatprep.subr.mxu0 0.0
      %2705 = vmatpush1.msra.mxu0 0.0
      %2706 = vmatprep.subr.mxu0 0.0
      %2707 = vmatpush1.msra.mxu0 0.0
      %2708 = vmatprep.subr.mxu0 0.0
      %2709 = vmatpush1.msra.mxu0 0.0
      %2710 = vmatprep.subr.mxu0 0.0
      %2711 = vmatpush1.msra.mxu0 0.0
      %2712 = vmatprep.subr.mxu0 0.0
      %2713 = vmatpush1.msra.mxu0 0.0
      %2714 = vmatprep.subr.mxu0 0.0
      %2715 = vmatpush1.msra.mxu0 0.0
      %2716 = vmatprep.subr.mxu0 0.0
      %2717 = vmatpush1.msra.mxu0 0.0
      %2718 = vmatprep.subr.mxu0 0.0
      %2719 = vmatpush1.msra.mxu0 0.0
      %2720 = vmatprep.subr.mxu0 0.0
      %2721 = vmatpush1.msra.mxu0 0.0
      %2722 = vmatprep.subr.mxu0 0.0
      %2723 = vmatpush1.msra.mxu0 0.0
      %2724 = vmatprep.subr.mxu0 0.0
      %2725 = vmatpush1.msra.mxu0 0.0
      %2726 = vmatprep.subr.mxu0 0.0
      %2727 = vmatpush1.msra.mxu0 0.0
      %2728 = vmatprep.subr.mxu0 0.0
      %2729 = vmatpush1.msra.mxu0 0.0
      %2730 = vmatprep.subr.mxu0 0.0
      %2731 = vmatpush1.msra.mxu0 0.0
      %2732 = vmatprep.subr.mxu0 0.0
      %2733 = vmatpush1.msra.mxu0 0.0
      %2734 = vmatprep.subr.mxu0 0.0
      %2735 = vmatpush1.msra.mxu0 0.0
      %2736 = vmatprep.subr.mxu0 0.0
      %2737 = vmatpush1.msra.mxu0 0.0
      %2738 = vmatprep.subr.mxu0 0.0
      %2739 = vmatpush1.msra.mxu0 0.0
      %2740 = vmatprep.subr.mxu0 0.0
      %2741 = vmatpush1.msra.mxu0 0.0
      %2742 = vmatprep.subr.mxu0 0.0
      %2743 = vmatpush1.msra.mxu0 0.0
      %2744 = vmatprep.subr.mxu0 0.0
      %2745 = vmatpush1.msra.mxu0 0.0
      %2746 = vmatprep.subr.mxu0 0.0
      %2747 = vmatpush1.msra.mxu0 0.0
      %2748 = vmatprep.subr.mxu0 0.0
      %2749 = vmatpush1.msra.mxu0 0.0
      %2750 = vmatprep.subr.mxu0 0.0
      %2751 = vmatpush1.msra.mxu0 0.0
      %2752 = vmatprep.mubr.f32.mxu0 0.0
      %2753 = vmatmul.mubr.f32.gmra.mrb[0].mxu0 %v2686
      %v2754 = vpop.f32.mrb[0].mxu0
      %v2755 = vadd.f32 0.0, %v2754
      %v2756 = vpop.f32.mrb[0].mxu0
      %2757 = vdwg.mxu0
      %v2758 = vadd.f32 %v2682, %v2755
      %v2759 = vtanh.pop %v2758
      %v2760 = vxor.u32 %v2758, 2147483648
      %v2761 = vmul.f32 %v2760, 1.442695
      %v2762 = vpow.pop %v2761
      %v2763 = vadd.f32 %v2762, 1.0
      %v2764 = vrcp.pop %v2763
      %v2765 = vmul.f32 1.0, %v2764
      %v2766 = vsel %vm1836, %v2759, %v2765
      %v2767 = vmul.f32 %v2766, %v2674
      %2769 = vrot.lane.b32.xlu0 %v2766, 96
      %v2770 = vpop.permute.xlu0 %2769
      %v2772 = vmul.f32 %v2766, %v2770
      %2774 = vrot.lane.b32.xlu0 %v2772, 16
      %v2775 = vpop.permute.xlu0 %2774
      %v2777 = vadd.f32 %v2767, %v2775
      %v2778 = vtanh.pop %v2777
      %2780 = vrot.lane.b32.xlu0 %v2778, 32
      %v2781 = vpop.permute.xlu0 %2780
      %v2783 = vmul.f32 %v2766, %v2781
      %v2784 = vld [vmem:[%s11] sm:$0xff]
      %v2785 = vld [vmem:[%s11 + $0x8] sm:$0xff]
      %v2786 = vld [vmem:[%s12] sm:$0x1]
      %v2788 = vlaneseq
      %v2789 = vshrl.u32 %v2788, 7
      %v2790 = vsub.s32 0, %v2789
      %v2791 = vrot.slane %v2786, %v2790
      %2794 = vrot.lane.b32.xlu0 %v2783, 80
      %v2795 = vpop.permute.xlu0 %2794
      %v2796 = vsel %vm1038, %v2795, 0
      %2798 = vmatprep.subr.mxu0 0.0
      %2799 = vmatpush1.msra.mxu0 %v2784
      %2800 = vmatprep.subr.mxu0 0.0
      %2801 = vmatpush1.msra.mxu0 %v2785
      %2802 = vmatprep.subr.mxu0 0.0
      %2803 = vmatpush1.msra.mxu0 0.0
      %2804 = vmatprep.subr.mxu0 0.0
      %2805 = vmatpush1.msra.mxu0 0.0
      %2806 = vmatprep.subr.mxu0 0.0
      %2807 = vmatpush1.msra.mxu0 0.0
      %2808 = vmatprep.subr.mxu0 0.0
      %2809 = vmatpush1.msra.mxu0 0.0
      %2810 = vmatprep.subr.mxu0 0.0
      %2811 = vmatpush1.msra.mxu0 0.0
      %2812 = vmatprep.subr.mxu0 0.0
      %2813 = vmatpush1.msra.mxu0 0.0
      %2814 = vmatprep.subr.mxu0 0.0
      %2815 = vmatpush1.msra.mxu0 0.0
      %2816 = vmatprep.subr.mxu0 0.0
      %2817 = vmatpush1.msra.mxu0 0.0
      %2818 = vmatprep.subr.mxu0 0.0
      %2819 = vmatpush1.msra.mxu0 0.0
      %2820 = vmatprep.subr.mxu0 0.0
      %2821 = vmatpush1.msra.mxu0 0.0
      %2822 = vmatprep.subr.mxu0 0.0
      %2823 = vmatpush1.msra.mxu0 0.0
      %2824 = vmatprep.subr.mxu0 0.0
      %2825 = vmatpush1.msra.mxu0 0.0
      %2826 = vmatprep.subr.mxu0 0.0
      %2827 = vmatpush1.msra.mxu0 0.0
      %2828 = vmatprep.subr.mxu0 0.0
      %2829 = vmatpush1.msra.mxu0 0.0
      %2830 = vmatprep.subr.mxu0 0.0
      %2831 = vmatpush1.msra.mxu0 0.0
      %2832 = vmatprep.subr.mxu0 0.0
      %2833 = vmatpush1.msra.mxu0 0.0
      %2834 = vmatprep.subr.mxu0 0.0
      %2835 = vmatpush1.msra.mxu0 0.0
      %2836 = vmatprep.subr.mxu0 0.0
      %2837 = vmatpush1.msra.mxu0 0.0
      %2838 = vmatprep.subr.mxu0 0.0
      %2839 = vmatpush1.msra.mxu0 0.0
      %2840 = vmatprep.subr.mxu0 0.0
      %2841 = vmatpush1.msra.mxu0 0.0
      %2842 = vmatprep.subr.mxu0 0.0
      %2843 = vmatpush1.msra.mxu0 0.0
      %2844 = vmatprep.subr.mxu0 0.0
      %2845 = vmatpush1.msra.mxu0 0.0
      %2846 = vmatprep.subr.mxu0 0.0
      %2847 = vmatpush1.msra.mxu0 0.0
      %2848 = vmatprep.subr.mxu0 0.0
      %2849 = vmatpush1.msra.mxu0 0.0
      %2850 = vmatprep.subr.mxu0 0.0
      %2851 = vmatpush1.msra.mxu0 0.0
      %2852 = vmatprep.subr.mxu0 0.0
      %2853 = vmatpush1.msra.mxu0 0.0
      %2854 = vmatprep.subr.mxu0 0.0
      %2855 = vmatpush1.msra.mxu0 0.0
      %2856 = vmatprep.subr.mxu0 0.0
      %2857 = vmatpush1.msra.mxu0 0.0
      %2858 = vmatprep.subr.mxu0 0.0
      %2859 = vmatpush1.msra.mxu0 0.0
      %2860 = vmatprep.subr.mxu0 0.0
      %2861 = vmatpush1.msra.mxu0 0.0
      %2862 = vmatprep.mubr.f32.mxu0 0.0
      %2863 = vmatmul.mubr.f32.gmra.mrb[0].mxu0 %v2796
      %v2864 = vpop.f32.mrb[0].mxu0
      %v2865 = vadd.f32 %v2791, %v2864
      %v2866 = vpop.f32.mrb[0].mxu0
      %2867 = vdwg.mxu0
      %vm2868 = vcmask 23552
      %2869 = vst.msk [vmem:[%s440] sm:$0xff] %vm2868, %v2865
      %p2870 = scmp.lt.s32.totalorder %s24, 1
      %s2871 = scalar_select %p2870, %s24, 1
      %s2872 = smul.addr %s2871, 8
      %s2873 = scalar_lea.vmem %s13, %s2872
      // Predicated region
      $region73: #{tpu_custom_call.1} parent=71 // pred_check
        %p2874 = pneg %p320
      $region74: #{tpu_custom_call.1} parent=71 // pred_check_branch
        %2876 = sbr.rel (%p2874) target = $region76
      $region75: #{tpu_custom_call.1} parent=71 // pred_region
        _
      $region76: #{tpu_custom_call.1} parent=71 // pred_fallthru
        _
    $region72: #{tpu_custom_call.1} parent=5 // pred_fallthru
      _
    %p2877 = scmp.le.s32.totalorder 2, %s19
    // Predicated region
    $region77: #{tpu_custom_call.1} parent=5 // pred_check
      %p2878 = pneg %p2877
    $region78: #{tpu_custom_call.1} parent=5 // pred_check_branch
      %2880 = sbr.rel (%p2878) target = $region80
    $region79: #{tpu_custom_call.1} parent=5 // pred_region
      %s2881 = ssub.s32 %s19, 2
      // Predicated region
      $region81: #{tpu_custom_call.1} parent=79 // pred_check
        %p2882 = pneg %p326
      $region82: #{tpu_custom_call.1} parent=79 // pred_check_branch
        %2884 = sbr.rel (%p2882) target = $region84
      $region83: #{tpu_custom_call.1} parent=79 // pred_region
        %p2885 = scmp.lt.s32.totalorder %s25, 1
        %s2886 = scalar_select %p2885, %s25, 1
        %s2887 = smul.addr %s2886, 8
        %s2888 = scalar_lea.vmem %s13, %s2887
      $region84: #{tpu_custom_call.1} parent=79 // pred_fallthru
        _
    $region80: #{tpu_custom_call.1} parent=5 // pred_fallthru
      _
  $region6: #{tpu_custom_call.1} parent=0 // loop_footer
    %s23 = sadd.s32 1, %s19
  $region7: #{tpu_custom_call.1} parent=0 // loop_footer_branch
    %18 = sbr.rel target = $region3
  $region8: #{tpu_custom_call.1} parent=0 // loop_exit
    _

</llo_original>
